<compile_context>
chip_gen: v7x
topology: tpu7x:2x2x1
jax: 0.10.0
libtpu: 0.0.40
codegen_flags: <defaults>
</compile_context>

<pallas_src>
import jax
import jax.numpy as jnp
from jax import lax
from jax.experimental import pallas as pl
from jax.experimental.pallas import tpu as pltpu

_BN_EPS = 1e-5
_CPAD = 128          # padded channel (K) width: lane-dense, one MXU push per matmul


def _elu(y):
    # ELU(alpha=1); clamp inside exp so the unselected branch never overflows.
    return jnp.where(y > 0, y, jnp.exp(jnp.minimum(y, 0.0)) - 1.0)


def _sigmoid(x):
    # Stable logistic: one exp (EUP) + one approx reciprocal (EUP) + selects.
    z = jnp.exp(-jnp.abs(x))
    inv = pl.reciprocal(1.0 + z, approx=True)
    return jnp.where(x >= 0, inv, z * inv)


# ---------------------------- module forward ----------------------------

def dense_conv_transpose2d_forward(x_nchw, params, *, stride=(1, 2), padding=(0, 1)):
    N, Cin, H, W = x_nchw.shape
    M = N * H
    MW = M * W

    G = params["w1"].shape[0]
    w5a, w5b = params["w5a"], params["w5b"]
    Cd, Cout, kw = w5a.shape[0], w5a.shape[1], w5a.shape[3]
    assert (kw, stride[1], padding[1]) == (4, 2, 1), (
        "parity-decomposed deconv is hard-wired for kernel (1,4)/stride (1,2)/pad (0,1)")
    assert Cd == Cin + 4 * G
    assert Cd <= _CPAD - 2, "need 2 spare (zero-weight) channels for boundary masks"
    assert 3 * G <= 128 and 8 * Cout <= 128
    DW = 4 * Cout            # [za_even|za_odd|zb_even|zb_odd] lane width

    # ---- input slab: NCHW -> flat channel-last rows, channel-padded, bf16 ----
    x_rows = jnp.transpose(x_nchw, (0, 2, 3, 1)).reshape(MW, Cin).astype(jnp.float32)
    widx = jnp.arange(MW, dtype=jnp.int32) % W
    mask_l = (widx > 0).astype(jnp.float32)        # row has a left  neighbour (w > 0)
    mask_r = (widx < W - 1).astype(jnp.float32)    # row has a right neighbour (w < W-1)
    x_pad = jnp.zeros((MW, _CPAD), jnp.float32)
    x_pad = x_pad.at[:, :Cin].set(x_rows)
    # Stash the per-row boundary masks in the last two channels: their weight
    # rows are zero everywhere, so they never contribute to any matmul.
    x_pad = x_pad.at[:, _CPAD - 2].set(mask_l)
    x_pad = x_pad.at[:, _CPAD - 1].set(mask_r)
    x_pad = x_pad.astype(jnp.bfloat16)

    # ---- weight slab: (6, 128, 128) bf16, K zero-padded to _CPAD ----
    def conv_slot(w):          # Conv2d weight (G, Ci, 1, 3)
        g, ci = w.shape[0], w.shape[1]
        taps = jnp.transpose(w[:, :, 0, :], (2, 1, 0)).astype(jnp.float32)   # (3, Ci, G)
        s = jnp.zeros((_CPAD, 128), jnp.float32)
        for k in range(3):                      # lanes [kG,(k+1)G) = tap k
            s = s.at[:ci, k * g:(k + 1) * g].set(taps[k])
        return s

    def parity_blocks(w):      # ConvTranspose2d weight (Cd, Cout, 1, 4)
        t = [w[:, :, 0, k].astype(jnp.float32) for k in range(4)]
        z = jnp.zeros_like(t[0])
        return (jnp.concatenate([t[3], z], axis=1),     # pairs with x[w-1]
                jnp.concatenate([t[1], t[2]], axis=1),  # pairs with x[w]
                jnp.concatenate([z, t[0]], axis=1))     # pairs with x[w+1]

    a0, a1, a2 = parity_blocks(w5a)            # value path
    b0, b1, b2 = parity_blocks(w5b)            # gate path
    d0 = jnp.concatenate([a0, b0], axis=1)     # (Cd, DW)
    d1 = jnp.concatenate([a1, b1], axis=1)
    d2 = jnp.concatenate([a2, b2], axis=1)
    s4 = (jnp.zeros((_CPAD, 128), jnp.float32)
          .at[:Cd, :DW].set(d0).at[:Cd, DW:2 * DW].set(d1))
    s5 = jnp.zeros((_CPAD, 128), jnp.float32).at[:Cd, :DW].set(d2)
    w_slab = jnp.stack([conv_slot(params["w1"]), conv_slot(params["w2"]),
                        conv_slot(params["w3"]), conv_slot(params["w4"]),
                        s4, s5], axis=0).astype(jnp.bfloat16)

    # ---- scalar slab: (16, 128) f32 ----
    p_slab = jnp.zeros((16, 128), jnp.float32)
    for i in range(4):
        p_slab = p_slab.at[i, :G].set(params[f"b{i + 1}"])          # conv bias
        p_slab = p_slab.at[4 + i, :G].set(params[f"g{i + 1}"])      # BN gamma
        p_slab = p_slab.at[8 + i, :G].set(params[f"be{i + 1}"])     # BN beta
    p_slab = p_slab.at[12, :2 * Cout].set(jnp.tile(params["b5a"], 2))
    p_slab = p_slab.at[13, :2 * Cout].set(jnp.tile(params["b5b"], 2))

    # ---------------------------- fused kernel ----------------------------
    def kernel(x_ref, w_ref, p_ref, o_ref, cat_ref):
        mw = x_ref.shape[0]
        # Single copy: x already carries the channel zero-padding, so this also
        # initialises the dense-concat scratch (no stale-VMEM hazard, no extra
        # zero-fill store pass).
        cat_ref[...] = x_ref[...]
        ml = x_ref[:, _CPAD - 2:_CPAD - 1].astype(jnp.float32)   # (MW,1)
        mr = x_ref[:, _CPAD - 1:_CPAD].astype(jnp.float32)       # (MW,1)

        def conv_bn_elu(i, ci):
            # One bf16 MXU matmul computes all three 1x3 taps at once:
            # q lanes [0:G)=x[w-1]-tap, [G:2G)=x[w]-tap, [2G:3G)=x[w+1]-tap.
            q = jnp.dot(cat_ref[...], w_ref[i], preferred_element_type=jnp.float32)
            qm = pltpu.roll(q, shift=1, axis=0)         # q[r-1]
            qp = pltpu.roll(q, shift=mw - 1, axis=0)    # q[r+1]
            y = (qm[:, 0:G] * ml + q[:, G:2 * G] + qp[:, 2 * G:3 * G] * mr
                 + p_ref[i:i + 1, 0:G])                                 # + conv bias
            # BatchNorm2d (training-mode batch stats over all N,H,W rows), f32,
            # single stats pass: (y - mean) reused for var and normalisation.
            mean = jnp.mean(y, axis=0, keepdims=True)
            c = y - mean
            var = jnp.mean(c * c, axis=0, keepdims=True)
            o = _elu(c * (p_ref[4 + i:5 + i, 0:G] * lax.rsqrt(var + _BN_EPS))
                     + p_ref[8 + i:9 + i, 0:G])
            # Append as the next G channels of the dense concatenation.
            cat_ref[:, ci:ci + G] = o.astype(cat_ref.dtype)

        conv_bn_elu(0, Cin)
        conv_bn_elu(1, Cin + G)
        conv_bn_elu(2, Cin + 2 * G)
        conv_bn_elu(3, Cin + 3 * G)

        # GLU ConvTranspose2d kernel (1,4)/stride (1,2)/pad (0,1), decomposed by
        # output parity (lanes = [even Cout | odd Cout], value | gate stacked):
        #   y[2t]   = x[t]·w1 + x[t-1]·w3,   y[2t+1] = x[t+1]·w0 + x[t]·w2
        q4 = jnp.dot(cat_ref[...], w_ref[4], preferred_element_type=jnp.float32)  # [Z0|Z1]
        q5 = jnp.dot(cat_ref[...], w_ref[5], preferred_element_type=jnp.float32)  # [Z2|0 ]
        z = (pltpu.roll(q4, shift=1, axis=0)[:, 0:DW] * ml
             + q4[:, DW:2 * DW]
             + pltpu.roll(q5, shift=mw - 1, axis=0)[:, 0:DW] * mr)
        za = z[:, 0:2 * Cout] + p_ref[12:13, 0:2 * Cout]
        zb = z[:, 2 * Cout:DW] + p_ref[13:14, 0:2 * Cout]
        o_ref[...] = za * _sigmoid(zb)                    # (MW, 2*Cout) f32

    args = [x_pad, w_slab, p_slab]

    def full_spec(shape):
        nd = len(shape)
        return pl.BlockSpec(tuple(shape), lambda i, _nd=nd: (0,) * _nd)

    out_flat = pl.pallas_call(
        kernel,
        out_shape=jax.ShapeDtypeStruct((MW, 2 * Cout), jnp.float32),
        grid=(1,),
        in_specs=[full_spec(a.shape) for a in args],
        out_specs=full_spec((MW, 2 * Cout)),
        scratch_shapes=[pltpu.VMEM((MW, _CPAD), jnp.bfloat16)],
        compiler_params=pltpu.CompilerParams(
            dimension_semantics=("arbitrary",),
            vmem_limit_bytes=32 * 1024 * 1024),
    )(*args)

    # (MW, 2*Cout): cols [0:Cout] even output columns, [Cout:] odd -> interleave
    # along W (pure reshape), then one transpose back to NCHW.
    out = out_flat.reshape(N, H, W, 2, Cout).reshape(N, H, 2 * W, Cout)
    return jnp.transpose(out, (0, 3, 1, 2))


# ---------------------------- pure-JAX reference ----------------------------

def _ref_forward(x, params, *, stride=(1, 2), padding=(0, 1)):
    def conv(inp, w, b):
        y = lax.conv_general_dilated(inp, w, (1, 1), [(0, 0), (1, 1)],
                                     dimension_numbers=("NCHW", "OIHW", "NCHW"))
        return y + b[None, :, None, None]

    def bn_elu(y, g, bta):
        mean = jnp.mean(y, axis=(0, 2, 3))
        var = jnp.mean((y - mean[None, :, None, None]) ** 2, axis=(0, 2, 3))
        scale = g / jnp.sqrt(var + _BN_EPS)
        shift = bta - mean * scale
        return _elu(y * scale[None, :, None, None] + shift[None, :, None, None])

    def deconv(inp, w, b):
        kh, kw = w.shape[2], w.shape[3]
        ph, pw = padding
        y = lax.conv_general_dilated(
            inp, jnp.flip(w, (2, 3)), (1, 1),
            [(kh - 1 - ph, kh - 1 - ph), (kw - 1 - pw, kw - 1 - pw)],
            lhs_dilation=stride, dimension_numbers=("NCHW", "IOHW", "NCHW"))
        return y + b[None, :, None, None]

    o1 = bn_elu(conv(x, params["w1"], params["b1"]), params["g1"], params["be1"])
    cat = jnp.concatenate([x, o1], axis=1)
    o2 = bn_elu(conv(cat, params["w2"], params["b2"]), params["g2"], params["be2"])
    cat = jnp.concatenate([x, o1, o2], axis=1)
    o3 = bn_elu(conv(cat, params["w3"], params["b3"]), params["g3"], params["be3"])
    cat = jnp.concatenate([x, o1, o2, o3], axis=1)
    o4 = bn_elu(conv(cat, params["w4"], params["b4"]), params["g4"], params["be4"])
    cat = jnp.concatenate([x, o1, o2, o3, o4], axis=1)
    d1 = deconv(cat, params["w5a"], params["b5a"])
    d2 = deconv(cat, params["w5b"], params["b5b"])
    return d1 * jax.nn.sigmoid(d2)


# ---------------------------- parameters ----------------------------

def make_params(key, in_channels, out_channels, grate, kernel_size=(1, 4)):
    ks = iter(jax.random.split(key, 32))

    def nrm(shape, s=0.2):
        return s * jax.random.normal(next(ks), shape, jnp.float32)

    p = {}
    cins = [in_channels, in_channels + grate,
            in_channels + 2 * grate, in_channels + 3 * grate]
    for i, c in enumerate(cins, start=1):
        p[f"w{i}"] = nrm((grate, c, 1, 3))          # Conv2d weight (Cout, Cin, 1, 3)
        p[f"b{i}"] = nrm((grate,))
        p[f"g{i}"] = 1.0 + nrm((grate,), 0.1)       # BN gamma
        p[f"be{i}"] = nrm((grate,), 0.1)            # BN beta
    cd = in_channels + 4 * grate
    kh, kw = kernel_size
    p["w5a"] = nrm((cd, out_channels, kh, kw))      # ConvTranspose2d weight (Cin, Cout, kh, kw)
    p["b5a"] = nrm((out_channels,))
    p["w5b"] = nrm((cd, out_channels, kh, kw))
    p["b5b"] = nrm((out_channels,))
    return p


if __name__ == "__main__":
    key = jax.random.PRNGKey(0)
    kp, kx = jax.random.split(key)

    # Small instance of DenseConvTranspose2d(4, 16, (1,4), (0,1), (1,2), grate=8)
    N, Cin, H, W = 2, 4, 4, 16
    grate, Cout = 8, 16
    kernel_size, padding, stride = (1, 4), (0, 1), (1, 2)

    params = make_params(kp, Cin, Cout, grate, kernel_size)
    x = jax.random.normal(kx, (N, Cin, H, W), jnp.float32)

    fwd = jax.jit(lambda xx, pp: dense_conv_transpose2d_forward(
        xx, pp, stride=stride, padding=padding))
    out = jax.block_until_ready(fwd(x, params))

    expected_w = (W - 1) * stride[1] - 2 * padding[1] + kernel_size[1]
    assert out.shape == (N, Cout, H, expected_w), out.shape

    ref = _ref_forward(x, params, stride=stride, padding=padding)
    err = float(jnp.max(jnp.abs(out - ref)))
    scale = float(jnp.max(jnp.abs(ref)))
    # bf16 MXU operands (per perf review) loosen the exact-f32 match slightly.
    assert err < 2e-2 * scale + 5e-2, f"max abs err {err} (ref max {scale})"

    print("KERNEL_OK")
</pallas_src>

<mosaic_0001>
module attributes {stable_mosaic.version = 11 : i64} {
  func.func @kernel(%arg0: i32, %arg1: memref<128x128xbf16, #tpu.memory_space<vmem>>, %arg2: memref<6x128x128xbf16, #tpu.memory_space<vmem>>, %arg3: memref<16x128xf32, #tpu.memory_space<vmem>>, %arg4: memref<128x32xf32, #tpu.memory_space<vmem>>, %arg5: memref<128x128xbf16, #tpu.memory_space<vmem>>) attributes {dimension_semantics = [#tpu.dimension_semantics<arbitrary>], iteration_bounds = array<i64: 1>, scalar_prefetch = 0 : i64, scratch_operands = 1 : i64, tpu.core_type = #tpu.core_type<tc>, window_params = [{pipeline_mode = #tpu.pipeline_mode<synchronous>, transform_indices = @transform_0, window_bounds = array<i64: 128, 128>}, {pipeline_mode = #tpu.pipeline_mode<synchronous>, transform_indices = @transform_1, window_bounds = array<i64: 6, 128, 128>}, {pipeline_mode = #tpu.pipeline_mode<synchronous>, transform_indices = @transform_2, window_bounds = array<i64: 16, 128>}, {pipeline_mode = #tpu.pipeline_mode<synchronous>, transform_indices = @transform_3, window_bounds = array<i64: 128, 32>}]} {
    %c0 = arith.constant 0 : index
    %c0_0 = arith.constant 0 : index
    %0 = vector.load %arg1[%c0, %c0_0] : memref<128x128xbf16, #tpu.memory_space<vmem>>, vector<128x128xbf16>
    %c0_1 = arith.constant 0 : index
    %c0_2 = arith.constant 0 : index
    %1 = vector.load %arg5[%c0_1, %c0_2] : memref<128x128xbf16, #tpu.memory_space<vmem>>, vector<128x128xbf16>
    tpu.vector_store %arg5[%c0_1, %c0_2], %0 {strides = array<i32>} : memref<128x128xbf16, #tpu.memory_space<vmem>>, vector<128x128xbf16>,
    %c0_3 = arith.constant 0 : index
    %c126 = arith.constant 126 : index
    %2 = vector.load %arg1[%c0_3, %c126] : memref<128x128xbf16, #tpu.memory_space<vmem>>, vector<128x1xbf16>
    %3 = arith.extf %2 : vector<128x1xbf16> to vector<128x1xf32>
    %c0_4 = arith.constant 0 : index
    %c127 = arith.constant 127 : index
    %4 = vector.load %arg1[%c0_4, %c127] : memref<128x128xbf16, #tpu.memory_space<vmem>>, vector<128x1xbf16>
    %5 = arith.extf %4 : vector<128x1xbf16> to vector<128x1xf32>
    %c0_5 = arith.constant 0 : index
    %c0_6 = arith.constant 0 : index
    %6 = vector.load %arg5[%c0_5, %c0_6] : memref<128x128xbf16, #tpu.memory_space<vmem>>, vector<128x128xbf16>
    %c0_7 = arith.constant 0 : index
    %c0_8 = arith.constant 0 : index
    %c0_9 = arith.constant 0 : index
    %7 = vector.load %arg2[%c0_7, %c0_8, %c0_9] : memref<6x128x128xbf16, #tpu.memory_space<vmem>>, vector<1x128x128xbf16>
    %8 = vector.shape_cast %7 : vector<1x128x128xbf16> to vector<128x128xbf16>
    %cst = arith.constant dense<0.000000e+00> : vector<128x128xf32>
    %9 = tpu.matmul %6, %8, %cst {dimension_numbers = #tpu.dot_dimension_numbers<[1], [0], [0], [1], [0, 0, 1, 1], [], []>} : vector<128x128xbf16>, vector<128x128xbf16>, vector<128x128xf32> -> vector<128x128xf32>
    %c1_i32 = arith.constant 1 : i32
    %10 = tpu.dynamic_rotate %9 by %c1_i32 dim 0 : vector<128x128xf32>, i32 -> vector<128x128xf32>
    %c127_i32 = arith.constant 127 : i32
    %11 = tpu.dynamic_rotate %9 by %c127_i32 dim 0 : vector<128x128xf32>, i32 -> vector<128x128xf32>
    %12 = vector.extract_strided_slice %10 {offsets = [0, 0], sizes = [128, 8], strides = [1, 1]} : vector<128x128xf32> to vector<128x8xf32>
    %13 = vector.broadcast %3 : vector<128x1xf32> to vector<128x8xf32>
    %14 = arith.mulf %12, %13 : vector<128x8xf32>
    %15 = vector.extract_strided_slice %9 {offsets = [0, 8], sizes = [128, 8], strides = [1, 1]} : vector<128x128xf32> to vector<128x8xf32>
    %16 = arith.addf %14, %15 : vector<128x8xf32>
    %17 = vector.extract_strided_slice %11 {offsets = [0, 16], sizes = [128, 8], strides = [1, 1]} : vector<128x128xf32> to vector<128x8xf32>
    %18 = vector.broadcast %5 : vector<128x1xf32> to vector<128x8xf32>
    %19 = arith.mulf %17, %18 : vector<128x8xf32>
    %20 = arith.addf %16, %19 : vector<128x8xf32>
    %c0_10 = arith.constant 0 : index
    %c0_11 = arith.constant 0 : index
    %21 = vector.load %arg3[%c0_10, %c0_11] : memref<16x128xf32, #tpu.memory_space<vmem>>, vector<1x8xf32>
    %22 = vector.broadcast %21 : vector<1x8xf32> to vector<128x8xf32>
    %23 = arith.addf %20, %22 : vector<128x8xf32>
    %cst_12 = arith.constant dense<0.000000e+00> : vector<8xf32>
    %24 = vector.multi_reduction <add>, %23, %cst_12 [0] : vector<128x8xf32> to vector<8xf32>
    %25 = vector.shape_cast %24 : vector<8xf32> to vector<1x8xf32>
    %cst_13 = arith.constant 1.280000e+02 : f32
    %26 = vector.broadcast %cst_13 : f32 to vector<1x8xf32>
    %27 = arith.divf %25, %26 : vector<1x8xf32>
    %28 = vector.broadcast %27 : vector<1x8xf32> to vector<128x8xf32>
    %29 = arith.subf %23, %28 : vector<128x8xf32>
    %30 = arith.mulf %29, %29 : vector<128x8xf32>
    %cst_14 = arith.constant dense<0.000000e+00> : vector<8xf32>
    %31 = vector.multi_reduction <add>, %30, %cst_14 [0] : vector<128x8xf32> to vector<8xf32>
    %32 = vector.shape_cast %31 : vector<8xf32> to vector<1x8xf32>
    %cst_15 = arith.constant 1.280000e+02 : f32
    %33 = vector.broadcast %cst_15 : f32 to vector<1x8xf32>
    %34 = arith.divf %32, %33 : vector<1x8xf32>
    %c4 = arith.constant 4 : index
    %c0_16 = arith.constant 0 : index
    %35 = vector.load %arg3[%c4, %c0_16] : memref<16x128xf32, #tpu.memory_space<vmem>>, vector<1x8xf32>
    %cst_17 = arith.constant 9.99999974E-6 : f32
    %36 = vector.broadcast %cst_17 : f32 to vector<1x8xf32>
    %37 = arith.addf %34, %36 : vector<1x8xf32>
    %38 = math.rsqrt %37 : vector<1x8xf32>
    %39 = arith.mulf %35, %38 : vector<1x8xf32>
    %40 = vector.broadcast %39 : vector<1x8xf32> to vector<128x8xf32>
    %41 = arith.mulf %29, %40 : vector<128x8xf32>
    %c8 = arith.constant 8 : index
    %c0_18 = arith.constant 0 : index
    %42 = vector.load %arg3[%c8, %c0_18] : memref<16x128xf32, #tpu.memory_space<vmem>>, vector<1x8xf32>
    %43 = vector.broadcast %42 : vector<1x8xf32> to vector<128x8xf32>
    %44 = arith.addf %41, %43 : vector<128x8xf32>
    %cst_19 = arith.constant 0.000000e+00 : f32
    %45 = vector.broadcast %cst_19 : f32 to vector<128x8xf32>
    %46 = arith.cmpf ogt, %44, %45 : vector<128x8xf32>
    %cst_20 = arith.constant 0.000000e+00 : f32
    %47 = vector.broadcast %cst_20 : f32 to vector<128x8xf32>
    %48 = arith.minimumf %44, %47 : vector<128x8xf32>
    %49 = math.exp %48 : vector<128x8xf32>
    %cst_21 = arith.constant 1.000000e+00 : f32
    %50 = vector.broadcast %cst_21 : f32 to vector<128x8xf32>
    %51 = arith.subf %49, %50 : vector<128x8xf32>
    %52 = arith.select %46, %44, %51 : vector<128x8xi1>, vector<128x8xf32>
    %53 = arith.truncf %52 : vector<128x8xf32> to vector<128x8xbf16>
    %c0_22 = arith.constant 0 : index
    %c4_23 = arith.constant 4 : index
    %54 = vector.load %arg5[%c0_22, %c4_23] : memref<128x128xbf16, #tpu.memory_space<vmem>>, vector<128x8xbf16>
    tpu.vector_store %arg5[%c0_22, %c4_23], %53 {strides = array<i32>} : memref<128x128xbf16, #tpu.memory_space<vmem>>, vector<128x8xbf16>,
    %c0_24 = arith.constant 0 : index
    %c0_25 = arith.constant 0 : index
    %55 = vector.load %arg5[%c0_24, %c0_25] : memref<128x128xbf16, #tpu.memory_space<vmem>>, vector<128x128xbf16>
    %c1 = arith.constant 1 : index
    %c0_26 = arith.constant 0 : index
    %c0_27 = arith.constant 0 : index
    %56 = vector.load %arg2[%c1, %c0_26, %c0_27] : memref<6x128x128xbf16, #tpu.memory_space<vmem>>, vector<1x128x128xbf16>
    %57 = vector.shape_cast %56 : vector<1x128x128xbf16> to vector<128x128xbf16>
    %cst_28 = arith.constant dense<0.000000e+00> : vector<128x128xf32>
    %58 = tpu.matmul %55, %57, %cst_28 {dimension_numbers = #tpu.dot_dimension_numbers<[1], [0], [0], [1], [0, 0, 1, 1], [], []>} : vector<128x128xbf16>, vector<128x128xbf16>, vector<128x128xf32> -> vector<128x128xf32>
    %c1_i32_29 = arith.constant 1 : i32
    %59 = tpu.dynamic_rotate %58 by %c1_i32_29 dim 0 : vector<128x128xf32>, i32 -> vector<128x128xf32>
    %c127_i32_30 = arith.constant 127 : i32
    %60 = tpu.dynamic_rotate %58 by %c127_i32_30 dim 0 : vector<128x128xf32>, i32 -> vector<128x128xf32>
    %61 = vector.extract_strided_slice %59 {offsets = [0, 0], sizes = [128, 8], strides = [1, 1]} : vector<128x128xf32> to vector<128x8xf32>
    %62 = vector.broadcast %3 : vector<128x1xf32> to vector<128x8xf32>
    %63 = arith.mulf %61, %62 : vector<128x8xf32>
    %64 = vector.extract_strided_slice %58 {offsets = [0, 8], sizes = [128, 8], strides = [1, 1]} : vector<128x128xf32> to vector<128x8xf32>
    %65 = arith.addf %63, %64 : vector<128x8xf32>
    %66 = vector.extract_strided_slice %60 {offsets = [0, 16], sizes = [128, 8], strides = [1, 1]} : vector<128x128xf32> to vector<128x8xf32>
    %67 = vector.broadcast %5 : vector<128x1xf32> to vector<128x8xf32>
    %68 = arith.mulf %66, %67 : vector<128x8xf32>
    %69 = arith.addf %65, %68 : vector<128x8xf32>
    %c1_31 = arith.constant 1 : index
    %c0_32 = arith.constant 0 : index
    %70 = vector.load %arg3[%c1_31, %c0_32] : memref<16x128xf32, #tpu.memory_space<vmem>>, vector<1x8xf32>
    %71 = vector.broadcast %70 : vector<1x8xf32> to vector<128x8xf32>
    %72 = arith.addf %69, %71 : vector<128x8xf32>
    %cst_33 = arith.constant dense<0.000000e+00> : vector<8xf32>
    %73 = vector.multi_reduction <add>, %72, %cst_33 [0] : vector<128x8xf32> to vector<8xf32>
    %74 = vector.shape_cast %73 : vector<8xf32> to vector<1x8xf32>
    %cst_34 = arith.constant 1.280000e+02 : f32
    %75 = vector.broadcast %cst_34 : f32 to vector<1x8xf32>
    %76 = arith.divf %74, %75 : vector<1x8xf32>
    %77 = vector.broadcast %76 : vector<1x8xf32> to vector<128x8xf32>
    %78 = arith.subf %72, %77 : vector<128x8xf32>
    %79 = arith.mulf %78, %78 : vector<128x8xf32>
    %cst_35 = arith.constant dense<0.000000e+00> : vector<8xf32>
    %80 = vector.multi_reduction <add>, %79, %cst_35 [0] : vector<128x8xf32> to vector<8xf32>
    %81 = vector.shape_cast %80 : vector<8xf32> to vector<1x8xf32>
    %cst_36 = arith.constant 1.280000e+02 : f32
    %82 = vector.broadcast %cst_36 : f32 to vector<1x8xf32>
    %83 = arith.divf %81, %82 : vector<1x8xf32>
    %c5 = arith.constant 5 : index
    %c0_37 = arith.constant 0 : index
    %84 = vector.load %arg3[%c5, %c0_37] : memref<16x128xf32, #tpu.memory_space<vmem>>, vector<1x8xf32>
    %cst_38 = arith.constant 9.99999974E-6 : f32
    %85 = vector.broadcast %cst_38 : f32 to vector<1x8xf32>
    %86 = arith.addf %83, %85 : vector<1x8xf32>
    %87 = math.rsqrt %86 : vector<1x8xf32>
    %88 = arith.mulf %84, %87 : vector<1x8xf32>
    %89 = vector.broadcast %88 : vector<1x8xf32> to vector<128x8xf32>
    %90 = arith.mulf %78, %89 : vector<128x8xf32>
    %c9 = arith.constant 9 : index
    %c0_39 = arith.constant 0 : index
    %91 = vector.load %arg3[%c9, %c0_39] : memref<16x128xf32, #tpu.memory_space<vmem>>, vector<1x8xf32>
    %92 = vector.broadcast %91 : vector<1x8xf32> to vector<128x8xf32>
    %93 = arith.addf %90, %92 : vector<128x8xf32>
    %cst_40 = arith.constant 0.000000e+00 : f32
    %94 = vector.broadcast %cst_40 : f32 to vector<128x8xf32>
    %95 = arith.cmpf ogt, %93, %94 : vector<128x8xf32>
    %cst_41 = arith.constant 0.000000e+00 : f32
    %96 = vector.broadcast %cst_41 : f32 to vector<128x8xf32>
    %97 = arith.minimumf %93, %96 : vector<128x8xf32>
    %98 = math.exp %97 : vector<128x8xf32>
    %cst_42 = arith.constant 1.000000e+00 : f32
    %99 = vector.broadcast %cst_42 : f32 to vector<128x8xf32>
    %100 = arith.subf %98, %99 : vector<128x8xf32>
    %101 = arith.select %95, %93, %100 : vector<128x8xi1>, vector<128x8xf32>
    %102 = arith.truncf %101 : vector<128x8xf32> to vector<128x8xbf16>
    %c0_43 = arith.constant 0 : index
    %c12 = arith.constant 12 : index
    %103 = vector.load %arg5[%c0_43, %c12] : memref<128x128xbf16, #tpu.memory_space<vmem>>, vector<128x8xbf16>
    tpu.vector_store %arg5[%c0_43, %c12], %102 {strides = array<i32>} : memref<128x128xbf16, #tpu.memory_space<vmem>>, vector<128x8xbf16>,
    %c0_44 = arith.constant 0 : index
    %c0_45 = arith.constant 0 : index
    %104 = vector.load %arg5[%c0_44, %c0_45] : memref<128x128xbf16, #tpu.memory_space<vmem>>, vector<128x128xbf16>
    %c2 = arith.constant 2 : index
    %c0_46 = arith.constant 0 : index
    %c0_47 = arith.constant 0 : index
    %105 = vector.load %arg2[%c2, %c0_46, %c0_47] : memref<6x128x128xbf16, #tpu.memory_space<vmem>>, vector<1x128x128xbf16>
    %106 = vector.shape_cast %105 : vector<1x128x128xbf16> to vector<128x128xbf16>
    %cst_48 = arith.constant dense<0.000000e+00> : vector<128x128xf32>
    %107 = tpu.matmul %104, %106, %cst_48 {dimension_numbers = #tpu.dot_dimension_numbers<[1], [0], [0], [1], [0, 0, 1, 1], [], []>} : vector<128x128xbf16>, vector<128x128xbf16>, vector<128x128xf32> -> vector<128x128xf32>
    %c1_i32_49 = arith.constant 1 : i32
    %108 = tpu.dynamic_rotate %107 by %c1_i32_49 dim 0 : vector<128x128xf32>, i32 -> vector<128x128xf32>
    %c127_i32_50 = arith.constant 127 : i32
    %109 = tpu.dynamic_rotate %107 by %c127_i32_50 dim 0 : vector<128x128xf32>, i32 -> vector<128x128xf32>
    %110 = vector.extract_strided_slice %108 {offsets = [0, 0], sizes = [128, 8], strides = [1, 1]} : vector<128x128xf32> to vector<128x8xf32>
    %111 = vector.broadcast %3 : vector<128x1xf32> to vector<128x8xf32>
    %112 = arith.mulf %110, %111 : vector<128x8xf32>
    %113 = vector.extract_strided_slice %107 {offsets = [0, 8], sizes = [128, 8], strides = [1, 1]} : vector<128x128xf32> to vector<128x8xf32>
    %114 = arith.addf %112, %113 : vector<128x8xf32>
    %115 = vector.extract_strided_slice %109 {offsets = [0, 16], sizes = [128, 8], strides = [1, 1]} : vector<128x128xf32> to vector<128x8xf32>
    %116 = vector.broadcast %5 : vector<128x1xf32> to vector<128x8xf32>
    %117 = arith.mulf %115, %116 : vector<128x8xf32>
    %118 = arith.addf %114, %117 : vector<128x8xf32>
    %c2_51 = arith.constant 2 : index
    %c0_52 = arith.constant 0 : index
    %119 = vector.load %arg3[%c2_51, %c0_52] : memref<16x128xf32, #tpu.memory_space<vmem>>, vector<1x8xf32>
    %120 = vector.broadcast %119 : vector<1x8xf32> to vector<128x8xf32>
    %121 = arith.addf %118, %120 : vector<128x8xf32>
    %cst_53 = arith.constant dense<0.000000e+00> : vector<8xf32>
    %122 = vector.multi_reduction <add>, %121, %cst_53 [0] : vector<128x8xf32> to vector<8xf32>
    %123 = vector.shape_cast %122 : vector<8xf32> to vector<1x8xf32>
    %cst_54 = arith.constant 1.280000e+02 : f32
    %124 = vector.broadcast %cst_54 : f32 to vector<1x8xf32>
    %125 = arith.divf %123, %124 : vector<1x8xf32>
    %126 = vector.broadcast %125 : vector<1x8xf32> to vector<128x8xf32>
    %127 = arith.subf %121, %126 : vector<128x8xf32>
    %128 = arith.mulf %127, %127 : vector<128x8xf32>
    %cst_55 = arith.constant dense<0.000000e+00> : vector<8xf32>
    %129 = vector.multi_reduction <add>, %128, %cst_55 [0] : vector<128x8xf32> to vector<8xf32>
    %130 = vector.shape_cast %129 : vector<8xf32> to vector<1x8xf32>
    %cst_56 = arith.constant 1.280000e+02 : f32
    %131 = vector.broadcast %cst_56 : f32 to vector<1x8xf32>
    %132 = arith.divf %130, %131 : vector<1x8xf32>
    %c6 = arith.constant 6 : index
    %c0_57 = arith.constant 0 : index
    %133 = vector.load %arg3[%c6, %c0_57] : memref<16x128xf32, #tpu.memory_space<vmem>>, vector<1x8xf32>
    %cst_58 = arith.constant 9.99999974E-6 : f32
    %134 = vector.broadcast %cst_58 : f32 to vector<1x8xf32>
    %135 = arith.addf %132, %134 : vector<1x8xf32>
    %136 = math.rsqrt %135 : vector<1x8xf32>
    %137 = arith.mulf %133, %136 : vector<1x8xf32>
    %138 = vector.broadcast %137 : vector<1x8xf32> to vector<128x8xf32>
    %139 = arith.mulf %127, %138 : vector<128x8xf32>
    %c10 = arith.constant 10 : index
    %c0_59 = arith.constant 0 : index
    %140 = vector.load %arg3[%c10, %c0_59] : memref<16x128xf32, #tpu.memory_space<vmem>>, vector<1x8xf32>
    %141 = vector.broadcast %140 : vector<1x8xf32> to vector<128x8xf32>
    %142 = arith.addf %139, %141 : vector<128x8xf32>
    %cst_60 = arith.constant 0.000000e+00 : f32
    %143 = vector.broadcast %cst_60 : f32 to vector<128x8xf32>
    %144 = arith.cmpf ogt, %142, %143 : vector<128x8xf32>
    %cst_61 = arith.constant 0.000000e+00 : f32
    %145 = vector.broadcast %cst_61 : f32 to vector<128x8xf32>
    %146 = arith.minimumf %142, %145 : vector<128x8xf32>
    %147 = math.exp %146 : vector<128x8xf32>
    %cst_62 = arith.constant 1.000000e+00 : f32
    %148 = vector.broadcast %cst_62 : f32 to vector<128x8xf32>
    %149 = arith.subf %147, %148 : vector<128x8xf32>
    %150 = arith.select %144, %142, %149 : vector<128x8xi1>, vector<128x8xf32>
    %151 = arith.truncf %150 : vector<128x8xf32> to vector<128x8xbf16>
    %c0_63 = arith.constant 0 : index
    %c20 = arith.constant 20 : index
    %152 = vector.load %arg5[%c0_63, %c20] : memref<128x128xbf16, #tpu.memory_space<vmem>>, vector<128x8xbf16>
    tpu.vector_store %arg5[%c0_63, %c20], %151 {strides = array<i32>} : memref<128x128xbf16, #tpu.memory_space<vmem>>, vector<128x8xbf16>,
    %c0_64 = arith.constant 0 : index
    %c0_65 = arith.constant 0 : index
    %153 = vector.load %arg5[%c0_64, %c0_65] : memref<128x128xbf16, #tpu.memory_space<vmem>>, vector<128x128xbf16>
    %c3 = arith.constant 3 : index
    %c0_66 = arith.constant 0 : index
    %c0_67 = arith.constant 0 : index
    %154 = vector.load %arg2[%c3, %c0_66, %c0_67] : memref<6x128x128xbf16, #tpu.memory_space<vmem>>, vector<1x128x128xbf16>
    %155 = vector.shape_cast %154 : vector<1x128x128xbf16> to vector<128x128xbf16>
    %cst_68 = arith.constant dense<0.000000e+00> : vector<128x128xf32>
    %156 = tpu.matmul %153, %155, %cst_68 {dimension_numbers = #tpu.dot_dimension_numbers<[1], [0], [0], [1], [0, 0, 1, 1], [], []>} : vector<128x128xbf16>, vector<128x128xbf16>, vector<128x128xf32> -> vector<128x128xf32>
    %c1_i32_69 = arith.constant 1 : i32
    %157 = tpu.dynamic_rotate %156 by %c1_i32_69 dim 0 : vector<128x128xf32>, i32 -> vector<128x128xf32>
    %c127_i32_70 = arith.constant 127 : i32
    %158 = tpu.dynamic_rotate %156 by %c127_i32_70 dim 0 : vector<128x128xf32>, i32 -> vector<128x128xf32>
    %159 = vector.extract_strided_slice %157 {offsets = [0, 0], sizes = [128, 8], strides = [1, 1]} : vector<128x128xf32> to vector<128x8xf32>
    %160 = vector.broadcast %3 : vector<128x1xf32> to vector<128x8xf32>
    %161 = arith.mulf %159, %160 : vector<128x8xf32>
    %162 = vector.extract_strided_slice %156 {offsets = [0, 8], sizes = [128, 8], strides = [1, 1]} : vector<128x128xf32> to vector<128x8xf32>
    %163 = arith.addf %161, %162 : vector<128x8xf32>
    %164 = vector.extract_strided_slice %158 {offsets = [0, 16], sizes = [128, 8], strides = [1, 1]} : vector<128x128xf32> to vector<128x8xf32>
    %165 = vector.broadcast %5 : vector<128x1xf32> to vector<128x8xf32>
    %166 = arith.mulf %164, %165 : vector<128x8xf32>
    %167 = arith.addf %163, %166 : vector<128x8xf32>
    %c3_71 = arith.constant 3 : index
    %c0_72 = arith.constant 0 : index
    %168 = vector.load %arg3[%c3_71, %c0_72] : memref<16x128xf32, #tpu.memory_space<vmem>>, vector<1x8xf32>
    %169 = vector.broadcast %168 : vector<1x8xf32> to vector<128x8xf32>
    %170 = arith.addf %167, %169 : vector<128x8xf32>
    %cst_73 = arith.constant dense<0.000000e+00> : vector<8xf32>
    %171 = vector.multi_reduction <add>, %170, %cst_73 [0] : vector<128x8xf32> to vector<8xf32>
    %172 = vector.shape_cast %171 : vector<8xf32> to vector<1x8xf32>
    %cst_74 = arith.constant 1.280000e+02 : f32
    %173 = vector.broadcast %cst_74 : f32 to vector<1x8xf32>
    %174 = arith.divf %172, %173 : vector<1x8xf32>
    %175 = vector.broadcast %174 : vector<1x8xf32> to vector<128x8xf32>
    %176 = arith.subf %170, %175 : vector<128x8xf32>
    %177 = arith.mulf %176, %176 : vector<128x8xf32>
    %cst_75 = arith.constant dense<0.000000e+00> : vector<8xf32>
    %178 = vector.multi_reduction <add>, %177, %cst_75 [0] : vector<128x8xf32> to vector<8xf32>
    %179 = vector.shape_cast %178 : vector<8xf32> to vector<1x8xf32>
    %cst_76 = arith.constant 1.280000e+02 : f32
    %180 = vector.broadcast %cst_76 : f32 to vector<1x8xf32>
    %181 = arith.divf %179, %180 : vector<1x8xf32>
    %c7 = arith.constant 7 : index
    %c0_77 = arith.constant 0 : index
    %182 = vector.load %arg3[%c7, %c0_77] : memref<16x128xf32, #tpu.memory_space<vmem>>, vector<1x8xf32>
    %cst_78 = arith.constant 9.99999974E-6 : f32
    %183 = vector.broadcast %cst_78 : f32 to vector<1x8xf32>
    %184 = arith.addf %181, %183 : vector<1x8xf32>
    %185 = math.rsqrt %184 : vector<1x8xf32>
    %186 = arith.mulf %182, %185 : vector<1x8xf32>
    %187 = vector.broadcast %186 : vector<1x8xf32> to vector<128x8xf32>
    %188 = arith.mulf %176, %187 : vector<128x8xf32>
    %c11 = arith.constant 11 : index
    %c0_79 = arith.constant 0 : index
    %189 = vector.load %arg3[%c11, %c0_79] : memref<16x128xf32, #tpu.memory_space<vmem>>, vector<1x8xf32>
    %190 = vector.broadcast %189 : vector<1x8xf32> to vector<128x8xf32>
    %191 = arith.addf %188, %190 : vector<128x8xf32>
    %cst_80 = arith.constant 0.000000e+00 : f32
    %192 = vector.broadcast %cst_80 : f32 to vector<128x8xf32>
    %193 = arith.cmpf ogt, %191, %192 : vector<128x8xf32>
    %cst_81 = arith.constant 0.000000e+00 : f32
    %194 = vector.broadcast %cst_81 : f32 to vector<128x8xf32>
    %195 = arith.minimumf %191, %194 : vector<128x8xf32>
    %196 = math.exp %195 : vector<128x8xf32>
    %cst_82 = arith.constant 1.000000e+00 : f32
    %197 = vector.broadcast %cst_82 : f32 to vector<128x8xf32>
    %198 = arith.subf %196, %197 : vector<128x8xf32>
    %199 = arith.select %193, %191, %198 : vector<128x8xi1>, vector<128x8xf32>
    %200 = arith.truncf %199 : vector<128x8xf32> to vector<128x8xbf16>
    %c0_83 = arith.constant 0 : index
    %c28 = arith.constant 28 : index
    %201 = vector.load %arg5[%c0_83, %c28] : memref<128x128xbf16, #tpu.memory_space<vmem>>, vector<128x8xbf16>
    tpu.vector_store %arg5[%c0_83, %c28], %200 {strides = array<i32>} : memref<128x128xbf16, #tpu.memory_space<vmem>>, vector<128x8xbf16>,
    %c0_84 = arith.constant 0 : index
    %c0_85 = arith.constant 0 : index
    %202 = vector.load %arg5[%c0_84, %c0_85] : memref<128x128xbf16, #tpu.memory_space<vmem>>, vector<128x128xbf16>
    %c4_86 = arith.constant 4 : index
    %c0_87 = arith.constant 0 : index
    %c0_88 = arith.constant 0 : index
    %203 = vector.load %arg2[%c4_86, %c0_87, %c0_88] : memref<6x128x128xbf16, #tpu.memory_space<vmem>>, vector<1x128x128xbf16>
    %204 = vector.shape_cast %203 : vector<1x128x128xbf16> to vector<128x128xbf16>
    %cst_89 = arith.constant dense<0.000000e+00> : vector<128x128xf32>
    %205 = tpu.matmul %202, %204, %cst_89 {dimension_numbers = #tpu.dot_dimension_numbers<[1], [0], [0], [1], [0, 0, 1, 1], [], []>} : vector<128x128xbf16>, vector<128x128xbf16>, vector<128x128xf32> -> vector<128x128xf32>
    %c0_90 = arith.constant 0 : index
    %c0_91 = arith.constant 0 : index
    %206 = vector.load %arg5[%c0_90, %c0_91] : memref<128x128xbf16, #tpu.memory_space<vmem>>, vector<128x128xbf16>
    %c5_92 = arith.constant 5 : index
    %c0_93 = arith.constant 0 : index
    %c0_94 = arith.constant 0 : index
    %207 = vector.load %arg2[%c5_92, %c0_93, %c0_94] : memref<6x128x128xbf16, #tpu.memory_space<vmem>>, vector<1x128x128xbf16>
    %208 = vector.shape_cast %207 : vector<1x128x128xbf16> to vector<128x128xbf16>
    %cst_95 = arith.constant dense<0.000000e+00> : vector<128x128xf32>
    %209 = tpu.matmul %206, %208, %cst_95 {dimension_numbers = #tpu.dot_dimension_numbers<[1], [0], [0], [1], [0, 0, 1, 1], [], []>} : vector<128x128xbf16>, vector<128x128xbf16>, vector<128x128xf32> -> vector<128x128xf32>
    %c1_i32_96 = arith.constant 1 : i32
    %210 = tpu.dynamic_rotate %205 by %c1_i32_96 dim 0 : vector<128x128xf32>, i32 -> vector<128x128xf32>
    %211 = vector.extract_strided_slice %210 {offsets = [0, 0], sizes = [128, 64], strides = [1, 1]} : vector<128x128xf32> to vector<128x64xf32>
    %212 = vector.broadcast %3 : vector<128x1xf32> to vector<128x64xf32>
    %213 = arith.mulf %211, %212 : vector<128x64xf32>
    %214 = vector.extract_strided_slice %205 {offsets = [0, 64], sizes = [128, 64], strides = [1, 1]} : vector<128x128xf32> to vector<128x64xf32>
    %215 = arith.addf %213, %214 : vector<128x64xf32>
    %c127_i32_97 = arith.constant 127 : i32
    %216 = tpu.dynamic_rotate %209 by %c127_i32_97 dim 0 : vector<128x128xf32>, i32 -> vector<128x128xf32>
    %217 = vector.extract_strided_slice %216 {offsets = [0, 0], sizes = [128, 64], strides = [1, 1]} : vector<128x128xf32> to vector<128x64xf32>
    %218 = vector.broadcast %5 : vector<128x1xf32> to vector<128x64xf32>
    %219 = arith.mulf %217, %218 : vector<128x64xf32>
    %220 = arith.addf %215, %219 : vector<128x64xf32>
    %221 = vector.extract_strided_slice %220 {offsets = [0, 0], sizes = [128, 32], strides = [1, 1]} : vector<128x64xf32> to vector<128x32xf32>
    %c12_98 = arith.constant 12 : index
    %c0_99 = arith.constant 0 : index
    %222 = vector.load %arg3[%c12_98, %c0_99] : memref<16x128xf32, #tpu.memory_space<vmem>>, vector<1x32xf32>
    %223 = vector.broadcast %222 : vector<1x32xf32> to vector<128x32xf32>
    %224 = arith.addf %221, %223 : vector<128x32xf32>
    %225 = vector.extract_strided_slice %220 {offsets = [0, 32], sizes = [128, 32], strides = [1, 1]} : vector<128x64xf32> to vector<128x32xf32>
    %c13 = arith.constant 13 : index
    %c0_100 = arith.constant 0 : index
    %226 = vector.load %arg3[%c13, %c0_100] : memref<16x128xf32, #tpu.memory_space<vmem>>, vector<1x32xf32>
    %227 = vector.broadcast %226 : vector<1x32xf32> to vector<128x32xf32>
    %228 = arith.addf %225, %227 : vector<128x32xf32>
    %229 = math.absf %228 : vector<128x32xf32>
    %cst_101 = arith.constant 0.000000e+00 : f32
    %230 = vector.broadcast %cst_101 : f32 to vector<128x32xf32>
    %231 = arith.subf %230, %229 : vector<128x32xf32>
    %232 = math.exp %231 : vector<128x32xf32>
    %cst_102 = arith.constant 1.000000e+00 : f32
    %233 = vector.broadcast %cst_102 : f32 to vector<128x32xf32>
    %234 = arith.addf %233, %232 : vector<128x32xf32>
    %235 = tpu.reciprocal %234 {approx = true} : vector<128x32xf32> -> vector<128x32xf32>
    %cst_103 = arith.constant 0.000000e+00 : f32
    %236 = vector.broadcast %cst_103 : f32 to vector<128x32xf32>
    %237 = arith.cmpf oge, %228, %236 : vector<128x32xf32>
    %238 = arith.mulf %232, %235 : vector<128x32xf32>
    %239 = arith.select %237, %235, %238 : vector<128x32xi1>, vector<128x32xf32>
    %240 = arith.mulf %224, %239 : vector<128x32xf32>
    %c0_104 = arith.constant 0 : index
    %c0_105 = arith.constant 0 : index
    %241 = vector.load %arg4[%c0_104, %c0_105] : memref<128x32xf32, #tpu.memory_space<vmem>>, vector<128x32xf32>
    tpu.vector_store %arg4[%c0_104, %c0_105], %240 {strides = array<i32>} : memref<128x32xf32, #tpu.memory_space<vmem>>, vector<128x32xf32>,
    return
  }
  func.func @transform_0(%arg0: i32) -> (i32, i32) {
    %c0_i32 = arith.constant 0 : i32
    %c0_i32_0 = arith.constant 0 : i32
    %c0_i32_1 = arith.constant 0 : i32
    return %c0_i32, %c0_i32_0 : i32, i32
  }
  func.func @transform_1(%arg0: i32) -> (i32, i32, i32) {
    %c0_i32 = arith.constant 0 : i32
    %c0_i32_0 = arith.constant 0 : i32
    %c0_i32_1 = arith.constant 0 : i32
    %c0_i32_2 = arith.constant 0 : i32
    return %c0_i32, %c0_i32_0, %c0_i32_1 : i32, i32, i32
  }
  func.func @transform_2(%arg0: i32) -> (i32, i32) {
    %c0_i32 = arith.constant 0 : i32
    %c0_i32_0 = arith.constant 0 : i32
    %c0_i32_1 = arith.constant 0 : i32
    return %c0_i32, %c0_i32_0 : i32, i32
  }
  func.func @transform_3(%arg0: i32) -> (i32, i32) {
    %c0_i32 = arith.constant 0 : i32
    %c0_i32_0 = arith.constant 0 : i32
    %c0_i32_1 = arith.constant 0 : i32
    return %c0_i32, %c0_i32_0 : i32, i32
  }
}

</mosaic_0001>

<llo_original>
// kernel: tile.13
$region0: #{tile.13}
  #allocation0 [shape = 's32[1]{0}', space=sflag, size = 0x4, scoped, tag = 'scoped memory for tile.13']
  %s0 = inlined_call_operand.vmem [shape: f32[16], index: 0, kind: input, shape index: {}]
  %s1 = inlined_call_operand.vmem [shape: f32[2,16], index: 1, kind: output, shape index: {}]
  // Predicated region
  $region2: #{tile.13} parent=0 // pred_check
    _
  $region3: #{tile.13} parent=0 // pred_check_branch
    %3 = sbr.rel (0) target = $region5
  $region4: #{tile.13} parent=0 // pred_region
    _
  $region5: #{tile.13} parent=0 // pred_fallthru
    _
  %v4 = vld [vmem:[%s0] ss:$0 sm:$0xff]
  %5 = vst [vmem:[%s1] sm:$0x3] %v4

// kernel: _lambda_.1
$region0: #{_lambda_.1}
  #allocation0 [shape = 'u32[]', space=smem, size = 0x4, offset = 0x4, fixed_abs, tag = 'smem constant byte address 0x4 - core index']
  #allocation1 [shape = 'u32[144,128]{1,0:T(1,128)}', space=vmem, size = 0x12000, scoped, tag = 'internal scratch']
  #allocation2 [shape = 'bf16[128,128]{1,0:T(16,128)(2,1)}', space=vmem, size = 0x8000, scoped, tag = 'scratch operand']
  %s0 = inlined_call_operand.vmem [shape: bf16[128,128], index: 0, kind: input, shape index: {}]
  %s1 = inlined_call_operand.vmem [shape: bf16[6,128,128], index: 1, kind: input, shape index: {}]
  %s2 = inlined_call_operand.vmem [shape: f32[16,128], index: 2, kind: input, shape index: {}]
  %s3 = inlined_call_operand.vmem [shape: f32[128,32], index: 3, kind: output, shape index: {}]
  %s4 = sld [smem:[#allocation0]]
  $region22: #{_lambda_.1} parent=0
    _
  %s6 = ssub.s32 1, %s4
  %s7 = scalar_select 0, %s6, %s4
  // Predicated region
  $region2: #{_lambda_.1} parent=0 // pred_check
    _
  $region3: #{_lambda_.1} parent=0 // pred_check_branch
    %9 = sbr.rel (0) target = $region5
  $region4: #{_lambda_.1} parent=0 // pred_region
    _
  $region5: #{_lambda_.1} parent=0 // pred_fallthru
    _
  // Predicated region
  $region6: #{_lambda_.1} parent=0 // pred_check
    _
  $region7: #{_lambda_.1} parent=0 // pred_check_branch
    %11 = sbr.rel (0) target = $region9
  $region8: #{_lambda_.1} parent=0 // pred_region
    _
  $region9: #{_lambda_.1} parent=0 // pred_fallthru
    _
  // Predicated region
  $region10: #{_lambda_.1} parent=0 // pred_check
    _
  $region11: #{_lambda_.1} parent=0 // pred_check_branch
    %13 = sbr.rel (0) target = $region13
  $region12: #{_lambda_.1} parent=0 // pred_region
    _
  $region13: #{_lambda_.1} parent=0 // pred_fallthru
    _
  %v15 = vld [vmem:[%s0] sm:$0xf]
  %v16 = vld [vmem:[%s0 + $0x4] sm:$0xf]
  %v17 = vld [vmem:[%s0 + $0x8] sm:$0xf]
  %v18 = vld [vmem:[%s0 + $0xc] sm:$0xf]
  %v19 = vld [vmem:[%s0 + $0x10] sm:$0xf]
  %v20 = vld [vmem:[%s0 + $0x14] sm:$0xf]
  %v21 = vld [vmem:[%s0 + $0x18] sm:$0xf]
  %v22 = vld [vmem:[%s0 + $0x1c] sm:$0xf]
  %v23 = vld [vmem:[%s0 + $0x20] sm:$0xf]
  %v24 = vld [vmem:[%s0 + $0x24] sm:$0xf]
  %v25 = vld [vmem:[%s0 + $0x28] sm:$0xf]
  %v26 = vld [vmem:[%s0 + $0x2c] sm:$0xf]
  %v27 = vld [vmem:[%s0 + $0x30] sm:$0xf]
  %v28 = vld [vmem:[%s0 + $0x34] sm:$0xf]
  %v29 = vld [vmem:[%s0 + $0x38] sm:$0xf]
  %v30 = vld [vmem:[%s0 + $0x3c] sm:$0xf]
  %v47 = vunpack.c.l.b16 %v15
  %v48 = vunpack.c.l.b16 %v16
  %v49 = vunpack.c.l.b16 %v17
  %v50 = vunpack.c.l.b16 %v18
  %v51 = vunpack.c.l.b16 %v19
  %v52 = vunpack.c.l.b16 %v20
  %v53 = vunpack.c.l.b16 %v21
  %v54 = vunpack.c.l.b16 %v22
  %v55 = vunpack.c.l.b16 %v23
  %v56 = vunpack.c.l.b16 %v24
  %v57 = vunpack.c.l.b16 %v25
  %v58 = vunpack.c.l.b16 %v26
  %v59 = vunpack.c.l.b16 %v27
  %v60 = vunpack.c.l.b16 %v28
  %v61 = vunpack.c.l.b16 %v29
  %v62 = vunpack.c.l.b16 %v30
  %v63 = vpack.c.b16 %v48, %v47
  %v64 = vpack.c.b16 %v50, %v49
  %v65 = vpack.c.b16 %v52, %v51
  %v66 = vpack.c.b16 %v54, %v53
  %v67 = vpack.c.b16 %v56, %v55
  %v68 = vpack.c.b16 %v58, %v57
  %v69 = vpack.c.b16 %v60, %v59
  %v70 = vpack.c.b16 %v62, %v61
  %79 = vst [vmem:[#allocation2] sm:$0xff] %v63
  %80 = vst [vmem:[#allocation2 + $0x8] sm:$0xff] %v64
  %81 = vst [vmem:[#allocation2 + $0x10] sm:$0xff] %v65
  %82 = vst [vmem:[#allocation2 + $0x18] sm:$0xff] %v66
  %83 = vst [vmem:[#allocation2 + $0x20] sm:$0xff] %v67
  %84 = vst [vmem:[#allocation2 + $0x28] sm:$0xff] %v68
  %85 = vst [vmem:[#allocation2 + $0x30] sm:$0xff] %v69
  %86 = vst [vmem:[#allocation2 + $0x38] sm:$0xff] %v70
  %v87 = vld [vmem:[%s0] sm:$0xf]
  %v88 = vld [vmem:[%s0 + $0x4] sm:$0xf]
  %v89 = vld [vmem:[%s0 + $0x8] sm:$0xf]
  %v90 = vld [vmem:[%s0 + $0xc] sm:$0xf]
  %v91 = vld [vmem:[%s0 + $0x10] sm:$0xf]
  %v92 = vld [vmem:[%s0 + $0x14] sm:$0xf]
  %v93 = vld [vmem:[%s0 + $0x18] sm:$0xf]
  %v94 = vld [vmem:[%s0 + $0x1c] sm:$0xf]
  %v95 = vld [vmem:[%s0 + $0x20] sm:$0xf]
  %v96 = vld [vmem:[%s0 + $0x24] sm:$0xf]
  %v97 = vld [vmem:[%s0 + $0x28] sm:$0xf]
  %v98 = vld [vmem:[%s0 + $0x2c] sm:$0xf]
  %v99 = vld [vmem:[%s0 + $0x30] sm:$0xf]
  %v100 = vld [vmem:[%s0 + $0x34] sm:$0xf]
  %v101 = vld [vmem:[%s0 + $0x38] sm:$0xf]
  %v102 = vld [vmem:[%s0 + $0x3c] sm:$0xf]
  %v103 = vunpack.c.l.bf16 %v87
  %v104 = vunpack.c.l.bf16 %v88
  %v105 = vunpack.c.l.bf16 %v89
  %v106 = vunpack.c.l.bf16 %v90
  %v107 = vunpack.c.l.bf16 %v91
  %v108 = vunpack.c.l.bf16 %v92
  %v109 = vunpack.c.l.bf16 %v93
  %v110 = vunpack.c.l.bf16 %v94
  %v111 = vunpack.c.l.bf16 %v95
  %v112 = vunpack.c.l.bf16 %v96
  %v113 = vunpack.c.l.bf16 %v97
  %v114 = vunpack.c.l.bf16 %v98
  %v115 = vunpack.c.l.bf16 %v99
  %v116 = vunpack.c.l.bf16 %v100
  %v117 = vunpack.c.l.bf16 %v101
  %v118 = vunpack.c.l.bf16 %v102
  %v119 = vld [vmem:[#allocation2] sm:$0xff]
  %v120 = vld [vmem:[#allocation2 + $0x8] sm:$0xff]
  %v121 = vld [vmem:[#allocation2 + $0x10] sm:$0xff]
  %v122 = vld [vmem:[#allocation2 + $0x18] sm:$0xff]
  %v123 = vld [vmem:[#allocation2 + $0x20] sm:$0xff]
  %v124 = vld [vmem:[#allocation2 + $0x28] sm:$0xff]
  %v125 = vld [vmem:[#allocation2 + $0x30] sm:$0xff]
  %v126 = vld [vmem:[#allocation2 + $0x38] sm:$0xff]
  %v127 = vld [vmem:[%s1] sm:$0xf]
  %v128 = vld [vmem:[%s1 + $0x4] sm:$0xf]
  %v129 = vld [vmem:[%s1 + $0x8] sm:$0xf]
  %v130 = vld [vmem:[%s1 + $0xc] sm:$0xf]
  %v131 = vld [vmem:[%s1 + $0x10] sm:$0xf]
  %v132 = vld [vmem:[%s1 + $0x14] sm:$0xf]
  %v133 = vld [vmem:[%s1 + $0x18] sm:$0xf]
  %v134 = vld [vmem:[%s1 + $0x1c] sm:$0xf]
  %v135 = vld [vmem:[%s1 + $0x20] sm:$0xf]
  %v136 = vld [vmem:[%s1 + $0x24] sm:$0xf]
  %v137 = vld [vmem:[%s1 + $0x28] sm:$0xf]
  %v138 = vld [vmem:[%s1 + $0x2c] sm:$0xf]
  %v139 = vld [vmem:[%s1 + $0x30] sm:$0xf]
  %v140 = vld [vmem:[%s1 + $0x34] sm:$0xf]
  %v141 = vld [vmem:[%s1 + $0x38] sm:$0xf]
  %v142 = vld [vmem:[%s1 + $0x3c] sm:$0xf]
  %v159 = vunpack.c.l.b16 %v127
  %v160 = vunpack.c.l.b16 %v128
  %v161 = vunpack.c.l.b16 %v129
  %v162 = vunpack.c.l.b16 %v130
  %v163 = vunpack.c.l.b16 %v131
  %v164 = vunpack.c.l.b16 %v132
  %v165 = vunpack.c.l.b16 %v133
  %v166 = vunpack.c.l.b16 %v134
  %v167 = vunpack.c.l.b16 %v135
  %v168 = vunpack.c.l.b16 %v136
  %v169 = vunpack.c.l.b16 %v137
  %v170 = vunpack.c.l.b16 %v138
  %v171 = vunpack.c.l.b16 %v139
  %v172 = vunpack.c.l.b16 %v140
  %v173 = vunpack.c.l.b16 %v141
  %v174 = vunpack.c.l.b16 %v142
  %v175 = vpack.c.b16 %v160, %v159
  %v176 = vpack.c.b16 %v162, %v161
  %v177 = vpack.c.b16 %v164, %v163
  %v178 = vpack.c.b16 %v166, %v165
  %v179 = vpack.c.b16 %v168, %v167
  %v180 = vpack.c.b16 %v170, %v169
  %v181 = vpack.c.b16 %v172, %v171
  %v182 = vpack.c.b16 %v174, %v173
  %191 = vmatprep.subr.bf16.mxu0 0
  %192 = vmatpush1.bf16.msra.mxu0 %v175
  %193 = vmatprep.subr.bf16.mxu0 0
  %194 = vmatpush1.bf16.msra.mxu0 %v176
  %195 = vmatprep.subr.bf16.mxu0 0
  %196 = vmatpush1.bf16.msra.mxu0 %v177
  %197 = vmatprep.subr.bf16.mxu0 0
  %198 = vmatpush1.bf16.msra.mxu0 %v178
  %199 = vmatprep.subr.bf16.mxu0 0
  %200 = vmatpush1.bf16.msra.mxu0 %v179
  %201 = vmatprep.subr.bf16.mxu0 0
  %202 = vmatpush1.bf16.msra.mxu0 %v180
  %203 = vmatprep.subr.bf16.mxu0 0
  %204 = vmatpush1.bf16.msra.mxu0 %v181
  %205 = vmatprep.subr.bf16.mxu0 0
  %206 = vmatpush1.bf16.msra.mxu0 %v182
  %207 = vmatprep.subr.bf16.mxu0 0
  %208 = vmatpush1.bf16.msra.mxu0 0
  %209 = vmatprep.subr.bf16.mxu0 0
  %210 = vmatpush1.bf16.msra.mxu0 0
  %211 = vmatprep.subr.bf16.mxu0 0
  %212 = vmatpush1.bf16.msra.mxu0 0
  %213 = vmatprep.subr.bf16.mxu0 0
  %214 = vmatpush1.bf16.msra.mxu0 0
  %215 = vmatprep.subr.bf16.mxu0 0
  %216 = vmatpush1.bf16.msra.mxu0 0
  %217 = vmatprep.subr.bf16.mxu0 0
  %218 = vmatpush1.bf16.msra.mxu0 0
  %219 = vmatprep.subr.bf16.mxu0 0
  %220 = vmatpush1.bf16.msra.mxu0 0
  %221 = vmatprep.subr.bf16.mxu0 0
  %222 = vmatpush1.bf16.msra.mxu0 0
  %223 = vmatprep.mubr.bf16.mxu0 0
  %224 = vmatmul.mubr.bf16.gmra.mrb[0].mxu0 %v119
  %v225 = vpop.f32.mrb[0].mxu0
  %v226 = vadd.f32 0.0, %v225
  %v227 = vpop.f32.mrb[0].mxu0
  %v228 = vpop.f32.mrb[0].mxu0
  %v229 = vadd.f32 0.0, %v228
  %v230 = vpop.f32.mrb[0].mxu0
  %231 = vmatprep.mubr.bf16.mxu0 0
  %232 = vmatmul.mubr.bf16.gmra.mrb[0].mxu0 %v120
  %v233 = vpop.f32.mrb[0].mxu0
  %v234 = vadd.f32 0.0, %v233
  %v235 = vpop.f32.mrb[0].mxu0
  %v236 = vpop.f32.mrb[0].mxu0
  %v237 = vadd.f32 0.0, %v236
  %v238 = vpop.f32.mrb[0].mxu0
  %239 = vmatprep.mubr.bf16.mxu0 0
  %240 = vmatmul.mubr.bf16.gmra.mrb[0].mxu0 %v121
  %v241 = vpop.f32.mrb[0].mxu0
  %v242 = vadd.f32 0.0, %v241
  %v243 = vpop.f32.mrb[0].mxu0
  %v244 = vpop.f32.mrb[0].mxu0
  %v245 = vadd.f32 0.0, %v244
  %v246 = vpop.f32.mrb[0].mxu0
  %247 = vmatprep.mubr.bf16.mxu0 0
  %248 = vmatmul.mubr.bf16.gmra.mrb[0].mxu0 %v122
  %v249 = vpop.f32.mrb[0].mxu0
  %v250 = vadd.f32 0.0, %v249
  %v251 = vpop.f32.mrb[0].mxu0
  %v252 = vpop.f32.mrb[0].mxu0
  %v253 = vadd.f32 0.0, %v252
  %v254 = vpop.f32.mrb[0].mxu0
  %255 = vmatprep.mubr.bf16.mxu0 0
  %256 = vmatmul.mubr.bf16.gmra.mrb[0].mxu0 %v123
  %v257 = vpop.f32.mrb[0].mxu0
  %v258 = vadd.f32 0.0, %v257
  %v259 = vpop.f32.mrb[0].mxu0
  %v260 = vpop.f32.mrb[0].mxu0
  %v261 = vadd.f32 0.0, %v260
  %v262 = vpop.f32.mrb[0].mxu0
  %263 = vmatprep.mubr.bf16.mxu0 0
  %264 = vmatmul.mubr.bf16.gmra.mrb[0].mxu0 %v124
  %v265 = vpop.f32.mrb[0].mxu0
  %v266 = vadd.f32 0.0, %v265
  %v267 = vpop.f32.mrb[0].mxu0
  %v268 = vpop.f32.mrb[0].mxu0
  %v269 = vadd.f32 0.0, %v268
  %v270 = vpop.f32.mrb[0].mxu0
  %271 = vmatprep.mubr.bf16.mxu0 0
  %272 = vmatmul.mubr.bf16.gmra.mrb[0].mxu0 %v125
  %v273 = vpop.f32.mrb[0].mxu0
  %v274 = vadd.f32 0.0, %v273
  %v275 = vpop.f32.mrb[0].mxu0
  %v276 = vpop.f32.mrb[0].mxu0
  %v277 = vadd.f32 0.0, %v276
  %v278 = vpop.f32.mrb[0].mxu0
  %279 = vmatprep.mubr.bf16.mxu0 0
  %280 = vmatmul.mubr.bf16.gmra.mrb[0].mxu0 %v126
  %v281 = vpop.f32.mrb[0].mxu0
  %v282 = vadd.f32 0.0, %v281
  %v283 = vpop.f32.mrb[0].mxu0
  %v284 = vpop.f32.mrb[0].mxu0
  %v285 = vadd.f32 0.0, %v284
  %v286 = vpop.f32.mrb[0].mxu0
  %287 = vdwg.mxu0
  %v288 = vrot.slane %v226, 7
  %v289 = vrot.slane %v229, 7
  %v290 = vrot.slane %v234, 7
  %v291 = vrot.slane %v237, 7
  %v292 = vrot.slane %v242, 7
  %v293 = vrot.slane %v245, 7
  %v294 = vrot.slane %v250, 7
  %v295 = vrot.slane %v253, 7
  %v296 = vrot.slane %v258, 7
  %v297 = vrot.slane %v261, 7
  %v298 = vrot.slane %v266, 7
  %v299 = vrot.slane %v269, 7
  %v300 = vrot.slane %v274, 7
  %v301 = vrot.slane %v277, 7
  %v302 = vrot.slane %v282, 7
  %v303 = vrot.slane %v285, 7
  %v304 = vlaneseq
  %v305 = vshrl.u32 %v304, 7
  %vm306 = vcmp.lt.s32.totalorder %v305, 1
  %v307 = vsel %vm306, %v302, %v303
  %v308 = vsel %vm306, %v301, %v302
  %v309 = vsel %vm306, %v300, %v301
  %v310 = vsel %vm306, %v299, %v300
  %v311 = vsel %vm306, %v298, %v299
  %v312 = vsel %vm306, %v297, %v298
  %v313 = vsel %vm306, %v296, %v297
  %v314 = vsel %vm306, %v295, %v296
  %v315 = vsel %vm306, %v294, %v295
  %v316 = vsel %vm306, %v293, %v294
  %v317 = vsel %vm306, %v292, %v293
  %v318 = vsel %vm306, %v291, %v292
  %v319 = vsel %vm306, %v290, %v291
  %v320 = vsel %vm306, %v289, %v290
  %v321 = vsel %vm306, %v288, %v289
  %v322 = vsel %vm306, %v303, %v288
  %v323 = vrot.slane %v226, 1
  %v324 = vrot.slane %v229, 1
  %v325 = vrot.slane %v234, 1
  %v326 = vrot.slane %v237, 1
  %v327 = vrot.slane %v242, 1
  %v328 = vrot.slane %v245, 1
  %v329 = vrot.slane %v250, 1
  %v330 = vrot.slane %v253, 1
  %v331 = vrot.slane %v258, 1
  %v332 = vrot.slane %v261, 1
  %v333 = vrot.slane %v266, 1
  %v334 = vrot.slane %v269, 1
  %v335 = vrot.slane %v274, 1
  %v336 = vrot.slane %v277, 1
  %v337 = vrot.slane %v282, 1
  %v338 = vrot.slane %v285, 1
  %vm339 = vcmp.lt.s32.totalorder %v305, 7
  %v340 = vsel %vm339, %v337, %v338
  %v341 = vsel %vm339, %v336, %v337
  %v342 = vsel %vm339, %v335, %v336
  %v343 = vsel %vm339, %v334, %v335
  %v344 = vsel %vm339, %v333, %v334
  %v345 = vsel %vm339, %v332, %v333
  %v346 = vsel %vm339, %v331, %v332
  %v347 = vsel %vm339, %v330, %v331
  %v348 = vsel %vm339, %v329, %v330
  %v349 = vsel %vm339, %v328, %v329
  %v350 = vsel %vm339, %v327, %v328
  %v351 = vsel %vm339, %v326, %v327
  %v352 = vsel %vm339, %v325, %v326
  %v353 = vsel %vm339, %v324, %v325
  %v354 = vsel %vm339, %v323, %v324
  %v355 = vsel %vm339, %v338, %v323
  %357 = vset.pattern.permute.xlu0 126
  %358 = vperm.xlu0 %357, %v103
  %v359 = vpop.permute.xlu0 %358
  %362 = vset.pattern.permute.xlu0 126
  %363 = vperm.xlu0 %362, %v104
  %v364 = vpop.permute.xlu0 %363
  %367 = vset.pattern.permute.xlu0 126
  %368 = vperm.xlu0 %367, %v105
  %v369 = vpop.permute.xlu0 %368
  %372 = vset.pattern.permute.xlu0 126
  %373 = vperm.xlu0 %372, %v106
  %v374 = vpop.permute.xlu0 %373
  %377 = vset.pattern.permute.xlu0 126
  %378 = vperm.xlu0 %377, %v107
  %v379 = vpop.permute.xlu0 %378
  %382 = vset.pattern.permute.xlu0 126
  %383 = vperm.xlu0 %382, %v108
  %v384 = vpop.permute.xlu0 %383
  %387 = vset.pattern.permute.xlu0 126
  %388 = vperm.xlu0 %387, %v109
  %v389 = vpop.permute.xlu0 %388
  %392 = vset.pattern.permute.xlu0 126
  %393 = vperm.xlu0 %392, %v110
  %v394 = vpop.permute.xlu0 %393
  %397 = vset.pattern.permute.xlu0 126
  %398 = vperm.xlu0 %397, %v111
  %v399 = vpop.permute.xlu0 %398
  %402 = vset.pattern.permute.xlu0 126
  %403 = vperm.xlu0 %402, %v112
  %v404 = vpop.permute.xlu0 %403
  %407 = vset.pattern.permute.xlu0 126
  %408 = vperm.xlu0 %407, %v113
  %v409 = vpop.permute.xlu0 %408
  %412 = vset.pattern.permute.xlu0 126
  %413 = vperm.xlu0 %412, %v114
  %v414 = vpop.permute.xlu0 %413
  %417 = vset.pattern.permute.xlu0 126
  %418 = vperm.xlu0 %417, %v115
  %v419 = vpop.permute.xlu0 %418
  %422 = vset.pattern.permute.xlu0 126
  %423 = vperm.xlu0 %422, %v116
  %v424 = vpop.permute.xlu0 %423
  %427 = vset.pattern.permute.xlu0 126
  %428 = vperm.xlu0 %427, %v117
  %v429 = vpop.permute.xlu0 %428
  %432 = vset.pattern.permute.xlu0 126
  %433 = vperm.xlu0 %432, %v118
  %v434 = vpop.permute.xlu0 %433
  %v436 = vmul.f32 %v322, %v359
  %v437 = vmul.f32 %v321, %v364
  %v438 = vmul.f32 %v320, %v369
  %v439 = vmul.f32 %v319, %v374
  %v440 = vmul.f32 %v318, %v379
  %v441 = vmul.f32 %v317, %v384
  %v442 = vmul.f32 %v316, %v389
  %v443 = vmul.f32 %v315, %v394
  %v444 = vmul.f32 %v314, %v399
  %v445 = vmul.f32 %v313, %v404
  %v446 = vmul.f32 %v312, %v409
  %v447 = vmul.f32 %v311, %v414
  %v448 = vmul.f32 %v310, %v419
  %v449 = vmul.f32 %v309, %v424
  %v450 = vmul.f32 %v308, %v429
  %v451 = vmul.f32 %v307, %v434
  %468 = vrot.lane.b32.xlu0 %v226, 120
  %v469 = vpop.permute.xlu0 %468
  %470 = vrot.lane.b32.xlu0 %v229, 120
  %v471 = vpop.permute.xlu0 %470
  %472 = vrot.lane.b32.xlu0 %v234, 120
  %v473 = vpop.permute.xlu0 %472
  %474 = vrot.lane.b32.xlu0 %v237, 120
  %v475 = vpop.permute.xlu0 %474
  %476 = vrot.lane.b32.xlu0 %v242, 120
  %v477 = vpop.permute.xlu0 %476
  %478 = vrot.lane.b32.xlu0 %v245, 120
  %v479 = vpop.permute.xlu0 %478
  %480 = vrot.lane.b32.xlu0 %v250, 120
  %v481 = vpop.permute.xlu0 %480
  %482 = vrot.lane.b32.xlu0 %v253, 120
  %v483 = vpop.permute.xlu0 %482
  %484 = vrot.lane.b32.xlu0 %v258, 120
  %v485 = vpop.permute.xlu0 %484
  %486 = vrot.lane.b32.xlu0 %v261, 120
  %v487 = vpop.permute.xlu0 %486
  %488 = vrot.lane.b32.xlu0 %v266, 120
  %v489 = vpop.permute.xlu0 %488
  %490 = vrot.lane.b32.xlu0 %v269, 120
  %v491 = vpop.permute.xlu0 %490
  %492 = vrot.lane.b32.xlu0 %v274, 120
  %v493 = vpop.permute.xlu0 %492
  %494 = vrot.lane.b32.xlu0 %v277, 120
  %v495 = vpop.permute.xlu0 %494
  %496 = vrot.lane.b32.xlu0 %v282, 120
  %v497 = vpop.permute.xlu0 %496
  %498 = vrot.lane.b32.xlu0 %v285, 120
  %v499 = vpop.permute.xlu0 %498
  %v516 = vadd.f32 %v436, %v469
  %v517 = vadd.f32 %v437, %v471
  %v518 = vadd.f32 %v438, %v473
  %v519 = vadd.f32 %v439, %v475
  %v520 = vadd.f32 %v440, %v477
  %v521 = vadd.f32 %v441, %v479
  %v522 = vadd.f32 %v442, %v481
  %v523 = vadd.f32 %v443, %v483
  %v524 = vadd.f32 %v444, %v485
  %v525 = vadd.f32 %v445, %v487
  %v526 = vadd.f32 %v446, %v489
  %v527 = vadd.f32 %v447, %v491
  %v528 = vadd.f32 %v448, %v493
  %v529 = vadd.f32 %v449, %v495
  %v530 = vadd.f32 %v450, %v497
  %v531 = vadd.f32 %v451, %v499
  %532 = vset.pattern.permute.xlu0 127
  %533 = vperm.xlu0 %532, %v103
  %v534 = vpop.permute.xlu0 %533
  %536 = vset.pattern.permute.xlu0 127
  %537 = vperm.xlu0 %536, %v104
  %v538 = vpop.permute.xlu0 %537
  %540 = vset.pattern.permute.xlu0 127
  %541 = vperm.xlu0 %540, %v105
  %v542 = vpop.permute.xlu0 %541
  %544 = vset.pattern.permute.xlu0 127
  %545 = vperm.xlu0 %544, %v106
  %v546 = vpop.permute.xlu0 %545
  %548 = vset.pattern.permute.xlu0 127
  %549 = vperm.xlu0 %548, %v107
  %v550 = vpop.permute.xlu0 %549
  %552 = vset.pattern.permute.xlu0 127
  %553 = vperm.xlu0 %552, %v108
  %v554 = vpop.permute.xlu0 %553
  %556 = vset.pattern.permute.xlu0 127
  %557 = vperm.xlu0 %556, %v109
  %v558 = vpop.permute.xlu0 %557
  %560 = vset.pattern.permute.xlu0 127
  %561 = vperm.xlu0 %560, %v110
  %v562 = vpop.permute.xlu0 %561
  %564 = vset.pattern.permute.xlu0 127
  %565 = vperm.xlu0 %564, %v111
  %v566 = vpop.permute.xlu0 %565
  %568 = vset.pattern.permute.xlu0 127
  %569 = vperm.xlu0 %568, %v112
  %v570 = vpop.permute.xlu0 %569
  %572 = vset.pattern.permute.xlu0 127
  %573 = vperm.xlu0 %572, %v113
  %v574 = vpop.permute.xlu0 %573
  %576 = vset.pattern.permute.xlu0 127
  %577 = vperm.xlu0 %576, %v114
  %v578 = vpop.permute.xlu0 %577
  %580 = vset.pattern.permute.xlu0 127
  %581 = vperm.xlu0 %580, %v115
  %v582 = vpop.permute.xlu0 %581
  %584 = vset.pattern.permute.xlu0 127
  %585 = vperm.xlu0 %584, %v116
  %v586 = vpop.permute.xlu0 %585
  %588 = vset.pattern.permute.xlu0 127
  %589 = vperm.xlu0 %588, %v117
  %v590 = vpop.permute.xlu0 %589
  %592 = vset.pattern.permute.xlu0 127
  %593 = vperm.xlu0 %592, %v118
  %v594 = vpop.permute.xlu0 %593
  %v596 = vmul.f32 %v354, %v534
  %v597 = vmul.f32 %v353, %v538
  %v598 = vmul.f32 %v352, %v542
  %v599 = vmul.f32 %v351, %v546
  %v600 = vmul.f32 %v350, %v550
  %v601 = vmul.f32 %v349, %v554
  %v602 = vmul.f32 %v348, %v558
  %v603 = vmul.f32 %v347, %v562
  %v604 = vmul.f32 %v346, %v566
  %v605 = vmul.f32 %v345, %v570
  %v606 = vmul.f32 %v344, %v574
  %v607 = vmul.f32 %v343, %v578
  %v608 = vmul.f32 %v342, %v582
  %v609 = vmul.f32 %v341, %v586
  %v610 = vmul.f32 %v340, %v590
  %v611 = vmul.f32 %v355, %v594
  %628 = vrot.lane.b32.xlu0 %v596, 112
  %v629 = vpop.permute.xlu0 %628
  %630 = vrot.lane.b32.xlu0 %v597, 112
  %v631 = vpop.permute.xlu0 %630
  %632 = vrot.lane.b32.xlu0 %v598, 112
  %v633 = vpop.permute.xlu0 %632
  %634 = vrot.lane.b32.xlu0 %v599, 112
  %v635 = vpop.permute.xlu0 %634
  %636 = vrot.lane.b32.xlu0 %v600, 112
  %v637 = vpop.permute.xlu0 %636
  %638 = vrot.lane.b32.xlu0 %v601, 112
  %v639 = vpop.permute.xlu0 %638
  %640 = vrot.lane.b32.xlu0 %v602, 112
  %v641 = vpop.permute.xlu0 %640
  %642 = vrot.lane.b32.xlu0 %v603, 112
  %v643 = vpop.permute.xlu0 %642
  %644 = vrot.lane.b32.xlu0 %v604, 112
  %v645 = vpop.permute.xlu0 %644
  %646 = vrot.lane.b32.xlu0 %v605, 112
  %v647 = vpop.permute.xlu0 %646
  %648 = vrot.lane.b32.xlu0 %v606, 112
  %v649 = vpop.permute.xlu0 %648
  %650 = vrot.lane.b32.xlu0 %v607, 112
  %v651 = vpop.permute.xlu0 %650
  %652 = vrot.lane.b32.xlu0 %v608, 112
  %v653 = vpop.permute.xlu0 %652
  %654 = vrot.lane.b32.xlu0 %v609, 112
  %v655 = vpop.permute.xlu0 %654
  %656 = vrot.lane.b32.xlu0 %v610, 112
  %v657 = vpop.permute.xlu0 %656
  %658 = vrot.lane.b32.xlu0 %v611, 112
  %v659 = vpop.permute.xlu0 %658
  %v676 = vadd.f32 %v516, %v629
  %v677 = vadd.f32 %v517, %v631
  %v678 = vadd.f32 %v518, %v633
  %v679 = vadd.f32 %v519, %v635
  %v680 = vadd.f32 %v520, %v637
  %v681 = vadd.f32 %v521, %v639
  %v682 = vadd.f32 %v522, %v641
  %v683 = vadd.f32 %v523, %v643
  %v684 = vadd.f32 %v524, %v645
  %v685 = vadd.f32 %v525, %v647
  %v686 = vadd.f32 %v526, %v649
  %v687 = vadd.f32 %v527, %v651
  %v688 = vadd.f32 %v528, %v653
  %v689 = vadd.f32 %v529, %v655
  %v690 = vadd.f32 %v530, %v657
  %v691 = vadd.f32 %v531, %v659
  %v692 = vld [vmem:[%s2] sm:$0x1]
  %v693 = vlaneseq
  %v694 = vshrl.u32 %v693, 7
  %v695 = vsub.s32 0, %v694
  %v696 = vrot.slane %v692, %v695
  %v697 = vadd.f32 %v676, %v696
  %v698 = vadd.f32 %v677, %v696
  %v699 = vadd.f32 %v678, %v696
  %v700 = vadd.f32 %v679, %v696
  %v701 = vadd.f32 %v680, %v696
  %v702 = vadd.f32 %v681, %v696
  %v703 = vadd.f32 %v682, %v696
  %v704 = vadd.f32 %v683, %v696
  %v705 = vadd.f32 %v684, %v696
  %v706 = vadd.f32 %v685, %v696
  %v707 = vadd.f32 %v686, %v696
  %v708 = vadd.f32 %v687, %v696
  %v709 = vadd.f32 %v688, %v696
  %v710 = vadd.f32 %v689, %v696
  %v711 = vadd.f32 %v690, %v696
  %v712 = vadd.f32 %v691, %v696
  %vm713 = vcmask 64512
  %v714 = vsel %vm713, %v697, 0.0
  %v715 = vsel %vm713, %v698, 0.0
  %v716 = vadd.f32 %v714, %v715
  %v717 = vsel %vm713, %v699, 0.0
  %v718 = vadd.f32 %v716, %v717
  %v719 = vsel %vm713, %v700, 0.0
  %v720 = vadd.f32 %v718, %v719
  %v721 = vsel %vm713, %v701, 0.0
  %v722 = vadd.f32 %v720, %v721
  %v723 = vsel %vm713, %v702, 0.0
  %v724 = vadd.f32 %v722, %v723
  %v725 = vsel %vm713, %v703, 0.0
  %v726 = vadd.f32 %v724, %v725
  %v727 = vsel %vm713, %v704, 0.0
  %v728 = vadd.f32 %v726, %v727
  %v729 = vsel %vm713, %v705, 0.0
  %v730 = vadd.f32 %v728, %v729
  %v731 = vsel %vm713, %v706, 0.0
  %v732 = vadd.f32 %v730, %v731
  %v733 = vsel %vm713, %v707, 0.0
  %v734 = vadd.f32 %v732, %v733
  %v735 = vsel %vm713, %v708, 0.0
  %v736 = vadd.f32 %v734, %v735
  %v737 = vsel %vm713, %v709, 0.0
  %v738 = vadd.f32 %v736, %v737
  %v739 = vsel %vm713, %v710, 0.0
  %v740 = vadd.f32 %v738, %v739
  %v741 = vsel %vm713, %v711, 0.0
  %v742 = vadd.f32 %v740, %v741
  %v743 = vsel %vm713, %v712, 0.0
  %v744 = vadd.f32 %v742, %v743
  %v745 = vrot.slane %v744, 4
  %v746 = vadd.f32 %v744, %v745
  %v747 = vrot.slane %v746, 2
  %v748 = vadd.f32 %v746, %v747
  %v749 = vrot.slane %v748, 1
  %v750 = vadd.f32 %v748, %v749
  %v751 = vrcp.pop 128.0
  %v752 = vmul.f32 %v750, %v751
  %v753 = vsub.f32 %v697, %v752
  %v754 = vsub.f32 %v698, %v752
  %v755 = vsub.f32 %v699, %v752
  %v756 = vsub.f32 %v700, %v752
  %v757 = vsub.f32 %v701, %v752
  %v758 = vsub.f32 %v702, %v752
  %v759 = vsub.f32 %v703, %v752
  %v760 = vsub.f32 %v704, %v752
  %v761 = vsub.f32 %v705, %v752
  %v762 = vsub.f32 %v706, %v752
  %v763 = vsub.f32 %v707, %v752
  %v764 = vsub.f32 %v708, %v752
  %v765 = vsub.f32 %v709, %v752
  %v766 = vsub.f32 %v710, %v752
  %v767 = vsub.f32 %v711, %v752
  %v768 = vsub.f32 %v712, %v752
  %v769 = vmul.f32 %v753, %v753
  %v770 = vmul.f32 %v754, %v754
  %v771 = vmul.f32 %v755, %v755
  %v772 = vmul.f32 %v756, %v756
  %v773 = vmul.f32 %v757, %v757
  %v774 = vmul.f32 %v758, %v758
  %v775 = vmul.f32 %v759, %v759
  %v776 = vmul.f32 %v760, %v760
  %v777 = vmul.f32 %v761, %v761
  %v778 = vmul.f32 %v762, %v762
  %v779 = vmul.f32 %v763, %v763
  %v780 = vmul.f32 %v764, %v764
  %v781 = vmul.f32 %v765, %v765
  %v782 = vmul.f32 %v766, %v766
  %v783 = vmul.f32 %v767, %v767
  %v784 = vmul.f32 %v768, %v768
  %v785 = vsel %vm713, %v769, 0.0
  %v786 = vsel %vm713, %v770, 0.0
  %v787 = vadd.f32 %v785, %v786
  %v788 = vsel %vm713, %v771, 0.0
  %v789 = vadd.f32 %v787, %v788
  %v790 = vsel %vm713, %v772, 0.0
  %v791 = vadd.f32 %v789, %v790
  %v792 = vsel %vm713, %v773, 0.0
  %v793 = vadd.f32 %v791, %v792
  %v794 = vsel %vm713, %v774, 0.0
  %v795 = vadd.f32 %v793, %v794
  %v796 = vsel %vm713, %v775, 0.0
  %v797 = vadd.f32 %v795, %v796
  %v798 = vsel %vm713, %v776, 0.0
  %v799 = vadd.f32 %v797, %v798
  %v800 = vsel %vm713, %v777, 0.0
  %v801 = vadd.f32 %v799, %v800
  %v802 = vsel %vm713, %v778, 0.0
  %v803 = vadd.f32 %v801, %v802
  %v804 = vsel %vm713, %v779, 0.0
  %v805 = vadd.f32 %v803, %v804
  %v806 = vsel %vm713, %v780, 0.0
  %v807 = vadd.f32 %v805, %v806
  %v808 = vsel %vm713, %v781, 0.0
  %v809 = vadd.f32 %v807, %v808
  %v810 = vsel %vm713, %v782, 0.0
  %v811 = vadd.f32 %v809, %v810
  %v812 = vsel %vm713, %v783, 0.0
  %v813 = vadd.f32 %v811, %v812
  %v814 = vsel %vm713, %v784, 0.0
  %v815 = vadd.f32 %v813, %v814
  %v816 = vrot.slane %v815, 4
  %v817 = vadd.f32 %v815, %v816
  %v818 = vrot.slane %v817, 2
  %v819 = vadd.f32 %v817, %v818
  %v820 = vrot.slane %v819, 1
  %v821 = vadd.f32 %v819, %v820
  %v822 = vmul.f32 %v821, %v751
  %v823 = vld [vmem:[%s2 + $0x4] sm:$0x1]
  %v824 = vadd.f32 %v822, 1e-05
  %v825 = vrsqrt.pop %v824
  %v826 = vmul.f32 %v823, %v825
  %v827 = vlaneseq
  %v828 = vshrl.u32 %v827, 7
  %v829 = vsub.s32 0, %v828
  %v830 = vrot.slane %v826, %v829
  %v831 = vmul.f32 %v753, %v830
  %v832 = vmul.f32 %v754, %v830
  %v833 = vmul.f32 %v755, %v830
  %v834 = vmul.f32 %v756, %v830
  %v835 = vmul.f32 %v757, %v830
  %v836 = vmul.f32 %v758, %v830
  %v837 = vmul.f32 %v759, %v830
  %v838 = vmul.f32 %v760, %v830
  %v839 = vmul.f32 %v761, %v830
  %v840 = vmul.f32 %v762, %v830
  %v841 = vmul.f32 %v763, %v830
  %v842 = vmul.f32 %v764, %v830
  %v843 = vmul.f32 %v765, %v830
  %v844 = vmul.f32 %v766, %v830
  %v845 = vmul.f32 %v767, %v830
  %v846 = vmul.f32 %v768, %v830
  %v847 = vld [vmem:[%s2 + $0x8] sm:$0x1]
  %v848 = vlaneseq
  %v849 = vshrl.u32 %v848, 7
  %v850 = vsub.s32 0, %v849
  %v851 = vrot.slane %v847, %v850
  %v852 = vadd.f32 %v831, %v851
  %v853 = vadd.f32 %v832, %v851
  %v854 = vadd.f32 %v833, %v851
  %v855 = vadd.f32 %v834, %v851
  %v856 = vadd.f32 %v835, %v851
  %v857 = vadd.f32 %v836, %v851
  %v858 = vadd.f32 %v837, %v851
  %v859 = vadd.f32 %v838, %v851
  %v860 = vadd.f32 %v839, %v851
  %v861 = vadd.f32 %v840, %v851
  %v862 = vadd.f32 %v841, %v851
  %v863 = vadd.f32 %v842, %v851
  %v864 = vadd.f32 %v843, %v851
  %v865 = vadd.f32 %v844, %v851
  %v866 = vadd.f32 %v845, %v851
  %v867 = vadd.f32 %v846, %v851
  %vm868 = vcmp.gt.f32.partialorder %v852, 0.0
  %vm869 = vcmp.gt.f32.partialorder %v853, 0.0
  %vm870 = vcmp.gt.f32.partialorder %v854, 0.0
  %vm871 = vcmp.gt.f32.partialorder %v855, 0.0
  %vm872 = vcmp.gt.f32.partialorder %v856, 0.0
  %vm873 = vcmp.gt.f32.partialorder %v857, 0.0
  %vm874 = vcmp.gt.f32.partialorder %v858, 0.0
  %vm875 = vcmp.gt.f32.partialorder %v859, 0.0
  %vm876 = vcmp.gt.f32.partialorder %v860, 0.0
  %vm877 = vcmp.gt.f32.partialorder %v861, 0.0
  %vm878 = vcmp.gt.f32.partialorder %v862, 0.0
  %vm879 = vcmp.gt.f32.partialorder %v863, 0.0
  %vm880 = vcmp.gt.f32.partialorder %v864, 0.0
  %vm881 = vcmp.gt.f32.partialorder %v865, 0.0
  %vm882 = vcmp.gt.f32.partialorder %v866, 0.0
  %vm883 = vcmp.gt.f32.partialorder %v867, 0.0
  %v884 = vmin.f32 %v852, 0.0
  %v885 = vmin.f32 %v853, 0.0
  %v886 = vmin.f32 %v854, 0.0
  %v887 = vmin.f32 %v855, 0.0
  %v888 = vmin.f32 %v856, 0.0
  %v889 = vmin.f32 %v857, 0.0
  %v890 = vmin.f32 %v858, 0.0
  %v891 = vmin.f32 %v859, 0.0
  %v892 = vmin.f32 %v860, 0.0
  %v893 = vmin.f32 %v861, 0.0
  %v894 = vmin.f32 %v862, 0.0
  %v895 = vmin.f32 %v863, 0.0
  %v896 = vmin.f32 %v864, 0.0
  %v897 = vmin.f32 %v865, 0.0
  %v898 = vmin.f32 %v866, 0.0
  %v899 = vmin.f32 %v867, 0.0
  %v900 = vmul.f32 %v884, 1.442695
  %v901 = vpow.pop %v900
  %v902 = vmul.f32 %v885, 1.442695
  %v903 = vpow.pop %v902
  %v904 = vmul.f32 %v886, 1.442695
  %v905 = vpow.pop %v904
  %v906 = vmul.f32 %v887, 1.442695
  %v907 = vpow.pop %v906
  %v908 = vmul.f32 %v888, 1.442695
  %v909 = vpow.pop %v908
  %v910 = vmul.f32 %v889, 1.442695
  %v911 = vpow.pop %v910
  %v912 = vmul.f32 %v890, 1.442695
  %v913 = vpow.pop %v912
  %v914 = vmul.f32 %v891, 1.442695
  %v915 = vpow.pop %v914
  %v916 = vmul.f32 %v892, 1.442695
  %v917 = vpow.pop %v916
  %v918 = vmul.f32 %v893, 1.442695
  %v919 = vpow.pop %v918
  %v920 = vmul.f32 %v894, 1.442695
  %v921 = vpow.pop %v920
  %v922 = vmul.f32 %v895, 1.442695
  %v923 = vpow.pop %v922
  %v924 = vmul.f32 %v896, 1.442695
  %v925 = vpow.pop %v924
  %v926 = vmul.f32 %v897, 1.442695
  %v927 = vpow.pop %v926
  %v928 = vmul.f32 %v898, 1.442695
  %v929 = vpow.pop %v928
  %v930 = vmul.f32 %v899, 1.442695
  %v931 = vpow.pop %v930
  %v932 = vsub.f32 %v901, 1.0
  %v933 = vsub.f32 %v903, 1.0
  %v934 = vsub.f32 %v905, 1.0
  %v935 = vsub.f32 %v907, 1.0
  %v936 = vsub.f32 %v909, 1.0
  %v937 = vsub.f32 %v911, 1.0
  %v938 = vsub.f32 %v913, 1.0
  %v939 = vsub.f32 %v915, 1.0
  %v940 = vsub.f32 %v917, 1.0
  %v941 = vsub.f32 %v919, 1.0
  %v942 = vsub.f32 %v921, 1.0
  %v943 = vsub.f32 %v923, 1.0
  %v944 = vsub.f32 %v925, 1.0
  %v945 = vsub.f32 %v927, 1.0
  %v946 = vsub.f32 %v929, 1.0
  %v947 = vsub.f32 %v931, 1.0
  %v948 = vsel %vm868, %v852, %v932
  %v949 = vsel %vm869, %v853, %v933
  %v950 = vsel %vm870, %v854, %v934
  %v951 = vsel %vm871, %v855, %v935
  %v952 = vsel %vm872, %v856, %v936
  %v953 = vsel %vm873, %v857, %v937
  %v954 = vsel %vm874, %v858, %v938
  %v955 = vsel %vm875, %v859, %v939
  %v956 = vsel %vm876, %v860, %v940
  %v957 = vsel %vm877, %v861, %v941
  %v958 = vsel %vm878, %v862, %v942
  %v959 = vsel %vm879, %v863, %v943
  %v960 = vsel %vm880, %v864, %v944
  %v961 = vsel %vm881, %v865, %v945
  %v962 = vsel %vm882, %v866, %v946
  %v963 = vsel %vm883, %v867, %v947
  %v964 = vpack.c.bf16 %v949, %v948
  %v965 = vpack.c.bf16 %v951, %v950
  %v966 = vpack.c.bf16 %v953, %v952
  %v967 = vpack.c.bf16 %v955, %v954
  %v968 = vpack.c.bf16 %v957, %v956
  %v969 = vpack.c.bf16 %v959, %v958
  %v970 = vpack.c.bf16 %v961, %v960
  %v971 = vpack.c.bf16 %v963, %v962
  %980 = vrot.lane.b32.xlu0 %v964, 4
  %v981 = vpop.permute.xlu0 %980
  %982 = vrot.lane.b32.xlu0 %v965, 4
  %v983 = vpop.permute.xlu0 %982
  %984 = vrot.lane.b32.xlu0 %v966, 4
  %v985 = vpop.permute.xlu0 %984
  %986 = vrot.lane.b32.xlu0 %v967, 4
  %v987 = vpop.permute.xlu0 %986
  %988 = vrot.lane.b32.xlu0 %v968, 4
  %v989 = vpop.permute.xlu0 %988
  %990 = vrot.lane.b32.xlu0 %v969, 4
  %v991 = vpop.permute.xlu0 %990
  %992 = vrot.lane.b32.xlu0 %v970, 4
  %v993 = vpop.permute.xlu0 %992
  %994 = vrot.lane.b32.xlu0 %v971, 4
  %v995 = vpop.permute.xlu0 %994
  %vm1004 = vcmask 97312
  %1005 = vst.msk [vmem:[#allocation2] sm:$0xff] %vm1004, %v981
  %1006 = vst.msk [vmem:[#allocation2 + $0x8] sm:$0xff] %vm1004, %v983
  %1007 = vst.msk [vmem:[#allocation2 + $0x10] sm:$0xff] %vm1004, %v985
  %1008 = vst.msk [vmem:[#allocation2 + $0x18] sm:$0xff] %vm1004, %v987
  %1009 = vst.msk [vmem:[#allocation2 + $0x20] sm:$0xff] %vm1004, %v989
  %1010 = vst.msk [vmem:[#allocation2 + $0x28] sm:$0xff] %vm1004, %v991
  %1011 = vst.msk [vmem:[#allocation2 + $0x30] sm:$0xff] %vm1004, %v993
  %1012 = vst.msk [vmem:[#allocation2 + $0x38] sm:$0xff] %vm1004, %v995
  %v1013 = vld [vmem:[#allocation2] sm:$0xff]
  %v1014 = vld [vmem:[#allocation2 + $0x8] sm:$0xff]
  %v1015 = vld [vmem:[#allocation2 + $0x10] sm:$0xff]
  %v1016 = vld [vmem:[#allocation2 + $0x18] sm:$0xff]
  %v1017 = vld [vmem:[#allocation2 + $0x20] sm:$0xff]
  %v1018 = vld [vmem:[#allocation2 + $0x28] sm:$0xff]
  %v1019 = vld [vmem:[#allocation2 + $0x30] sm:$0xff]
  %v1020 = vld [vmem:[#allocation2 + $0x38] sm:$0xff]
  %s1021 = scalar_lea.vmem %s1, 64
  %v1022 = vld [vmem:[%s1021] sm:$0xf]
  %v1023 = vld [vmem:[%s1021 + $0x4] sm:$0xf]
  %v1024 = vld [vmem:[%s1021 + $0x8] sm:$0xf]
  %v1025 = vld [vmem:[%s1021 + $0xc] sm:$0xf]
  %v1026 = vld [vmem:[%s1021 + $0x10] sm:$0xf]
  %v1027 = vld [vmem:[%s1021 + $0x14] sm:$0xf]
  %v1028 = vld [vmem:[%s1021 + $0x18] sm:$0xf]
  %v1029 = vld [vmem:[%s1021 + $0x1c] sm:$0xf]
  %v1030 = vld [vmem:[%s1021 + $0x20] sm:$0xf]
  %v1031 = vld [vmem:[%s1021 + $0x24] sm:$0xf]
  %v1032 = vld [vmem:[%s1021 + $0x28] sm:$0xf]
  %v1033 = vld [vmem:[%s1021 + $0x2c] sm:$0xf]
  %v1034 = vld [vmem:[%s1021 + $0x30] sm:$0xf]
  %v1035 = vld [vmem:[%s1021 + $0x34] sm:$0xf]
  %v1036 = vld [vmem:[%s1021 + $0x38] sm:$0xf]
  %v1037 = vld [vmem:[%s1021 + $0x3c] sm:$0xf]
  %v1054 = vunpack.c.l.b16 %v1022
  %v1055 = vunpack.c.l.b16 %v1023
  %v1056 = vunpack.c.l.b16 %v1024
  %v1057 = vunpack.c.l.b16 %v1025
  %v1058 = vunpack.c.l.b16 %v1026
  %v1059 = vunpack.c.l.b16 %v1027
  %v1060 = vunpack.c.l.b16 %v1028
  %v1061 = vunpack.c.l.b16 %v1029
  %v1062 = vunpack.c.l.b16 %v1030
  %v1063 = vunpack.c.l.b16 %v1031
  %v1064 = vunpack.c.l.b16 %v1032
  %v1065 = vunpack.c.l.b16 %v1033
  %v1066 = vunpack.c.l.b16 %v1034
  %v1067 = vunpack.c.l.b16 %v1035
  %v1068 = vunpack.c.l.b16 %v1036
  %v1069 = vunpack.c.l.b16 %v1037
  %v1070 = vpack.c.b16 %v1055, %v1054
  %v1071 = vpack.c.b16 %v1057, %v1056
  %v1072 = vpack.c.b16 %v1059, %v1058
  %v1073 = vpack.c.b16 %v1061, %v1060
  %v1074 = vpack.c.b16 %v1063, %v1062
  %v1075 = vpack.c.b16 %v1065, %v1064
  %v1076 = vpack.c.b16 %v1067, %v1066
  %v1077 = vpack.c.b16 %v1069, %v1068
  %1086 = vmatprep.subr.bf16.mxu0 0
  %1087 = vmatpush1.bf16.msra.mxu0 %v1070
  %1088 = vmatprep.subr.bf16.mxu0 0
  %1089 = vmatpush1.bf16.msra.mxu0 %v1071
  %1090 = vmatprep.subr.bf16.mxu0 0
  %1091 = vmatpush1.bf16.msra.mxu0 %v1072
  %1092 = vmatprep.subr.bf16.mxu0 0
  %1093 = vmatpush1.bf16.msra.mxu0 %v1073
  %1094 = vmatprep.subr.bf16.mxu0 0
  %1095 = vmatpush1.bf16.msra.mxu0 %v1074
  %1096 = vmatprep.subr.bf16.mxu0 0
  %1097 = vmatpush1.bf16.msra.mxu0 %v1075
  %1098 = vmatprep.subr.bf16.mxu0 0
  %1099 = vmatpush1.bf16.msra.mxu0 %v1076
  %1100 = vmatprep.subr.bf16.mxu0 0
  %1101 = vmatpush1.bf16.msra.mxu0 %v1077
  %1102 = vmatprep.subr.bf16.mxu0 0
  %1103 = vmatpush1.bf16.msra.mxu0 0
  %1104 = vmatprep.subr.bf16.mxu0 0
  %1105 = vmatpush1.bf16.msra.mxu0 0
  %1106 = vmatprep.subr.bf16.mxu0 0
  %1107 = vmatpush1.bf16.msra.mxu0 0
  %1108 = vmatprep.subr.bf16.mxu0 0
  %1109 = vmatpush1.bf16.msra.mxu0 0
  %1110 = vmatprep.subr.bf16.mxu0 0
  %1111 = vmatpush1.bf16.msra.mxu0 0
  %1112 = vmatprep.subr.bf16.mxu0 0
  %1113 = vmatpush1.bf16.msra.mxu0 0
  %1114 = vmatprep.subr.bf16.mxu0 0
  %1115 = vmatpush1.bf16.msra.mxu0 0
  %1116 = vmatprep.subr.bf16.mxu0 0
  %1117 = vmatpush1.bf16.msra.mxu0 0
  %1118 = vmatprep.mubr.bf16.mxu0 0
  %1119 = vmatmul.mubr.bf16.gmra.mrb[0].mxu0 %v1013
  %v1120 = vpop.f32.mrb[0].mxu0
  %v1121 = vadd.f32 0.0, %v1120
  %v1122 = vpop.f32.mrb[0].mxu0
  %v1123 = vpop.f32.mrb[0].mxu0
  %v1124 = vadd.f32 0.0, %v1123
  %v1125 = vpop.f32.mrb[0].mxu0
  %1126 = vmatprep.mubr.bf16.mxu0 0
  %1127 = vmatmul.mubr.bf16.gmra.mrb[0].mxu0 %v1014
  %v1128 = vpop.f32.mrb[0].mxu0
  %v1129 = vadd.f32 0.0, %v1128
  %v1130 = vpop.f32.mrb[0].mxu0
  %v1131 = vpop.f32.mrb[0].mxu0
  %v1132 = vadd.f32 0.0, %v1131
  %v1133 = vpop.f32.mrb[0].mxu0
  %1134 = vmatprep.mubr.bf16.mxu0 0
  %1135 = vmatmul.mubr.bf16.gmra.mrb[0].mxu0 %v1015
  %v1136 = vpop.f32.mrb[0].mxu0
  %v1137 = vadd.f32 0.0, %v1136
  %v1138 = vpop.f32.mrb[0].mxu0
  %v1139 = vpop.f32.mrb[0].mxu0
  %v1140 = vadd.f32 0.0, %v1139
  %v1141 = vpop.f32.mrb[0].mxu0
  %1142 = vmatprep.mubr.bf16.mxu0 0
  %1143 = vmatmul.mubr.bf16.gmra.mrb[0].mxu0 %v1016
  %v1144 = vpop.f32.mrb[0].mxu0
  %v1145 = vadd.f32 0.0, %v1144
  %v1146 = vpop.f32.mrb[0].mxu0
  %v1147 = vpop.f32.mrb[0].mxu0
  %v1148 = vadd.f32 0.0, %v1147
  %v1149 = vpop.f32.mrb[0].mxu0
  %1150 = vmatprep.mubr.bf16.mxu0 0
  %1151 = vmatmul.mubr.bf16.gmra.mrb[0].mxu0 %v1017
  %v1152 = vpop.f32.mrb[0].mxu0
  %v1153 = vadd.f32 0.0, %v1152
  %v1154 = vpop.f32.mrb[0].mxu0
  %v1155 = vpop.f32.mrb[0].mxu0
  %v1156 = vadd.f32 0.0, %v1155
  %v1157 = vpop.f32.mrb[0].mxu0
  %1158 = vmatprep.mubr.bf16.mxu0 0
  %1159 = vmatmul.mubr.bf16.gmra.mrb[0].mxu0 %v1018
  %v1160 = vpop.f32.mrb[0].mxu0
  %v1161 = vadd.f32 0.0, %v1160
  %v1162 = vpop.f32.mrb[0].mxu0
  %v1163 = vpop.f32.mrb[0].mxu0
  %v1164 = vadd.f32 0.0, %v1163
  %v1165 = vpop.f32.mrb[0].mxu0
  %1166 = vmatprep.mubr.bf16.mxu0 0
  %1167 = vmatmul.mubr.bf16.gmra.mrb[0].mxu0 %v1019
  %v1168 = vpop.f32.mrb[0].mxu0
  %v1169 = vadd.f32 0.0, %v1168
  %v1170 = vpop.f32.mrb[0].mxu0
  %v1171 = vpop.f32.mrb[0].mxu0
  %v1172 = vadd.f32 0.0, %v1171
  %v1173 = vpop.f32.mrb[0].mxu0
  %1174 = vmatprep.mubr.bf16.mxu0 0
  %1175 = vmatmul.mubr.bf16.gmra.mrb[0].mxu0 %v1020
  %v1176 = vpop.f32.mrb[0].mxu0
  %v1177 = vadd.f32 0.0, %v1176
  %v1178 = vpop.f32.mrb[0].mxu0
  %v1179 = vpop.f32.mrb[0].mxu0
  %v1180 = vadd.f32 0.0, %v1179
  %v1181 = vpop.f32.mrb[0].mxu0
  %1182 = vdwg.mxu0
  %v1183 = vrot.slane %v1121, 7
  %v1184 = vrot.slane %v1124, 7
  %v1185 = vrot.slane %v1129, 7
  %v1186 = vrot.slane %v1132, 7
  %v1187 = vrot.slane %v1137, 7
  %v1188 = vrot.slane %v1140, 7
  %v1189 = vrot.slane %v1145, 7
  %v1190 = vrot.slane %v1148, 7
  %v1191 = vrot.slane %v1153, 7
  %v1192 = vrot.slane %v1156, 7
  %v1193 = vrot.slane %v1161, 7
  %v1194 = vrot.slane %v1164, 7
  %v1195 = vrot.slane %v1169, 7
  %v1196 = vrot.slane %v1172, 7
  %v1197 = vrot.slane %v1177, 7
  %v1198 = vrot.slane %v1180, 7
  %v1199 = vsel %vm306, %v1197, %v1198
  %v1200 = vsel %vm306, %v1196, %v1197
  %v1201 = vsel %vm306, %v1195, %v1196
  %v1202 = vsel %vm306, %v1194, %v1195
  %v1203 = vsel %vm306, %v1193, %v1194
  %v1204 = vsel %vm306, %v1192, %v1193
  %v1205 = vsel %vm306, %v1191, %v1192
  %v1206 = vsel %vm306, %v1190, %v1191
  %v1207 = vsel %vm306, %v1189, %v1190
  %v1208 = vsel %vm306, %v1188, %v1189
  %v1209 = vsel %vm306, %v1187, %v1188
  %v1210 = vsel %vm306, %v1186, %v1187
  %v1211 = vsel %vm306, %v1185, %v1186
  %v1212 = vsel %vm306, %v1184, %v1185
  %v1213 = vsel %vm306, %v1183, %v1184
  %v1214 = vsel %vm306, %v1198, %v1183
  %v1215 = vrot.slane %v1121, 1
  %v1216 = vrot.slane %v1124, 1
  %v1217 = vrot.slane %v1129, 1
  %v1218 = vrot.slane %v1132, 1
  %v1219 = vrot.slane %v1137, 1
  %v1220 = vrot.slane %v1140, 1
  %v1221 = vrot.slane %v1145, 1
  %v1222 = vrot.slane %v1148, 1
  %v1223 = vrot.slane %v1153, 1
  %v1224 = vrot.slane %v1156, 1
  %v1225 = vrot.slane %v1161, 1
  %v1226 = vrot.slane %v1164, 1
  %v1227 = vrot.slane %v1169, 1
  %v1228 = vrot.slane %v1172, 1
  %v1229 = vrot.slane %v1177, 1
  %v1230 = vrot.slane %v1180, 1
  %v1231 = vsel %vm339, %v1229, %v1230
  %v1232 = vsel %vm339, %v1228, %v1229
  %v1233 = vsel %vm339, %v1227, %v1228
  %v1234 = vsel %vm339, %v1226, %v1227
  %v1235 = vsel %vm339, %v1225, %v1226
  %v1236 = vsel %vm339, %v1224, %v1225
  %v1237 = vsel %vm339, %v1223, %v1224
  %v1238 = vsel %vm339, %v1222, %v1223
  %v1239 = vsel %vm339, %v1221, %v1222
  %v1240 = vsel %vm339, %v1220, %v1221
  %v1241 = vsel %vm339, %v1219, %v1220
  %v1242 = vsel %vm339, %v1218, %v1219
  %v1243 = vsel %vm339, %v1217, %v1218
  %v1244 = vsel %vm339, %v1216, %v1217
  %v1245 = vsel %vm339, %v1215, %v1216
  %v1246 = vsel %vm339, %v1230, %v1215
  %v1247 = vmul.f32 %v1214, %v359
  %v1248 = vmul.f32 %v1213, %v364
  %v1249 = vmul.f32 %v1212, %v369
  %v1250 = vmul.f32 %v1211, %v374
  %v1251 = vmul.f32 %v1210, %v379
  %v1252 = vmul.f32 %v1209, %v384
  %v1253 = vmul.f32 %v1208, %v389
  %v1254 = vmul.f32 %v1207, %v394
  %v1255 = vmul.f32 %v1206, %v399
  %v1256 = vmul.f32 %v1205, %v404
  %v1257 = vmul.f32 %v1204, %v409
  %v1258 = vmul.f32 %v1203, %v414
  %v1259 = vmul.f32 %v1202, %v419
  %v1260 = vmul.f32 %v1201, %v424
  %v1261 = vmul.f32 %v1200, %v429
  %v1262 = vmul.f32 %v1199, %v434
  %1279 = vrot.lane.b32.xlu0 %v1121, 120
  %v1280 = vpop.permute.xlu0 %1279
  %1281 = vrot.lane.b32.xlu0 %v1124, 120
  %v1282 = vpop.permute.xlu0 %1281
  %1283 = vrot.lane.b32.xlu0 %v1129, 120
  %v1284 = vpop.permute.xlu0 %1283
  %1285 = vrot.lane.b32.xlu0 %v1132, 120
  %v1286 = vpop.permute.xlu0 %1285
  %1287 = vrot.lane.b32.xlu0 %v1137, 120
  %v1288 = vpop.permute.xlu0 %1287
  %1289 = vrot.lane.b32.xlu0 %v1140, 120
  %v1290 = vpop.permute.xlu0 %1289
  %1291 = vrot.lane.b32.xlu0 %v1145, 120
  %v1292 = vpop.permute.xlu0 %1291
  %1293 = vrot.lane.b32.xlu0 %v1148, 120
  %v1294 = vpop.permute.xlu0 %1293
  %1295 = vrot.lane.b32.xlu0 %v1153, 120
  %v1296 = vpop.permute.xlu0 %1295
  %1297 = vrot.lane.b32.xlu0 %v1156, 120
  %v1298 = vpop.permute.xlu0 %1297
  %1299 = vrot.lane.b32.xlu0 %v1161, 120
  %v1300 = vpop.permute.xlu0 %1299
  %1301 = vrot.lane.b32.xlu0 %v1164, 120
  %v1302 = vpop.permute.xlu0 %1301
  %1303 = vrot.lane.b32.xlu0 %v1169, 120
  %v1304 = vpop.permute.xlu0 %1303
  %1305 = vrot.lane.b32.xlu0 %v1172, 120
  %v1306 = vpop.permute.xlu0 %1305
  %1307 = vrot.lane.b32.xlu0 %v1177, 120
  %v1308 = vpop.permute.xlu0 %1307
  %1309 = vrot.lane.b32.xlu0 %v1180, 120
  %v1310 = vpop.permute.xlu0 %1309
  %v1327 = vadd.f32 %v1247, %v1280
  %v1328 = vadd.f32 %v1248, %v1282
  %v1329 = vadd.f32 %v1249, %v1284
  %v1330 = vadd.f32 %v1250, %v1286
  %v1331 = vadd.f32 %v1251, %v1288
  %v1332 = vadd.f32 %v1252, %v1290
  %v1333 = vadd.f32 %v1253, %v1292
  %v1334 = vadd.f32 %v1254, %v1294
  %v1335 = vadd.f32 %v1255, %v1296
  %v1336 = vadd.f32 %v1256, %v1298
  %v1337 = vadd.f32 %v1257, %v1300
  %v1338 = vadd.f32 %v1258, %v1302
  %v1339 = vadd.f32 %v1259, %v1304
  %v1340 = vadd.f32 %v1260, %v1306
  %v1341 = vadd.f32 %v1261, %v1308
  %v1342 = vadd.f32 %v1262, %v1310
  %v1343 = vmul.f32 %v1245, %v534
  %v1344 = vmul.f32 %v1244, %v538
  %v1345 = vmul.f32 %v1243, %v542
  %v1346 = vmul.f32 %v1242, %v546
  %v1347 = vmul.f32 %v1241, %v550
  %v1348 = vmul.f32 %v1240, %v554
  %v1349 = vmul.f32 %v1239, %v558
  %v1350 = vmul.f32 %v1238, %v562
  %v1351 = vmul.f32 %v1237, %v566
  %v1352 = vmul.f32 %v1236, %v570
  %v1353 = vmul.f32 %v1235, %v574
  %v1354 = vmul.f32 %v1234, %v578
  %v1355 = vmul.f32 %v1233, %v582
  %v1356 = vmul.f32 %v1232, %v586
  %v1357 = vmul.f32 %v1231, %v590
  %v1358 = vmul.f32 %v1246, %v594
  %1375 = vrot.lane.b32.xlu0 %v1343, 112
  %v1376 = vpop.permute.xlu0 %1375
  %1377 = vrot.lane.b32.xlu0 %v1344, 112
  %v1378 = vpop.permute.xlu0 %1377
  %1379 = vrot.lane.b32.xlu0 %v1345, 112
  %v1380 = vpop.permute.xlu0 %1379
  %1381 = vrot.lane.b32.xlu0 %v1346, 112
  %v1382 = vpop.permute.xlu0 %1381
  %1383 = vrot.lane.b32.xlu0 %v1347, 112
  %v1384 = vpop.permute.xlu0 %1383
  %1385 = vrot.lane.b32.xlu0 %v1348, 112
  %v1386 = vpop.permute.xlu0 %1385
  %1387 = vrot.lane.b32.xlu0 %v1349, 112
  %v1388 = vpop.permute.xlu0 %1387
  %1389 = vrot.lane.b32.xlu0 %v1350, 112
  %v1390 = vpop.permute.xlu0 %1389
  %1391 = vrot.lane.b32.xlu0 %v1351, 112
  %v1392 = vpop.permute.xlu0 %1391
  %1393 = vrot.lane.b32.xlu0 %v1352, 112
  %v1394 = vpop.permute.xlu0 %1393
  %1395 = vrot.lane.b32.xlu0 %v1353, 112
  %v1396 = vpop.permute.xlu0 %1395
  %1397 = vrot.lane.b32.xlu0 %v1354, 112
  %v1398 = vpop.permute.xlu0 %1397
  %1399 = vrot.lane.b32.xlu0 %v1355, 112
  %v1400 = vpop.permute.xlu0 %1399
  %1401 = vrot.lane.b32.xlu0 %v1356, 112
  %v1402 = vpop.permute.xlu0 %1401
  %1403 = vrot.lane.b32.xlu0 %v1357, 112
  %v1404 = vpop.permute.xlu0 %1403
  %1405 = vrot.lane.b32.xlu0 %v1358, 112
  %v1406 = vpop.permute.xlu0 %1405
  %v1423 = vadd.f32 %v1327, %v1376
  %v1424 = vadd.f32 %v1328, %v1378
  %v1425 = vadd.f32 %v1329, %v1380
  %v1426 = vadd.f32 %v1330, %v1382
  %v1427 = vadd.f32 %v1331, %v1384
  %v1428 = vadd.f32 %v1332, %v1386
  %v1429 = vadd.f32 %v1333, %v1388
  %v1430 = vadd.f32 %v1334, %v1390
  %v1431 = vadd.f32 %v1335, %v1392
  %v1432 = vadd.f32 %v1336, %v1394
  %v1433 = vadd.f32 %v1337, %v1396
  %v1434 = vadd.f32 %v1338, %v1398
  %v1435 = vadd.f32 %v1339, %v1400
  %v1436 = vadd.f32 %v1340, %v1402
  %v1437 = vadd.f32 %v1341, %v1404
  %v1438 = vadd.f32 %v1342, %v1406
  %v1439 = vld [vmem:[%s2 + $0x1] sm:$0x1]
  %v1440 = vlaneseq
  %v1441 = vshrl.u32 %v1440, 7
  %v1442 = vsub.s32 0, %v1441
  %v1443 = vrot.slane %v1439, %v1442
  %v1444 = vadd.f32 %v1423, %v1443
  %v1445 = vadd.f32 %v1424, %v1443
  %v1446 = vadd.f32 %v1425, %v1443
  %v1447 = vadd.f32 %v1426, %v1443
  %v1448 = vadd.f32 %v1427, %v1443
  %v1449 = vadd.f32 %v1428, %v1443
  %v1450 = vadd.f32 %v1429, %v1443
  %v1451 = vadd.f32 %v1430, %v1443
  %v1452 = vadd.f32 %v1431, %v1443
  %v1453 = vadd.f32 %v1432, %v1443
  %v1454 = vadd.f32 %v1433, %v1443
  %v1455 = vadd.f32 %v1434, %v1443
  %v1456 = vadd.f32 %v1435, %v1443
  %v1457 = vadd.f32 %v1436, %v1443
  %v1458 = vadd.f32 %v1437, %v1443
  %v1459 = vadd.f32 %v1438, %v1443
  %v1460 = vsel %vm713, %v1444, 0.0
  %v1461 = vsel %vm713, %v1445, 0.0
  %v1462 = vadd.f32 %v1460, %v1461
  %v1463 = vsel %vm713, %v1446, 0.0
  %v1464 = vadd.f32 %v1462, %v1463
  %v1465 = vsel %vm713, %v1447, 0.0
  %v1466 = vadd.f32 %v1464, %v1465
  %v1467 = vsel %vm713, %v1448, 0.0
  %v1468 = vadd.f32 %v1466, %v1467
  %v1469 = vsel %vm713, %v1449, 0.0
  %v1470 = vadd.f32 %v1468, %v1469
  %v1471 = vsel %vm713, %v1450, 0.0
  %v1472 = vadd.f32 %v1470, %v1471
  %v1473 = vsel %vm713, %v1451, 0.0
  %v1474 = vadd.f32 %v1472, %v1473
  %v1475 = vsel %vm713, %v1452, 0.0
  %v1476 = vadd.f32 %v1474, %v1475
  %v1477 = vsel %vm713, %v1453, 0.0
  %v1478 = vadd.f32 %v1476, %v1477
  %v1479 = vsel %vm713, %v1454, 0.0
  %v1480 = vadd.f32 %v1478, %v1479
  %v1481 = vsel %vm713, %v1455, 0.0
  %v1482 = vadd.f32 %v1480, %v1481
  %v1483 = vsel %vm713, %v1456, 0.0
  %v1484 = vadd.f32 %v1482, %v1483
  %v1485 = vsel %vm713, %v1457, 0.0
  %v1486 = vadd.f32 %v1484, %v1485
  %v1487 = vsel %vm713, %v1458, 0.0
  %v1488 = vadd.f32 %v1486, %v1487
  %v1489 = vsel %vm713, %v1459, 0.0
  %v1490 = vadd.f32 %v1488, %v1489
  %v1491 = vrot.slane %v1490, 4
  %v1492 = vadd.f32 %v1490, %v1491
  %v1493 = vrot.slane %v1492, 2
  %v1494 = vadd.f32 %v1492, %v1493
  %v1495 = vrot.slane %v1494, 1
  %v1496 = vadd.f32 %v1494, %v1495
  %v1497 = vmul.f32 %v1496, %v751
  %v1498 = vsub.f32 %v1444, %v1497
  %v1499 = vsub.f32 %v1445, %v1497
  %v1500 = vsub.f32 %v1446, %v1497
  %v1501 = vsub.f32 %v1447, %v1497
  %v1502 = vsub.f32 %v1448, %v1497
  %v1503 = vsub.f32 %v1449, %v1497
  %v1504 = vsub.f32 %v1450, %v1497
  %v1505 = vsub.f32 %v1451, %v1497
  %v1506 = vsub.f32 %v1452, %v1497
  %v1507 = vsub.f32 %v1453, %v1497
  %v1508 = vsub.f32 %v1454, %v1497
  %v1509 = vsub.f32 %v1455, %v1497
  %v1510 = vsub.f32 %v1456, %v1497
  %v1511 = vsub.f32 %v1457, %v1497
  %v1512 = vsub.f32 %v1458, %v1497
  %v1513 = vsub.f32 %v1459, %v1497
  %v1514 = vmul.f32 %v1498, %v1498
  %v1515 = vmul.f32 %v1499, %v1499
  %v1516 = vmul.f32 %v1500, %v1500
  %v1517 = vmul.f32 %v1501, %v1501
  %v1518 = vmul.f32 %v1502, %v1502
  %v1519 = vmul.f32 %v1503, %v1503
  %v1520 = vmul.f32 %v1504, %v1504
  %v1521 = vmul.f32 %v1505, %v1505
  %v1522 = vmul.f32 %v1506, %v1506
  %v1523 = vmul.f32 %v1507, %v1507
  %v1524 = vmul.f32 %v1508, %v1508
  %v1525 = vmul.f32 %v1509, %v1509
  %v1526 = vmul.f32 %v1510, %v1510
  %v1527 = vmul.f32 %v1511, %v1511
  %v1528 = vmul.f32 %v1512, %v1512
  %v1529 = vmul.f32 %v1513, %v1513
  %v1530 = vsel %vm713, %v1514, 0.0
  %v1531 = vsel %vm713, %v1515, 0.0
  %v1532 = vadd.f32 %v1530, %v1531
  %v1533 = vsel %vm713, %v1516, 0.0
  %v1534 = vadd.f32 %v1532, %v1533
  %v1535 = vsel %vm713, %v1517, 0.0
  %v1536 = vadd.f32 %v1534, %v1535
  %v1537 = vsel %vm713, %v1518, 0.0
  %v1538 = vadd.f32 %v1536, %v1537
  %v1539 = vsel %vm713, %v1519, 0.0
  %v1540 = vadd.f32 %v1538, %v1539
  %v1541 = vsel %vm713, %v1520, 0.0
  %v1542 = vadd.f32 %v1540, %v1541
  %v1543 = vsel %vm713, %v1521, 0.0
  %v1544 = vadd.f32 %v1542, %v1543
  %v1545 = vsel %vm713, %v1522, 0.0
  %v1546 = vadd.f32 %v1544, %v1545
  %v1547 = vsel %vm713, %v1523, 0.0
  %v1548 = vadd.f32 %v1546, %v1547
  %v1549 = vsel %vm713, %v1524, 0.0
  %v1550 = vadd.f32 %v1548, %v1549
  %v1551 = vsel %vm713, %v1525, 0.0
  %v1552 = vadd.f32 %v1550, %v1551
  %v1553 = vsel %vm713, %v1526, 0.0
  %v1554 = vadd.f32 %v1552, %v1553
  %v1555 = vsel %vm713, %v1527, 0.0
  %v1556 = vadd.f32 %v1554, %v1555
  %v1557 = vsel %vm713, %v1528, 0.0
  %v1558 = vadd.f32 %v1556, %v1557
  %v1559 = vsel %vm713, %v1529, 0.0
  %v1560 = vadd.f32 %v1558, %v1559
  %v1561 = vrot.slane %v1560, 4
  %v1562 = vadd.f32 %v1560, %v1561
  %v1563 = vrot.slane %v1562, 2
  %v1564 = vadd.f32 %v1562, %v1563
  %v1565 = vrot.slane %v1564, 1
  %v1566 = vadd.f32 %v1564, %v1565
  %v1567 = vmul.f32 %v1566, %v751
  %v1568 = vld [vmem:[%s2 + $0x5] sm:$0x1]
  %v1569 = vadd.f32 %v1567, 1e-05
  %v1570 = vrsqrt.pop %v1569
  %v1571 = vmul.f32 %v1568, %v1570
  %v1572 = vlaneseq
  %v1573 = vshrl.u32 %v1572, 7
  %v1574 = vsub.s32 0, %v1573
  %v1575 = vrot.slane %v1571, %v1574
  %v1576 = vmul.f32 %v1498, %v1575
  %v1577 = vmul.f32 %v1499, %v1575
  %v1578 = vmul.f32 %v1500, %v1575
  %v1579 = vmul.f32 %v1501, %v1575
  %v1580 = vmul.f32 %v1502, %v1575
  %v1581 = vmul.f32 %v1503, %v1575
  %v1582 = vmul.f32 %v1504, %v1575
  %v1583 = vmul.f32 %v1505, %v1575
  %v1584 = vmul.f32 %v1506, %v1575
  %v1585 = vmul.f32 %v1507, %v1575
  %v1586 = vmul.f32 %v1508, %v1575
  %v1587 = vmul.f32 %v1509, %v1575
  %v1588 = vmul.f32 %v1510, %v1575
  %v1589 = vmul.f32 %v1511, %v1575
  %v1590 = vmul.f32 %v1512, %v1575
  %v1591 = vmul.f32 %v1513, %v1575
  %v1592 = vld [vmem:[%s2 + $0x9] sm:$0x1]
  %v1593 = vlaneseq
  %v1594 = vshrl.u32 %v1593, 7
  %v1595 = vsub.s32 0, %v1594
  %v1596 = vrot.slane %v1592, %v1595
  %v1597 = vadd.f32 %v1576, %v1596
  %v1598 = vadd.f32 %v1577, %v1596
  %v1599 = vadd.f32 %v1578, %v1596
  %v1600 = vadd.f32 %v1579, %v1596
  %v1601 = vadd.f32 %v1580, %v1596
  %v1602 = vadd.f32 %v1581, %v1596
  %v1603 = vadd.f32 %v1582, %v1596
  %v1604 = vadd.f32 %v1583, %v1596
  %v1605 = vadd.f32 %v1584, %v1596
  %v1606 = vadd.f32 %v1585, %v1596
  %v1607 = vadd.f32 %v1586, %v1596
  %v1608 = vadd.f32 %v1587, %v1596
  %v1609 = vadd.f32 %v1588, %v1596
  %v1610 = vadd.f32 %v1589, %v1596
  %v1611 = vadd.f32 %v1590, %v1596
  %v1612 = vadd.f32 %v1591, %v1596
  %vm1613 = vcmp.gt.f32.partialorder %v1597, 0.0
  %vm1614 = vcmp.gt.f32.partialorder %v1598, 0.0
  %vm1615 = vcmp.gt.f32.partialorder %v1599, 0.0
  %vm1616 = vcmp.gt.f32.partialorder %v1600, 0.0
  %vm1617 = vcmp.gt.f32.partialorder %v1601, 0.0
  %vm1618 = vcmp.gt.f32.partialorder %v1602, 0.0
  %vm1619 = vcmp.gt.f32.partialorder %v1603, 0.0
  %vm1620 = vcmp.gt.f32.partialorder %v1604, 0.0
  %vm1621 = vcmp.gt.f32.partialorder %v1605, 0.0
  %vm1622 = vcmp.gt.f32.partialorder %v1606, 0.0
  %vm1623 = vcmp.gt.f32.partialorder %v1607, 0.0
  %vm1624 = vcmp.gt.f32.partialorder %v1608, 0.0
  %vm1625 = vcmp.gt.f32.partialorder %v1609, 0.0
  %vm1626 = vcmp.gt.f32.partialorder %v1610, 0.0
  %vm1627 = vcmp.gt.f32.partialorder %v1611, 0.0
  %vm1628 = vcmp.gt.f32.partialorder %v1612, 0.0
  %v1629 = vmin.f32 %v1597, 0.0
  %v1630 = vmin.f32 %v1598, 0.0
  %v1631 = vmin.f32 %v1599, 0.0
  %v1632 = vmin.f32 %v1600, 0.0
  %v1633 = vmin.f32 %v1601, 0.0
  %v1634 = vmin.f32 %v1602, 0.0
  %v1635 = vmin.f32 %v1603, 0.0
  %v1636 = vmin.f32 %v1604, 0.0
  %v1637 = vmin.f32 %v1605, 0.0
  %v1638 = vmin.f32 %v1606, 0.0
  %v1639 = vmin.f32 %v1607, 0.0
  %v1640 = vmin.f32 %v1608, 0.0
  %v1641 = vmin.f32 %v1609, 0.0
  %v1642 = vmin.f32 %v1610, 0.0
  %v1643 = vmin.f32 %v1611, 0.0
  %v1644 = vmin.f32 %v1612, 0.0
  %v1645 = vmul.f32 %v1629, 1.442695
  %v1646 = vpow.pop %v1645
  %v1647 = vmul.f32 %v1630, 1.442695
  %v1648 = vpow.pop %v1647
  %v1649 = vmul.f32 %v1631, 1.442695
  %v1650 = vpow.pop %v1649
  %v1651 = vmul.f32 %v1632, 1.442695
  %v1652 = vpow.pop %v1651
  %v1653 = vmul.f32 %v1633, 1.442695
  %v1654 = vpow.pop %v1653
  %v1655 = vmul.f32 %v1634, 1.442695
  %v1656 = vpow.pop %v1655
  %v1657 = vmul.f32 %v1635, 1.442695
  %v1658 = vpow.pop %v1657
  %v1659 = vmul.f32 %v1636, 1.442695
  %v1660 = vpow.pop %v1659
  %v1661 = vmul.f32 %v1637, 1.442695
  %v1662 = vpow.pop %v1661
  %v1663 = vmul.f32 %v1638, 1.442695
  %v1664 = vpow.pop %v1663
  %v1665 = vmul.f32 %v1639, 1.442695
  %v1666 = vpow.pop %v1665
  %v1667 = vmul.f32 %v1640, 1.442695
  %v1668 = vpow.pop %v1667
  %v1669 = vmul.f32 %v1641, 1.442695
  %v1670 = vpow.pop %v1669
  %v1671 = vmul.f32 %v1642, 1.442695
  %v1672 = vpow.pop %v1671
  %v1673 = vmul.f32 %v1643, 1.442695
  %v1674 = vpow.pop %v1673
  %v1675 = vmul.f32 %v1644, 1.442695
  %v1676 = vpow.pop %v1675
  %v1677 = vsub.f32 %v1646, 1.0
  %v1678 = vsub.f32 %v1648, 1.0
  %v1679 = vsub.f32 %v1650, 1.0
  %v1680 = vsub.f32 %v1652, 1.0
  %v1681 = vsub.f32 %v1654, 1.0
  %v1682 = vsub.f32 %v1656, 1.0
  %v1683 = vsub.f32 %v1658, 1.0
  %v1684 = vsub.f32 %v1660, 1.0
  %v1685 = vsub.f32 %v1662, 1.0
  %v1686 = vsub.f32 %v1664, 1.0
  %v1687 = vsub.f32 %v1666, 1.0
  %v1688 = vsub.f32 %v1668, 1.0
  %v1689 = vsub.f32 %v1670, 1.0
  %v1690 = vsub.f32 %v1672, 1.0
  %v1691 = vsub.f32 %v1674, 1.0
  %v1692 = vsub.f32 %v1676, 1.0
  %v1693 = vsel %vm1613, %v1597, %v1677
  %v1694 = vsel %vm1614, %v1598, %v1678
  %v1695 = vsel %vm1615, %v1599, %v1679
  %v1696 = vsel %vm1616, %v1600, %v1680
  %v1697 = vsel %vm1617, %v1601, %v1681
  %v1698 = vsel %vm1618, %v1602, %v1682
  %v1699 = vsel %vm1619, %v1603, %v1683
  %v1700 = vsel %vm1620, %v1604, %v1684
  %v1701 = vsel %vm1621, %v1605, %v1685
  %v1702 = vsel %vm1622, %v1606, %v1686
  %v1703 = vsel %vm1623, %v1607, %v1687
  %v1704 = vsel %vm1624, %v1608, %v1688
  %v1705 = vsel %vm1625, %v1609, %v1689
  %v1706 = vsel %vm1626, %v1610, %v1690
  %v1707 = vsel %vm1627, %v1611, %v1691
  %v1708 = vsel %vm1628, %v1612, %v1692
  %v1709 = vpack.c.bf16 %v1694, %v1693
  %v1710 = vpack.c.bf16 %v1696, %v1695
  %v1711 = vpack.c.bf16 %v1698, %v1697
  %v1712 = vpack.c.bf16 %v1700, %v1699
  %v1713 = vpack.c.bf16 %v1702, %v1701
  %v1714 = vpack.c.bf16 %v1704, %v1703
  %v1715 = vpack.c.bf16 %v1706, %v1705
  %v1716 = vpack.c.bf16 %v1708, %v1707
  %1725 = vrot.lane.b32.xlu0 %v1709, 12
  %v1726 = vpop.permute.xlu0 %1725
  %1727 = vrot.lane.b32.xlu0 %v1710, 12
  %v1728 = vpop.permute.xlu0 %1727
  %1729 = vrot.lane.b32.xlu0 %v1711, 12
  %v1730 = vpop.permute.xlu0 %1729
  %1731 = vrot.lane.b32.xlu0 %v1712, 12
  %v1732 = vpop.permute.xlu0 %1731
  %1733 = vrot.lane.b32.xlu0 %v1713, 12
  %v1734 = vpop.permute.xlu0 %1733
  %1735 = vrot.lane.b32.xlu0 %v1714, 12
  %v1736 = vpop.permute.xlu0 %1735
  %1737 = vrot.lane.b32.xlu0 %v1715, 12
  %v1738 = vpop.permute.xlu0 %1737
  %1739 = vrot.lane.b32.xlu0 %v1716, 12
  %v1740 = vpop.permute.xlu0 %1739
  %vm1749 = vcmask 162912
  %1750 = vst.msk [vmem:[#allocation2] sm:$0xff] %vm1749, %v1726
  %1751 = vst.msk [vmem:[#allocation2 + $0x8] sm:$0xff] %vm1749, %v1728
  %1752 = vst.msk [vmem:[#allocation2 + $0x10] sm:$0xff] %vm1749, %v1730
  %1753 = vst.msk [vmem:[#allocation2 + $0x18] sm:$0xff] %vm1749, %v1732
  %1754 = vst.msk [vmem:[#allocation2 + $0x20] sm:$0xff] %vm1749, %v1734
  %1755 = vst.msk [vmem:[#allocation2 + $0x28] sm:$0xff] %vm1749, %v1736
  %1756 = vst.msk [vmem:[#allocation2 + $0x30] sm:$0xff] %vm1749, %v1738
  %1757 = vst.msk [vmem:[#allocation2 + $0x38] sm:$0xff] %vm1749, %v1740
  %v1758 = vld [vmem:[#allocation2] sm:$0xff]
  %v1759 = vld [vmem:[#allocation2 + $0x8] sm:$0xff]
  %v1760 = vld [vmem:[#allocation2 + $0x10] sm:$0xff]
  %v1761 = vld [vmem:[#allocation2 + $0x18] sm:$0xff]
  %v1762 = vld [vmem:[#allocation2 + $0x20] sm:$0xff]
  %v1763 = vld [vmem:[#allocation2 + $0x28] sm:$0xff]
  %v1764 = vld [vmem:[#allocation2 + $0x30] sm:$0xff]
  %v1765 = vld [vmem:[#allocation2 + $0x38] sm:$0xff]
  %s1766 = scalar_lea.vmem %s1, 128
  %v1767 = vld [vmem:[%s1766] sm:$0xf]
  %v1768 = vld [vmem:[%s1766 + $0x4] sm:$0xf]
  %v1769 = vld [vmem:[%s1766 + $0x8] sm:$0xf]
  %v1770 = vld [vmem:[%s1766 + $0xc] sm:$0xf]
  %v1771 = vld [vmem:[%s1766 + $0x10] sm:$0xf]
  %v1772 = vld [vmem:[%s1766 + $0x14] sm:$0xf]
  %v1773 = vld [vmem:[%s1766 + $0x18] sm:$0xf]
  %v1774 = vld [vmem:[%s1766 + $0x1c] sm:$0xf]
  %v1775 = vld [vmem:[%s1766 + $0x20] sm:$0xf]
  %v1776 = vld [vmem:[%s1766 + $0x24] sm:$0xf]
  %v1777 = vld [vmem:[%s1766 + $0x28] sm:$0xf]
  %v1778 = vld [vmem:[%s1766 + $0x2c] sm:$0xf]
  %v1779 = vld [vmem:[%s1766 + $0x30] sm:$0xf]
  %v1780 = vld [vmem:[%s1766 + $0x34] sm:$0xf]
  %v1781 = vld [vmem:[%s1766 + $0x38] sm:$0xf]
  %v1782 = vld [vmem:[%s1766 + $0x3c] sm:$0xf]
  %v1799 = vunpack.c.l.b16 %v1767
  %v1800 = vunpack.c.l.b16 %v1768
  %v1801 = vunpack.c.l.b16 %v1769
  %v1802 = vunpack.c.l.b16 %v1770
  %v1803 = vunpack.c.l.b16 %v1771
  %v1804 = vunpack.c.l.b16 %v1772
  %v1805 = vunpack.c.l.b16 %v1773
  %v1806 = vunpack.c.l.b16 %v1774
  %v1807 = vunpack.c.l.b16 %v1775
  %v1808 = vunpack.c.l.b16 %v1776
  %v1809 = vunpack.c.l.b16 %v1777
  %v1810 = vunpack.c.l.b16 %v1778
  %v1811 = vunpack.c.l.b16 %v1779
  %v1812 = vunpack.c.l.b16 %v1780
  %v1813 = vunpack.c.l.b16 %v1781
  %v1814 = vunpack.c.l.b16 %v1782
  %v1815 = vpack.c.b16 %v1800, %v1799
  %v1816 = vpack.c.b16 %v1802, %v1801
  %v1817 = vpack.c.b16 %v1804, %v1803
  %v1818 = vpack.c.b16 %v1806, %v1805
  %v1819 = vpack.c.b16 %v1808, %v1807
  %v1820 = vpack.c.b16 %v1810, %v1809
  %v1821 = vpack.c.b16 %v1812, %v1811
  %v1822 = vpack.c.b16 %v1814, %v1813
  %1831 = vmatprep.subr.bf16.mxu0 0
  %1832 = vmatpush1.bf16.msra.mxu0 %v1815
  %1833 = vmatprep.subr.bf16.mxu0 0
  %1834 = vmatpush1.bf16.msra.mxu0 %v1816
  %1835 = vmatprep.subr.bf16.mxu0 0
  %1836 = vmatpush1.bf16.msra.mxu0 %v1817
  %1837 = vmatprep.subr.bf16.mxu0 0
  %1838 = vmatpush1.bf16.msra.mxu0 %v1818
  %1839 = vmatprep.subr.bf16.mxu0 0
  %1840 = vmatpush1.bf16.msra.mxu0 %v1819
  %1841 = vmatprep.subr.bf16.mxu0 0
  %1842 = vmatpush1.bf16.msra.mxu0 %v1820
  %1843 = vmatprep.subr.bf16.mxu0 0
  %1844 = vmatpush1.bf16.msra.mxu0 %v1821
  %1845 = vmatprep.subr.bf16.mxu0 0
  %1846 = vmatpush1.bf16.msra.mxu0 %v1822
  %1847 = vmatprep.subr.bf16.mxu0 0
  %1848 = vmatpush1.bf16.msra.mxu0 0
  %1849 = vmatprep.subr.bf16.mxu0 0
  %1850 = vmatpush1.bf16.msra.mxu0 0
  %1851 = vmatprep.subr.bf16.mxu0 0
  %1852 = vmatpush1.bf16.msra.mxu0 0
  %1853 = vmatprep.subr.bf16.mxu0 0
  %1854 = vmatpush1.bf16.msra.mxu0 0
  %1855 = vmatprep.subr.bf16.mxu0 0
  %1856 = vmatpush1.bf16.msra.mxu0 0
  %1857 = vmatprep.subr.bf16.mxu0 0
  %1858 = vmatpush1.bf16.msra.mxu0 0
  %1859 = vmatprep.subr.bf16.mxu0 0
  %1860 = vmatpush1.bf16.msra.mxu0 0
  %1861 = vmatprep.subr.bf16.mxu0 0
  %1862 = vmatpush1.bf16.msra.mxu0 0
  %1863 = vmatprep.mubr.bf16.mxu0 0
  %1864 = vmatmul.mubr.bf16.gmra.mrb[0].mxu0 %v1758
  %v1865 = vpop.f32.mrb[0].mxu0
  %v1866 = vadd.f32 0.0, %v1865
  %v1867 = vpop.f32.mrb[0].mxu0
  %v1868 = vpop.f32.mrb[0].mxu0
  %v1869 = vadd.f32 0.0, %v1868
  %v1870 = vpop.f32.mrb[0].mxu0
  %1871 = vmatprep.mubr.bf16.mxu0 0
  %1872 = vmatmul.mubr.bf16.gmra.mrb[0].mxu0 %v1759
  %v1873 = vpop.f32.mrb[0].mxu0
  %v1874 = vadd.f32 0.0, %v1873
  %v1875 = vpop.f32.mrb[0].mxu0
  %v1876 = vpop.f32.mrb[0].mxu0
  %v1877 = vadd.f32 0.0, %v1876
  %v1878 = vpop.f32.mrb[0].mxu0
  %1879 = vmatprep.mubr.bf16.mxu0 0
  %1880 = vmatmul.mubr.bf16.gmra.mrb[0].mxu0 %v1760
  %v1881 = vpop.f32.mrb[0].mxu0
  %v1882 = vadd.f32 0.0, %v1881
  %v1883 = vpop.f32.mrb[0].mxu0
  %v1884 = vpop.f32.mrb[0].mxu0
  %v1885 = vadd.f32 0.0, %v1884
  %v1886 = vpop.f32.mrb[0].mxu0
  %1887 = vmatprep.mubr.bf16.mxu0 0
  %1888 = vmatmul.mubr.bf16.gmra.mrb[0].mxu0 %v1761
  %v1889 = vpop.f32.mrb[0].mxu0
  %v1890 = vadd.f32 0.0, %v1889
  %v1891 = vpop.f32.mrb[0].mxu0
  %v1892 = vpop.f32.mrb[0].mxu0
  %v1893 = vadd.f32 0.0, %v1892
  %v1894 = vpop.f32.mrb[0].mxu0
  %1895 = vmatprep.mubr.bf16.mxu0 0
  %1896 = vmatmul.mubr.bf16.gmra.mrb[0].mxu0 %v1762
  %v1897 = vpop.f32.mrb[0].mxu0
  %v1898 = vadd.f32 0.0, %v1897
  %v1899 = vpop.f32.mrb[0].mxu0
  %v1900 = vpop.f32.mrb[0].mxu0
  %v1901 = vadd.f32 0.0, %v1900
  %v1902 = vpop.f32.mrb[0].mxu0
  %1903 = vmatprep.mubr.bf16.mxu0 0
  %1904 = vmatmul.mubr.bf16.gmra.mrb[0].mxu0 %v1763
  %v1905 = vpop.f32.mrb[0].mxu0
  %v1906 = vadd.f32 0.0, %v1905
  %v1907 = vpop.f32.mrb[0].mxu0
  %v1908 = vpop.f32.mrb[0].mxu0
  %v1909 = vadd.f32 0.0, %v1908
  %v1910 = vpop.f32.mrb[0].mxu0
  %1911 = vmatprep.mubr.bf16.mxu0 0
  %1912 = vmatmul.mubr.bf16.gmra.mrb[0].mxu0 %v1764
  %v1913 = vpop.f32.mrb[0].mxu0
  %v1914 = vadd.f32 0.0, %v1913
  %v1915 = vpop.f32.mrb[0].mxu0
  %v1916 = vpop.f32.mrb[0].mxu0
  %v1917 = vadd.f32 0.0, %v1916
  %v1918 = vpop.f32.mrb[0].mxu0
  %1919 = vmatprep.mubr.bf16.mxu0 0
  %1920 = vmatmul.mubr.bf16.gmra.mrb[0].mxu0 %v1765
  %v1921 = vpop.f32.mrb[0].mxu0
  %v1922 = vadd.f32 0.0, %v1921
  %v1923 = vpop.f32.mrb[0].mxu0
  %v1924 = vpop.f32.mrb[0].mxu0
  %v1925 = vadd.f32 0.0, %v1924
  %v1926 = vpop.f32.mrb[0].mxu0
  %1927 = vdwg.mxu0
  %v1928 = vrot.slane %v1866, 7
  %v1929 = vrot.slane %v1869, 7
  %v1930 = vrot.slane %v1874, 7
  %v1931 = vrot.slane %v1877, 7
  %v1932 = vrot.slane %v1882, 7
  %v1933 = vrot.slane %v1885, 7
  %v1934 = vrot.slane %v1890, 7
  %v1935 = vrot.slane %v1893, 7
  %v1936 = vrot.slane %v1898, 7
  %v1937 = vrot.slane %v1901, 7
  %v1938 = vrot.slane %v1906, 7
  %v1939 = vrot.slane %v1909, 7
  %v1940 = vrot.slane %v1914, 7
  %v1941 = vrot.slane %v1917, 7
  %v1942 = vrot.slane %v1922, 7
  %v1943 = vrot.slane %v1925, 7
  %v1944 = vsel %vm306, %v1942, %v1943
  %v1945 = vsel %vm306, %v1941, %v1942
  %v1946 = vsel %vm306, %v1940, %v1941
  %v1947 = vsel %vm306, %v1939, %v1940
  %v1948 = vsel %vm306, %v1938, %v1939
  %v1949 = vsel %vm306, %v1937, %v1938
  %v1950 = vsel %vm306, %v1936, %v1937
  %v1951 = vsel %vm306, %v1935, %v1936
  %v1952 = vsel %vm306, %v1934, %v1935
  %v1953 = vsel %vm306, %v1933, %v1934
  %v1954 = vsel %vm306, %v1932, %v1933
  %v1955 = vsel %vm306, %v1931, %v1932
  %v1956 = vsel %vm306, %v1930, %v1931
  %v1957 = vsel %vm306, %v1929, %v1930
  %v1958 = vsel %vm306, %v1928, %v1929
  %v1959 = vsel %vm306, %v1943, %v1928
  %v1960 = vrot.slane %v1866, 1
  %v1961 = vrot.slane %v1869, 1
  %v1962 = vrot.slane %v1874, 1
  %v1963 = vrot.slane %v1877, 1
  %v1964 = vrot.slane %v1882, 1
  %v1965 = vrot.slane %v1885, 1
  %v1966 = vrot.slane %v1890, 1
  %v1967 = vrot.slane %v1893, 1
  %v1968 = vrot.slane %v1898, 1
  %v1969 = vrot.slane %v1901, 1
  %v1970 = vrot.slane %v1906, 1
  %v1971 = vrot.slane %v1909, 1
  %v1972 = vrot.slane %v1914, 1
  %v1973 = vrot.slane %v1917, 1
  %v1974 = vrot.slane %v1922, 1
  %v1975 = vrot.slane %v1925, 1
  %v1976 = vsel %vm339, %v1974, %v1975
  %v1977 = vsel %vm339, %v1973, %v1974
  %v1978 = vsel %vm339, %v1972, %v1973
  %v1979 = vsel %vm339, %v1971, %v1972
  %v1980 = vsel %vm339, %v1970, %v1971
  %v1981 = vsel %vm339, %v1969, %v1970
  %v1982 = vsel %vm339, %v1968, %v1969
  %v1983 = vsel %vm339, %v1967, %v1968
  %v1984 = vsel %vm339, %v1966, %v1967
  %v1985 = vsel %vm339, %v1965, %v1966
  %v1986 = vsel %vm339, %v1964, %v1965
  %v1987 = vsel %vm339, %v1963, %v1964
  %v1988 = vsel %vm339, %v1962, %v1963
  %v1989 = vsel %vm339, %v1961, %v1962
  %v1990 = vsel %vm339, %v1960, %v1961
  %v1991 = vsel %vm339, %v1975, %v1960
  %v1992 = vmul.f32 %v1959, %v359
  %v1993 = vmul.f32 %v1958, %v364
  %v1994 = vmul.f32 %v1957, %v369
  %v1995 = vmul.f32 %v1956, %v374
  %v1996 = vmul.f32 %v1955, %v379
  %v1997 = vmul.f32 %v1954, %v384
  %v1998 = vmul.f32 %v1953, %v389
  %v1999 = vmul.f32 %v1952, %v394
  %v2000 = vmul.f32 %v1951, %v399
  %v2001 = vmul.f32 %v1950, %v404
  %v2002 = vmul.f32 %v1949, %v409
  %v2003 = vmul.f32 %v1948, %v414
  %v2004 = vmul.f32 %v1947, %v419
  %v2005 = vmul.f32 %v1946, %v424
  %v2006 = vmul.f32 %v1945, %v429
  %v2007 = vmul.f32 %v1944, %v434
  %2024 = vrot.lane.b32.xlu0 %v1866, 120
  %v2025 = vpop.permute.xlu0 %2024
  %2026 = vrot.lane.b32.xlu0 %v1869, 120
  %v2027 = vpop.permute.xlu0 %2026
  %2028 = vrot.lane.b32.xlu0 %v1874, 120
  %v2029 = vpop.permute.xlu0 %2028
  %2030 = vrot.lane.b32.xlu0 %v1877, 120
  %v2031 = vpop.permute.xlu0 %2030
  %2032 = vrot.lane.b32.xlu0 %v1882, 120
  %v2033 = vpop.permute.xlu0 %2032
  %2034 = vrot.lane.b32.xlu0 %v1885, 120
  %v2035 = vpop.permute.xlu0 %2034
  %2036 = vrot.lane.b32.xlu0 %v1890, 120
  %v2037 = vpop.permute.xlu0 %2036
  %2038 = vrot.lane.b32.xlu0 %v1893, 120
  %v2039 = vpop.permute.xlu0 %2038
  %2040 = vrot.lane.b32.xlu0 %v1898, 120
  %v2041 = vpop.permute.xlu0 %2040
  %2042 = vrot.lane.b32.xlu0 %v1901, 120
  %v2043 = vpop.permute.xlu0 %2042
  %2044 = vrot.lane.b32.xlu0 %v1906, 120
  %v2045 = vpop.permute.xlu0 %2044
  %2046 = vrot.lane.b32.xlu0 %v1909, 120
  %v2047 = vpop.permute.xlu0 %2046
  %2048 = vrot.lane.b32.xlu0 %v1914, 120
  %v2049 = vpop.permute.xlu0 %2048
  %2050 = vrot.lane.b32.xlu0 %v1917, 120
  %v2051 = vpop.permute.xlu0 %2050
  %2052 = vrot.lane.b32.xlu0 %v1922, 120
  %v2053 = vpop.permute.xlu0 %2052
  %2054 = vrot.lane.b32.xlu0 %v1925, 120
  %v2055 = vpop.permute.xlu0 %2054
  %v2072 = vadd.f32 %v1992, %v2025
  %v2073 = vadd.f32 %v1993, %v2027
  %v2074 = vadd.f32 %v1994, %v2029
  %v2075 = vadd.f32 %v1995, %v2031
  %v2076 = vadd.f32 %v1996, %v2033
  %v2077 = vadd.f32 %v1997, %v2035
  %v2078 = vadd.f32 %v1998, %v2037
  %v2079 = vadd.f32 %v1999, %v2039
  %v2080 = vadd.f32 %v2000, %v2041
  %v2081 = vadd.f32 %v2001, %v2043
  %v2082 = vadd.f32 %v2002, %v2045
  %v2083 = vadd.f32 %v2003, %v2047
  %v2084 = vadd.f32 %v2004, %v2049
  %v2085 = vadd.f32 %v2005, %v2051
  %v2086 = vadd.f32 %v2006, %v2053
  %v2087 = vadd.f32 %v2007, %v2055
  %v2088 = vmul.f32 %v1990, %v534
  %v2089 = vmul.f32 %v1989, %v538
  %v2090 = vmul.f32 %v1988, %v542
  %v2091 = vmul.f32 %v1987, %v546
  %v2092 = vmul.f32 %v1986, %v550
  %v2093 = vmul.f32 %v1985, %v554
  %v2094 = vmul.f32 %v1984, %v558
  %v2095 = vmul.f32 %v1983, %v562
  %v2096 = vmul.f32 %v1982, %v566
  %v2097 = vmul.f32 %v1981, %v570
  %v2098 = vmul.f32 %v1980, %v574
  %v2099 = vmul.f32 %v1979, %v578
  %v2100 = vmul.f32 %v1978, %v582
  %v2101 = vmul.f32 %v1977, %v586
  %v2102 = vmul.f32 %v1976, %v590
  %v2103 = vmul.f32 %v1991, %v594
  %2120 = vrot.lane.b32.xlu0 %v2088, 112
  %v2121 = vpop.permute.xlu0 %2120
  %2122 = vrot.lane.b32.xlu0 %v2089, 112
  %v2123 = vpop.permute.xlu0 %2122
  %2124 = vrot.lane.b32.xlu0 %v2090, 112
  %v2125 = vpop.permute.xlu0 %2124
  %2126 = vrot.lane.b32.xlu0 %v2091, 112
  %v2127 = vpop.permute.xlu0 %2126
  %2128 = vrot.lane.b32.xlu0 %v2092, 112
  %v2129 = vpop.permute.xlu0 %2128
  %2130 = vrot.lane.b32.xlu0 %v2093, 112
  %v2131 = vpop.permute.xlu0 %2130
  %2132 = vrot.lane.b32.xlu0 %v2094, 112
  %v2133 = vpop.permute.xlu0 %2132
  %2134 = vrot.lane.b32.xlu0 %v2095, 112
  %v2135 = vpop.permute.xlu0 %2134
  %2136 = vrot.lane.b32.xlu0 %v2096, 112
  %v2137 = vpop.permute.xlu0 %2136
  %2138 = vrot.lane.b32.xlu0 %v2097, 112
  %v2139 = vpop.permute.xlu0 %2138
  %2140 = vrot.lane.b32.xlu0 %v2098, 112
  %v2141 = vpop.permute.xlu0 %2140
  %2142 = vrot.lane.b32.xlu0 %v2099, 112
  %v2143 = vpop.permute.xlu0 %2142
  %2144 = vrot.lane.b32.xlu0 %v2100, 112
  %v2145 = vpop.permute.xlu0 %2144
  %2146 = vrot.lane.b32.xlu0 %v2101, 112
  %v2147 = vpop.permute.xlu0 %2146
  %2148 = vrot.lane.b32.xlu0 %v2102, 112
  %v2149 = vpop.permute.xlu0 %2148
  %2150 = vrot.lane.b32.xlu0 %v2103, 112
  %v2151 = vpop.permute.xlu0 %2150
  %v2168 = vadd.f32 %v2072, %v2121
  %v2169 = vadd.f32 %v2073, %v2123
  %v2170 = vadd.f32 %v2074, %v2125
  %v2171 = vadd.f32 %v2075, %v2127
  %v2172 = vadd.f32 %v2076, %v2129
  %v2173 = vadd.f32 %v2077, %v2131
  %v2174 = vadd.f32 %v2078, %v2133
  %v2175 = vadd.f32 %v2079, %v2135
  %v2176 = vadd.f32 %v2080, %v2137
  %v2177 = vadd.f32 %v2081, %v2139
  %v2178 = vadd.f32 %v2082, %v2141
  %v2179 = vadd.f32 %v2083, %v2143
  %v2180 = vadd.f32 %v2084, %v2145
  %v2181 = vadd.f32 %v2085, %v2147
  %v2182 = vadd.f32 %v2086, %v2149
  %v2183 = vadd.f32 %v2087, %v2151
  %v2184 = vld [vmem:[%s2 + $0x2] sm:$0x1]
  %v2185 = vlaneseq
  %v2186 = vshrl.u32 %v2185, 7
  %v2187 = vsub.s32 0, %v2186
  %v2188 = vrot.slane %v2184, %v2187
  %v2189 = vadd.f32 %v2168, %v2188
  %v2190 = vadd.f32 %v2169, %v2188
  %v2191 = vadd.f32 %v2170, %v2188
  %v2192 = vadd.f32 %v2171, %v2188
  %v2193 = vadd.f32 %v2172, %v2188
  %v2194 = vadd.f32 %v2173, %v2188
  %v2195 = vadd.f32 %v2174, %v2188
  %v2196 = vadd.f32 %v2175, %v2188
  %v2197 = vadd.f32 %v2176, %v2188
  %v2198 = vadd.f32 %v2177, %v2188
  %v2199 = vadd.f32 %v2178, %v2188
  %v2200 = vadd.f32 %v2179, %v2188
  %v2201 = vadd.f32 %v2180, %v2188
  %v2202 = vadd.f32 %v2181, %v2188
  %v2203 = vadd.f32 %v2182, %v2188
  %v2204 = vadd.f32 %v2183, %v2188
  %v2205 = vsel %vm713, %v2189, 0.0
  %v2206 = vsel %vm713, %v2190, 0.0
  %v2207 = vadd.f32 %v2205, %v2206
  %v2208 = vsel %vm713, %v2191, 0.0
  %v2209 = vadd.f32 %v2207, %v2208
  %v2210 = vsel %vm713, %v2192, 0.0
  %v2211 = vadd.f32 %v2209, %v2210
  %v2212 = vsel %vm713, %v2193, 0.0
  %v2213 = vadd.f32 %v2211, %v2212
  %v2214 = vsel %vm713, %v2194, 0.0
  %v2215 = vadd.f32 %v2213, %v2214
  %v2216 = vsel %vm713, %v2195, 0.0
  %v2217 = vadd.f32 %v2215, %v2216
  %v2218 = vsel %vm713, %v2196, 0.0
  %v2219 = vadd.f32 %v2217, %v2218
  %v2220 = vsel %vm713, %v2197, 0.0
  %v2221 = vadd.f32 %v2219, %v2220
  %v2222 = vsel %vm713, %v2198, 0.0
  %v2223 = vadd.f32 %v2221, %v2222
  %v2224 = vsel %vm713, %v2199, 0.0
  %v2225 = vadd.f32 %v2223, %v2224
  %v2226 = vsel %vm713, %v2200, 0.0
  %v2227 = vadd.f32 %v2225, %v2226
  %v2228 = vsel %vm713, %v2201, 0.0
  %v2229 = vadd.f32 %v2227, %v2228
  %v2230 = vsel %vm713, %v2202, 0.0
  %v2231 = vadd.f32 %v2229, %v2230
  %v2232 = vsel %vm713, %v2203, 0.0
  %v2233 = vadd.f32 %v2231, %v2232
  %v2234 = vsel %vm713, %v2204, 0.0
  %v2235 = vadd.f32 %v2233, %v2234
  %v2236 = vrot.slane %v2235, 4
  %v2237 = vadd.f32 %v2235, %v2236
  %v2238 = vrot.slane %v2237, 2
  %v2239 = vadd.f32 %v2237, %v2238
  %v2240 = vrot.slane %v2239, 1
  %v2241 = vadd.f32 %v2239, %v2240
  %v2242 = vmul.f32 %v2241, %v751
  %v2243 = vsub.f32 %v2189, %v2242
  %v2244 = vsub.f32 %v2190, %v2242
  %v2245 = vsub.f32 %v2191, %v2242
  %v2246 = vsub.f32 %v2192, %v2242
  %v2247 = vsub.f32 %v2193, %v2242
  %v2248 = vsub.f32 %v2194, %v2242
  %v2249 = vsub.f32 %v2195, %v2242
  %v2250 = vsub.f32 %v2196, %v2242
  %v2251 = vsub.f32 %v2197, %v2242
  %v2252 = vsub.f32 %v2198, %v2242
  %v2253 = vsub.f32 %v2199, %v2242
  %v2254 = vsub.f32 %v2200, %v2242
  %v2255 = vsub.f32 %v2201, %v2242
  %v2256 = vsub.f32 %v2202, %v2242
  %v2257 = vsub.f32 %v2203, %v2242
  %v2258 = vsub.f32 %v2204, %v2242
  %v2259 = vmul.f32 %v2243, %v2243
  %v2260 = vmul.f32 %v2244, %v2244
  %v2261 = vmul.f32 %v2245, %v2245
  %v2262 = vmul.f32 %v2246, %v2246
  %v2263 = vmul.f32 %v2247, %v2247
  %v2264 = vmul.f32 %v2248, %v2248
  %v2265 = vmul.f32 %v2249, %v2249
  %v2266 = vmul.f32 %v2250, %v2250
  %v2267 = vmul.f32 %v2251, %v2251
  %v2268 = vmul.f32 %v2252, %v2252
  %v2269 = vmul.f32 %v2253, %v2253
  %v2270 = vmul.f32 %v2254, %v2254
  %v2271 = vmul.f32 %v2255, %v2255
  %v2272 = vmul.f32 %v2256, %v2256
  %v2273 = vmul.f32 %v2257, %v2257
  %v2274 = vmul.f32 %v2258, %v2258
  %v2275 = vsel %vm713, %v2259, 0.0
  %v2276 = vsel %vm713, %v2260, 0.0
  %v2277 = vadd.f32 %v2275, %v2276
  %v2278 = vsel %vm713, %v2261, 0.0
  %v2279 = vadd.f32 %v2277, %v2278
  %v2280 = vsel %vm713, %v2262, 0.0
  %v2281 = vadd.f32 %v2279, %v2280
  %v2282 = vsel %vm713, %v2263, 0.0
  %v2283 = vadd.f32 %v2281, %v2282
  %v2284 = vsel %vm713, %v2264, 0.0
  %v2285 = vadd.f32 %v2283, %v2284
  %v2286 = vsel %vm713, %v2265, 0.0
  %v2287 = vadd.f32 %v2285, %v2286
  %v2288 = vsel %vm713, %v2266, 0.0
  %v2289 = vadd.f32 %v2287, %v2288
  %v2290 = vsel %vm713, %v2267, 0.0
  %v2291 = vadd.f32 %v2289, %v2290
  %v2292 = vsel %vm713, %v2268, 0.0
  %v2293 = vadd.f32 %v2291, %v2292
  %v2294 = vsel %vm713, %v2269, 0.0
  %v2295 = vadd.f32 %v2293, %v2294
  %v2296 = vsel %vm713, %v2270, 0.0
  %v2297 = vadd.f32 %v2295, %v2296
  %v2298 = vsel %vm713, %v2271, 0.0
  %v2299 = vadd.f32 %v2297, %v2298
  %v2300 = vsel %vm713, %v2272, 0.0
  %v2301 = vadd.f32 %v2299, %v2300
  %v2302 = vsel %vm713, %v2273, 0.0
  %v2303 = vadd.f32 %v2301, %v2302
  %v2304 = vsel %vm713, %v2274, 0.0
  %v2305 = vadd.f32 %v2303, %v2304
  %v2306 = vrot.slane %v2305, 4
  %v2307 = vadd.f32 %v2305, %v2306
  %v2308 = vrot.slane %v2307, 2
  %v2309 = vadd.f32 %v2307, %v2308
  %v2310 = vrot.slane %v2309, 1
  %v2311 = vadd.f32 %v2309, %v2310
  %v2312 = vmul.f32 %v2311, %v751
  %v2313 = vld [vmem:[%s2 + $0x6] sm:$0x1]
  %v2314 = vadd.f32 %v2312, 1e-05
  %v2315 = vrsqrt.pop %v2314
  %v2316 = vmul.f32 %v2313, %v2315
  %v2317 = vlaneseq
  %v2318 = vshrl.u32 %v2317, 7
  %v2319 = vsub.s32 0, %v2318
  %v2320 = vrot.slane %v2316, %v2319
  %v2321 = vmul.f32 %v2243, %v2320
  %v2322 = vmul.f32 %v2244, %v2320
  %v2323 = vmul.f32 %v2245, %v2320
  %v2324 = vmul.f32 %v2246, %v2320
  %v2325 = vmul.f32 %v2247, %v2320
  %v2326 = vmul.f32 %v2248, %v2320
  %v2327 = vmul.f32 %v2249, %v2320
  %v2328 = vmul.f32 %v2250, %v2320
  %v2329 = vmul.f32 %v2251, %v2320
  %v2330 = vmul.f32 %v2252, %v2320
  %v2331 = vmul.f32 %v2253, %v2320
  %v2332 = vmul.f32 %v2254, %v2320
  %v2333 = vmul.f32 %v2255, %v2320
  %v2334 = vmul.f32 %v2256, %v2320
  %v2335 = vmul.f32 %v2257, %v2320
  %v2336 = vmul.f32 %v2258, %v2320
  %v2337 = vld [vmem:[%s2 + $0xa] sm:$0x1]
  %v2338 = vlaneseq
  %v2339 = vshrl.u32 %v2338, 7
  %v2340 = vsub.s32 0, %v2339
  %v2341 = vrot.slane %v2337, %v2340
  %v2342 = vadd.f32 %v2321, %v2341
  %v2343 = vadd.f32 %v2322, %v2341
  %v2344 = vadd.f32 %v2323, %v2341
  %v2345 = vadd.f32 %v2324, %v2341
  %v2346 = vadd.f32 %v2325, %v2341
  %v2347 = vadd.f32 %v2326, %v2341
  %v2348 = vadd.f32 %v2327, %v2341
  %v2349 = vadd.f32 %v2328, %v2341
  %v2350 = vadd.f32 %v2329, %v2341
  %v2351 = vadd.f32 %v2330, %v2341
  %v2352 = vadd.f32 %v2331, %v2341
  %v2353 = vadd.f32 %v2332, %v2341
  %v2354 = vadd.f32 %v2333, %v2341
  %v2355 = vadd.f32 %v2334, %v2341
  %v2356 = vadd.f32 %v2335, %v2341
  %v2357 = vadd.f32 %v2336, %v2341
  %vm2358 = vcmp.gt.f32.partialorder %v2342, 0.0
  %vm2359 = vcmp.gt.f32.partialorder %v2343, 0.0
  %vm2360 = vcmp.gt.f32.partialorder %v2344, 0.0
  %vm2361 = vcmp.gt.f32.partialorder %v2345, 0.0
  %vm2362 = vcmp.gt.f32.partialorder %v2346, 0.0
  %vm2363 = vcmp.gt.f32.partialorder %v2347, 0.0
  %vm2364 = vcmp.gt.f32.partialorder %v2348, 0.0
  %vm2365 = vcmp.gt.f32.partialorder %v2349, 0.0
  %vm2366 = vcmp.gt.f32.partialorder %v2350, 0.0
  %vm2367 = vcmp.gt.f32.partialorder %v2351, 0.0
  %vm2368 = vcmp.gt.f32.partialorder %v2352, 0.0
  %vm2369 = vcmp.gt.f32.partialorder %v2353, 0.0
  %vm2370 = vcmp.gt.f32.partialorder %v2354, 0.0
  %vm2371 = vcmp.gt.f32.partialorder %v2355, 0.0
  %vm2372 = vcmp.gt.f32.partialorder %v2356, 0.0
  %vm2373 = vcmp.gt.f32.partialorder %v2357, 0.0
  %v2374 = vmin.f32 %v2342, 0.0
  %v2375 = vmin.f32 %v2343, 0.0
  %v2376 = vmin.f32 %v2344, 0.0
  %v2377 = vmin.f32 %v2345, 0.0
  %v2378 = vmin.f32 %v2346, 0.0
  %v2379 = vmin.f32 %v2347, 0.0
  %v2380 = vmin.f32 %v2348, 0.0
  %v2381 = vmin.f32 %v2349, 0.0
  %v2382 = vmin.f32 %v2350, 0.0
  %v2383 = vmin.f32 %v2351, 0.0
  %v2384 = vmin.f32 %v2352, 0.0
  %v2385 = vmin.f32 %v2353, 0.0
  %v2386 = vmin.f32 %v2354, 0.0
  %v2387 = vmin.f32 %v2355, 0.0
  %v2388 = vmin.f32 %v2356, 0.0
  %v2389 = vmin.f32 %v2357, 0.0
  %v2390 = vmul.f32 %v2374, 1.442695
  %v2391 = vpow.pop %v2390
  %v2392 = vmul.f32 %v2375, 1.442695
  %v2393 = vpow.pop %v2392
  %v2394 = vmul.f32 %v2376, 1.442695
  %v2395 = vpow.pop %v2394
  %v2396 = vmul.f32 %v2377, 1.442695
  %v2397 = vpow.pop %v2396
  %v2398 = vmul.f32 %v2378, 1.442695
  %v2399 = vpow.pop %v2398
  %v2400 = vmul.f32 %v2379, 1.442695
  %v2401 = vpow.pop %v2400
  %v2402 = vmul.f32 %v2380, 1.442695
  %v2403 = vpow.pop %v2402
  %v2404 = vmul.f32 %v2381, 1.442695
  %v2405 = vpow.pop %v2404
  %v2406 = vmul.f32 %v2382, 1.442695
  %v2407 = vpow.pop %v2406
  %v2408 = vmul.f32 %v2383, 1.442695
  %v2409 = vpow.pop %v2408
  %v2410 = vmul.f32 %v2384, 1.442695
  %v2411 = vpow.pop %v2410
  %v2412 = vmul.f32 %v2385, 1.442695
  %v2413 = vpow.pop %v2412
  %v2414 = vmul.f32 %v2386, 1.442695
  %v2415 = vpow.pop %v2414
  %v2416 = vmul.f32 %v2387, 1.442695
  %v2417 = vpow.pop %v2416
  %v2418 = vmul.f32 %v2388, 1.442695
  %v2419 = vpow.pop %v2418
  %v2420 = vmul.f32 %v2389, 1.442695
  %v2421 = vpow.pop %v2420
  %v2422 = vsub.f32 %v2391, 1.0
  %v2423 = vsub.f32 %v2393, 1.0
  %v2424 = vsub.f32 %v2395, 1.0
  %v2425 = vsub.f32 %v2397, 1.0
  %v2426 = vsub.f32 %v2399, 1.0
  %v2427 = vsub.f32 %v2401, 1.0
  %v2428 = vsub.f32 %v2403, 1.0
  %v2429 = vsub.f32 %v2405, 1.0
  %v2430 = vsub.f32 %v2407, 1.0
  %v2431 = vsub.f32 %v2409, 1.0
  %v2432 = vsub.f32 %v2411, 1.0
  %v2433 = vsub.f32 %v2413, 1.0
  %v2434 = vsub.f32 %v2415, 1.0
  %v2435 = vsub.f32 %v2417, 1.0
  %v2436 = vsub.f32 %v2419, 1.0
  %v2437 = vsub.f32 %v2421, 1.0
  %v2438 = vsel %vm2358, %v2342, %v2422
  %v2439 = vsel %vm2359, %v2343, %v2423
  %v2440 = vsel %vm2360, %v2344, %v2424
  %v2441 = vsel %vm2361, %v2345, %v2425
  %v2442 = vsel %vm2362, %v2346, %v2426
  %v2443 = vsel %vm2363, %v2347, %v2427
  %v2444 = vsel %vm2364, %v2348, %v2428
  %v2445 = vsel %vm2365, %v2349, %v2429
  %v2446 = vsel %vm2366, %v2350, %v2430
  %v2447 = vsel %vm2367, %v2351, %v2431
  %v2448 = vsel %vm2368, %v2352, %v2432
  %v2449 = vsel %vm2369, %v2353, %v2433
  %v2450 = vsel %vm2370, %v2354, %v2434
  %v2451 = vsel %vm2371, %v2355, %v2435
  %v2452 = vsel %vm2372, %v2356, %v2436
  %v2453 = vsel %vm2373, %v2357, %v2437
  %v2454 = vpack.c.bf16 %v2439, %v2438
  %v2455 = vpack.c.bf16 %v2441, %v2440
  %v2456 = vpack.c.bf16 %v2443, %v2442
  %v2457 = vpack.c.bf16 %v2445, %v2444
  %v2458 = vpack.c.bf16 %v2447, %v2446
  %v2459 = vpack.c.bf16 %v2449, %v2448
  %v2460 = vpack.c.bf16 %v2451, %v2450
  %v2461 = vpack.c.bf16 %v2453, %v2452
  %2470 = vrot.lane.b32.xlu0 %v2454, 20
  %v2471 = vpop.permute.xlu0 %2470
  %2472 = vrot.lane.b32.xlu0 %v2455, 20
  %v2473 = vpop.permute.xlu0 %2472
  %2474 = vrot.lane.b32.xlu0 %v2456, 20
  %v2475 = vpop.permute.xlu0 %2474
  %2476 = vrot.lane.b32.xlu0 %v2457, 20
  %v2477 = vpop.permute.xlu0 %2476
  %2478 = vrot.lane.b32.xlu0 %v2458, 20
  %v2479 = vpop.permute.xlu0 %2478
  %2480 = vrot.lane.b32.xlu0 %v2459, 20
  %v2481 = vpop.permute.xlu0 %2480
  %2482 = vrot.lane.b32.xlu0 %v2460, 20
  %v2483 = vpop.permute.xlu0 %2482
  %2484 = vrot.lane.b32.xlu0 %v2461, 20
  %v2485 = vpop.permute.xlu0 %2484
  %vm2494 = vcmask 228512
  %2495 = vst.msk [vmem:[#allocation2] sm:$0xff] %vm2494, %v2471
  %2496 = vst.msk [vmem:[#allocation2 + $0x8] sm:$0xff] %vm2494, %v2473
  %2497 = vst.msk [vmem:[#allocation2 + $0x10] sm:$0xff] %vm2494, %v2475
  %2498 = vst.msk [vmem:[#allocation2 + $0x18] sm:$0xff] %vm2494, %v2477
  %2499 = vst.msk [vmem:[#allocation2 + $0x20] sm:$0xff] %vm2494, %v2479
  %2500 = vst.msk [vmem:[#allocation2 + $0x28] sm:$0xff] %vm2494, %v2481
  %2501 = vst.msk [vmem:[#allocation2 + $0x30] sm:$0xff] %vm2494, %v2483
  %2502 = vst.msk [vmem:[#allocation2 + $0x38] sm:$0xff] %vm2494, %v2485
  %v2503 = vld [vmem:[#allocation2] sm:$0xff]
  %v2504 = vld [vmem:[#allocation2 + $0x8] sm:$0xff]
  %v2505 = vld [vmem:[#allocation2 + $0x10] sm:$0xff]
  %v2506 = vld [vmem:[#allocation2 + $0x18] sm:$0xff]
  %v2507 = vld [vmem:[#allocation2 + $0x20] sm:$0xff]
  %v2508 = vld [vmem:[#allocation2 + $0x28] sm:$0xff]
  %v2509 = vld [vmem:[#allocation2 + $0x30] sm:$0xff]
  %v2510 = vld [vmem:[#allocation2 + $0x38] sm:$0xff]
  %s2511 = scalar_lea.vmem %s1, 192
  %v2512 = vld [vmem:[%s2511] sm:$0xf]
  %v2513 = vld [vmem:[%s2511 + $0x4] sm:$0xf]
  %v2514 = vld [vmem:[%s2511 + $0x8] sm:$0xf]
  %v2515 = vld [vmem:[%s2511 + $0xc] sm:$0xf]
  %v2516 = vld [vmem:[%s2511 + $0x10] sm:$0xf]
  %v2517 = vld [vmem:[%s2511 + $0x14] sm:$0xf]
  %v2518 = vld [vmem:[%s2511 + $0x18] sm:$0xf]
  %v2519 = vld [vmem:[%s2511 + $0x1c] sm:$0xf]
  %v2520 = vld [vmem:[%s2511 + $0x20] sm:$0xf]
  %v2521 = vld [vmem:[%s2511 + $0x24] sm:$0xf]
  %v2522 = vld [vmem:[%s2511 + $0x28] sm:$0xf]
  %v2523 = vld [vmem:[%s2511 + $0x2c] sm:$0xf]
  %v2524 = vld [vmem:[%s2511 + $0x30] sm:$0xf]
  %v2525 = vld [vmem:[%s2511 + $0x34] sm:$0xf]
  %v2526 = vld [vmem:[%s2511 + $0x38] sm:$0xf]
  %v2527 = vld [vmem:[%s2511 + $0x3c] sm:$0xf]
  %v2544 = vunpack.c.l.b16 %v2512
  %v2545 = vunpack.c.l.b16 %v2513
  %v2546 = vunpack.c.l.b16 %v2514
  %v2547 = vunpack.c.l.b16 %v2515
  %v2548 = vunpack.c.l.b16 %v2516
  %v2549 = vunpack.c.l.b16 %v2517
  %v2550 = vunpack.c.l.b16 %v2518
  %v2551 = vunpack.c.l.b16 %v2519
  %v2552 = vunpack.c.l.b16 %v2520
  %v2553 = vunpack.c.l.b16 %v2521
  %v2554 = vunpack.c.l.b16 %v2522
  %v2555 = vunpack.c.l.b16 %v2523
  %v2556 = vunpack.c.l.b16 %v2524
  %v2557 = vunpack.c.l.b16 %v2525
  %v2558 = vunpack.c.l.b16 %v2526
  %v2559 = vunpack.c.l.b16 %v2527
  %v2560 = vpack.c.b16 %v2545, %v2544
  %v2561 = vpack.c.b16 %v2547, %v2546
  %v2562 = vpack.c.b16 %v2549, %v2548
  %v2563 = vpack.c.b16 %v2551, %v2550
  %v2564 = vpack.c.b16 %v2553, %v2552
  %v2565 = vpack.c.b16 %v2555, %v2554
  %v2566 = vpack.c.b16 %v2557, %v2556
  %v2567 = vpack.c.b16 %v2559, %v2558
  %2576 = vmatprep.subr.bf16.mxu0 0
  %2577 = vmatpush1.bf16.msra.mxu0 %v2560
  %2578 = vmatprep.subr.bf16.mxu0 0
  %2579 = vmatpush1.bf16.msra.mxu0 %v2561
  %2580 = vmatprep.subr.bf16.mxu0 0
  %2581 = vmatpush1.bf16.msra.mxu0 %v2562
  %2582 = vmatprep.subr.bf16.mxu0 0
  %2583 = vmatpush1.bf16.msra.mxu0 %v2563
  %2584 = vmatprep.subr.bf16.mxu0 0
  %2585 = vmatpush1.bf16.msra.mxu0 %v2564
  %2586 = vmatprep.subr.bf16.mxu0 0
  %2587 = vmatpush1.bf16.msra.mxu0 %v2565
  %2588 = vmatprep.subr.bf16.mxu0 0
  %2589 = vmatpush1.bf16.msra.mxu0 %v2566
  %2590 = vmatprep.subr.bf16.mxu0 0
  %2591 = vmatpush1.bf16.msra.mxu0 %v2567
  %2592 = vmatprep.subr.bf16.mxu0 0
  %2593 = vmatpush1.bf16.msra.mxu0 0
  %2594 = vmatprep.subr.bf16.mxu0 0
  %2595 = vmatpush1.bf16.msra.mxu0 0
  %2596 = vmatprep.subr.bf16.mxu0 0
  %2597 = vmatpush1.bf16.msra.mxu0 0
  %2598 = vmatprep.subr.bf16.mxu0 0
  %2599 = vmatpush1.bf16.msra.mxu0 0
  %2600 = vmatprep.subr.bf16.mxu0 0
  %2601 = vmatpush1.bf16.msra.mxu0 0
  %2602 = vmatprep.subr.bf16.mxu0 0
  %2603 = vmatpush1.bf16.msra.mxu0 0
  %2604 = vmatprep.subr.bf16.mxu0 0
  %2605 = vmatpush1.bf16.msra.mxu0 0
  %2606 = vmatprep.subr.bf16.mxu0 0
  %2607 = vmatpush1.bf16.msra.mxu0 0
  %2608 = vmatprep.mubr.bf16.mxu0 0
  %2609 = vmatmul.mubr.bf16.gmra.mrb[0].mxu0 %v2503
  %v2610 = vpop.f32.mrb[0].mxu0
  %v2611 = vadd.f32 0.0, %v2610
  %v2612 = vpop.f32.mrb[0].mxu0
  %v2613 = vpop.f32.mrb[0].mxu0
  %v2614 = vadd.f32 0.0, %v2613
  %v2615 = vpop.f32.mrb[0].mxu0
  %2616 = vmatprep.mubr.bf16.mxu0 0
  %2617 = vmatmul.mubr.bf16.gmra.mrb[0].mxu0 %v2504
  %v2618 = vpop.f32.mrb[0].mxu0
  %v2619 = vadd.f32 0.0, %v2618
  %v2620 = vpop.f32.mrb[0].mxu0
  %v2621 = vpop.f32.mrb[0].mxu0
  %v2622 = vadd.f32 0.0, %v2621
  %v2623 = vpop.f32.mrb[0].mxu0
  %2624 = vmatprep.mubr.bf16.mxu0 0
  %2625 = vmatmul.mubr.bf16.gmra.mrb[0].mxu0 %v2505
  %v2626 = vpop.f32.mrb[0].mxu0
  %v2627 = vadd.f32 0.0, %v2626
  %v2628 = vpop.f32.mrb[0].mxu0
  %v2629 = vpop.f32.mrb[0].mxu0
  %v2630 = vadd.f32 0.0, %v2629
  %v2631 = vpop.f32.mrb[0].mxu0
  %2632 = vmatprep.mubr.bf16.mxu0 0
  %2633 = vmatmul.mubr.bf16.gmra.mrb[0].mxu0 %v2506
  %v2634 = vpop.f32.mrb[0].mxu0
  %v2635 = vadd.f32 0.0, %v2634
  %v2636 = vpop.f32.mrb[0].mxu0
  %v2637 = vpop.f32.mrb[0].mxu0
  %v2638 = vadd.f32 0.0, %v2637
  %v2639 = vpop.f32.mrb[0].mxu0
  %2640 = vmatprep.mubr.bf16.mxu0 0
  %2641 = vmatmul.mubr.bf16.gmra.mrb[0].mxu0 %v2507
  %v2642 = vpop.f32.mrb[0].mxu0
  %v2643 = vadd.f32 0.0, %v2642
  %v2644 = vpop.f32.mrb[0].mxu0
  %v2645 = vpop.f32.mrb[0].mxu0
  %v2646 = vadd.f32 0.0, %v2645
  %v2647 = vpop.f32.mrb[0].mxu0
  %2648 = vmatprep.mubr.bf16.mxu0 0
  %2649 = vmatmul.mubr.bf16.gmra.mrb[0].mxu0 %v2508
  %v2650 = vpop.f32.mrb[0].mxu0
  %v2651 = vadd.f32 0.0, %v2650
  %v2652 = vpop.f32.mrb[0].mxu0
  %v2653 = vpop.f32.mrb[0].mxu0
  %v2654 = vadd.f32 0.0, %v2653
  %v2655 = vpop.f32.mrb[0].mxu0
  %2656 = vmatprep.mubr.bf16.mxu0 0
  %2657 = vmatmul.mubr.bf16.gmra.mrb[0].mxu0 %v2509
  %v2658 = vpop.f32.mrb[0].mxu0
  %v2659 = vadd.f32 0.0, %v2658
  %v2660 = vpop.f32.mrb[0].mxu0
  %v2661 = vpop.f32.mrb[0].mxu0
  %v2662 = vadd.f32 0.0, %v2661
  %v2663 = vpop.f32.mrb[0].mxu0
  %2664 = vmatprep.mubr.bf16.mxu0 0
  %2665 = vmatmul.mubr.bf16.gmra.mrb[0].mxu0 %v2510
  %v2666 = vpop.f32.mrb[0].mxu0
  %v2667 = vadd.f32 0.0, %v2666
  %v2668 = vpop.f32.mrb[0].mxu0
  %v2669 = vpop.f32.mrb[0].mxu0
  %v2670 = vadd.f32 0.0, %v2669
  %v2671 = vpop.f32.mrb[0].mxu0
  %2672 = vdwg.mxu0
  %v2673 = vrot.slane %v2611, 7
  %v2674 = vrot.slane %v2614, 7
  %v2675 = vrot.slane %v2619, 7
  %v2676 = vrot.slane %v2622, 7
  %v2677 = vrot.slane %v2627, 7
  %v2678 = vrot.slane %v2630, 7
  %v2679 = vrot.slane %v2635, 7
  %v2680 = vrot.slane %v2638, 7
  %v2681 = vrot.slane %v2643, 7
  %v2682 = vrot.slane %v2646, 7
  %v2683 = vrot.slane %v2651, 7
  %v2684 = vrot.slane %v2654, 7
  %v2685 = vrot.slane %v2659, 7
  %v2686 = vrot.slane %v2662, 7
  %v2687 = vrot.slane %v2667, 7
  %v2688 = vrot.slane %v2670, 7
  %v2689 = vsel %vm306, %v2687, %v2688
  %v2690 = vsel %vm306, %v2686, %v2687
  %v2691 = vsel %vm306, %v2685, %v2686
  %v2692 = vsel %vm306, %v2684, %v2685
  %v2693 = vsel %vm306, %v2683, %v2684
  %v2694 = vsel %vm306, %v2682, %v2683
  %v2695 = vsel %vm306, %v2681, %v2682
  %v2696 = vsel %vm306, %v2680, %v2681
  %v2697 = vsel %vm306, %v2679, %v2680
  %v2698 = vsel %vm306, %v2678, %v2679
  %v2699 = vsel %vm306, %v2677, %v2678
  %v2700 = vsel %vm306, %v2676, %v2677
  %v2701 = vsel %vm306, %v2675, %v2676
  %v2702 = vsel %vm306, %v2674, %v2675
  %v2703 = vsel %vm306, %v2673, %v2674
  %v2704 = vsel %vm306, %v2688, %v2673
  %v2705 = vrot.slane %v2611, 1
  %v2706 = vrot.slane %v2614, 1
  %v2707 = vrot.slane %v2619, 1
  %v2708 = vrot.slane %v2622, 1
  %v2709 = vrot.slane %v2627, 1
  %v2710 = vrot.slane %v2630, 1
  %v2711 = vrot.slane %v2635, 1
  %v2712 = vrot.slane %v2638, 1
  %v2713 = vrot.slane %v2643, 1
  %v2714 = vrot.slane %v2646, 1
  %v2715 = vrot.slane %v2651, 1
  %v2716 = vrot.slane %v2654, 1
  %v2717 = vrot.slane %v2659, 1
  %v2718 = vrot.slane %v2662, 1
  %v2719 = vrot.slane %v2667, 1
  %v2720 = vrot.slane %v2670, 1
  %v2721 = vsel %vm339, %v2719, %v2720
  %v2722 = vsel %vm339, %v2718, %v2719
  %v2723 = vsel %vm339, %v2717, %v2718
  %v2724 = vsel %vm339, %v2716, %v2717
  %v2725 = vsel %vm339, %v2715, %v2716
  %v2726 = vsel %vm339, %v2714, %v2715
  %v2727 = vsel %vm339, %v2713, %v2714
  %v2728 = vsel %vm339, %v2712, %v2713
  %v2729 = vsel %vm339, %v2711, %v2712
  %v2730 = vsel %vm339, %v2710, %v2711
  %v2731 = vsel %vm339, %v2709, %v2710
  %v2732 = vsel %vm339, %v2708, %v2709
  %v2733 = vsel %vm339, %v2707, %v2708
  %v2734 = vsel %vm339, %v2706, %v2707
  %v2735 = vsel %vm339, %v2705, %v2706
  %v2736 = vsel %vm339, %v2720, %v2705
  %v2737 = vmul.f32 %v2704, %v359
  %v2738 = vmul.f32 %v2703, %v364
  %v2739 = vmul.f32 %v2702, %v369
  %v2740 = vmul.f32 %v2701, %v374
  %v2741 = vmul.f32 %v2700, %v379
  %v2742 = vmul.f32 %v2699, %v384
  %v2743 = vmul.f32 %v2698, %v389
  %v2744 = vmul.f32 %v2697, %v394
  %v2745 = vmul.f32 %v2696, %v399
  %v2746 = vmul.f32 %v2695, %v404
  %v2747 = vmul.f32 %v2694, %v409
  %v2748 = vmul.f32 %v2693, %v414
  %v2749 = vmul.f32 %v2692, %v419
  %v2750 = vmul.f32 %v2691, %v424
  %v2751 = vmul.f32 %v2690, %v429
  %v2752 = vmul.f32 %v2689, %v434
  %2769 = vrot.lane.b32.xlu0 %v2611, 120
  %v2770 = vpop.permute.xlu0 %2769
  %2771 = vrot.lane.b32.xlu0 %v2614, 120
  %v2772 = vpop.permute.xlu0 %2771
  %2773 = vrot.lane.b32.xlu0 %v2619, 120
  %v2774 = vpop.permute.xlu0 %2773
  %2775 = vrot.lane.b32.xlu0 %v2622, 120
  %v2776 = vpop.permute.xlu0 %2775
  %2777 = vrot.lane.b32.xlu0 %v2627, 120
  %v2778 = vpop.permute.xlu0 %2777
  %2779 = vrot.lane.b32.xlu0 %v2630, 120
  %v2780 = vpop.permute.xlu0 %2779
  %2781 = vrot.lane.b32.xlu0 %v2635, 120
  %v2782 = vpop.permute.xlu0 %2781
  %2783 = vrot.lane.b32.xlu0 %v2638, 120
  %v2784 = vpop.permute.xlu0 %2783
  %2785 = vrot.lane.b32.xlu0 %v2643, 120
  %v2786 = vpop.permute.xlu0 %2785
  %2787 = vrot.lane.b32.xlu0 %v2646, 120
  %v2788 = vpop.permute.xlu0 %2787
  %2789 = vrot.lane.b32.xlu0 %v2651, 120
  %v2790 = vpop.permute.xlu0 %2789
  %2791 = vrot.lane.b32.xlu0 %v2654, 120
  %v2792 = vpop.permute.xlu0 %2791
  %2793 = vrot.lane.b32.xlu0 %v2659, 120
  %v2794 = vpop.permute.xlu0 %2793
  %2795 = vrot.lane.b32.xlu0 %v2662, 120
  %v2796 = vpop.permute.xlu0 %2795
  %2797 = vrot.lane.b32.xlu0 %v2667, 120
  %v2798 = vpop.permute.xlu0 %2797
  %2799 = vrot.lane.b32.xlu0 %v2670, 120
  %v2800 = vpop.permute.xlu0 %2799
  %v2817 = vadd.f32 %v2737, %v2770
  %v2818 = vadd.f32 %v2738, %v2772
  %v2819 = vadd.f32 %v2739, %v2774
  %v2820 = vadd.f32 %v2740, %v2776
  %v2821 = vadd.f32 %v2741, %v2778
  %v2822 = vadd.f32 %v2742, %v2780
  %v2823 = vadd.f32 %v2743, %v2782
  %v2824 = vadd.f32 %v2744, %v2784
  %v2825 = vadd.f32 %v2745, %v2786
  %v2826 = vadd.f32 %v2746, %v2788
  %v2827 = vadd.f32 %v2747, %v2790
  %v2828 = vadd.f32 %v2748, %v2792
  %v2829 = vadd.f32 %v2749, %v2794
  %v2830 = vadd.f32 %v2750, %v2796
  %v2831 = vadd.f32 %v2751, %v2798
  %v2832 = vadd.f32 %v2752, %v2800
  %v2833 = vmul.f32 %v2735, %v534
  %v2834 = vmul.f32 %v2734, %v538
  %v2835 = vmul.f32 %v2733, %v542
  %v2836 = vmul.f32 %v2732, %v546
  %v2837 = vmul.f32 %v2731, %v550
  %v2838 = vmul.f32 %v2730, %v554
  %v2839 = vmul.f32 %v2729, %v558
  %v2840 = vmul.f32 %v2728, %v562
  %v2841 = vmul.f32 %v2727, %v566
  %v2842 = vmul.f32 %v2726, %v570
  %v2843 = vmul.f32 %v2725, %v574
  %v2844 = vmul.f32 %v2724, %v578
  %v2845 = vmul.f32 %v2723, %v582
  %v2846 = vmul.f32 %v2722, %v586
  %v2847 = vmul.f32 %v2721, %v590
  %v2848 = vmul.f32 %v2736, %v594
  %2865 = vrot.lane.b32.xlu0 %v2833, 112
  %v2866 = vpop.permute.xlu0 %2865
  %2867 = vrot.lane.b32.xlu0 %v2834, 112
  %v2868 = vpop.permute.xlu0 %2867
  %2869 = vrot.lane.b32.xlu0 %v2835, 112
  %v2870 = vpop.permute.xlu0 %2869
  %2871 = vrot.lane.b32.xlu0 %v2836, 112
  %v2872 = vpop.permute.xlu0 %2871
  %2873 = vrot.lane.b32.xlu0 %v2837, 112
  %v2874 = vpop.permute.xlu0 %2873
  %2875 = vrot.lane.b32.xlu0 %v2838, 112
  %v2876 = vpop.permute.xlu0 %2875
  %2877 = vrot.lane.b32.xlu0 %v2839, 112
  %v2878 = vpop.permute.xlu0 %2877
  %2879 = vrot.lane.b32.xlu0 %v2840, 112
  %v2880 = vpop.permute.xlu0 %2879
  %2881 = vrot.lane.b32.xlu0 %v2841, 112
  %v2882 = vpop.permute.xlu0 %2881
  %2883 = vrot.lane.b32.xlu0 %v2842, 112
  %v2884 = vpop.permute.xlu0 %2883
  %2885 = vrot.lane.b32.xlu0 %v2843, 112
  %v2886 = vpop.permute.xlu0 %2885
  %2887 = vrot.lane.b32.xlu0 %v2844, 112
  %v2888 = vpop.permute.xlu0 %2887
  %2889 = vrot.lane.b32.xlu0 %v2845, 112
  %v2890 = vpop.permute.xlu0 %2889
  %2891 = vrot.lane.b32.xlu0 %v2846, 112
  %v2892 = vpop.permute.xlu0 %2891
  %2893 = vrot.lane.b32.xlu0 %v2847, 112
  %v2894 = vpop.permute.xlu0 %2893
  %2895 = vrot.lane.b32.xlu0 %v2848, 112
  %v2896 = vpop.permute.xlu0 %2895
  %v2913 = vadd.f32 %v2817, %v2866
  %v2914 = vadd.f32 %v2818, %v2868
  %v2915 = vadd.f32 %v2819, %v2870
  %v2916 = vadd.f32 %v2820, %v2872
  %v2917 = vadd.f32 %v2821, %v2874
  %v2918 = vadd.f32 %v2822, %v2876
  %v2919 = vadd.f32 %v2823, %v2878
  %v2920 = vadd.f32 %v2824, %v2880
  %v2921 = vadd.f32 %v2825, %v2882
  %v2922 = vadd.f32 %v2826, %v2884
  %v2923 = vadd.f32 %v2827, %v2886
  %v2924 = vadd.f32 %v2828, %v2888
  %v2925 = vadd.f32 %v2829, %v2890
  %v2926 = vadd.f32 %v2830, %v2892
  %v2927 = vadd.f32 %v2831, %v2894
  %v2928 = vadd.f32 %v2832, %v2896
  %v2929 = vld [vmem:[%s2 + $0x3] sm:$0x1]
  %v2930 = vlaneseq
  %v2931 = vshrl.u32 %v2930, 7
  %v2932 = vsub.s32 0, %v2931
  %v2933 = vrot.slane %v2929, %v2932
  %v2934 = vadd.f32 %v2913, %v2933
  %v2935 = vadd.f32 %v2914, %v2933
  %v2936 = vadd.f32 %v2915, %v2933
  %v2937 = vadd.f32 %v2916, %v2933
  %v2938 = vadd.f32 %v2917, %v2933
  %v2939 = vadd.f32 %v2918, %v2933
  %v2940 = vadd.f32 %v2919, %v2933
  %v2941 = vadd.f32 %v2920, %v2933
  %v2942 = vadd.f32 %v2921, %v2933
  %v2943 = vadd.f32 %v2922, %v2933
  %v2944 = vadd.f32 %v2923, %v2933
  %v2945 = vadd.f32 %v2924, %v2933
  %v2946 = vadd.f32 %v2925, %v2933
  %v2947 = vadd.f32 %v2926, %v2933
  %v2948 = vadd.f32 %v2927, %v2933
  %v2949 = vadd.f32 %v2928, %v2933
  %v2950 = vsel %vm713, %v2934, 0.0
  %v2951 = vsel %vm713, %v2935, 0.0
  %v2952 = vadd.f32 %v2950, %v2951
  %v2953 = vsel %vm713, %v2936, 0.0
  %v2954 = vadd.f32 %v2952, %v2953
  %v2955 = vsel %vm713, %v2937, 0.0
  %v2956 = vadd.f32 %v2954, %v2955
  %v2957 = vsel %vm713, %v2938, 0.0
  %v2958 = vadd.f32 %v2956, %v2957
  %v2959 = vsel %vm713, %v2939, 0.0
  %v2960 = vadd.f32 %v2958, %v2959
  %v2961 = vsel %vm713, %v2940, 0.0
  %v2962 = vadd.f32 %v2960, %v2961
  %v2963 = vsel %vm713, %v2941, 0.0
  %v2964 = vadd.f32 %v2962, %v2963
  %v2965 = vsel %vm713, %v2942, 0.0
  %v2966 = vadd.f32 %v2964, %v2965
  %v2967 = vsel %vm713, %v2943, 0.0
  %v2968 = vadd.f32 %v2966, %v2967
  %v2969 = vsel %vm713, %v2944, 0.0
  %v2970 = vadd.f32 %v2968, %v2969
  %v2971 = vsel %vm713, %v2945, 0.0
  %v2972 = vadd.f32 %v2970, %v2971
  %v2973 = vsel %vm713, %v2946, 0.0
  %v2974 = vadd.f32 %v2972, %v2973
  %v2975 = vsel %vm713, %v2947, 0.0
  %v2976 = vadd.f32 %v2974, %v2975
  %v2977 = vsel %vm713, %v2948, 0.0
  %v2978 = vadd.f32 %v2976, %v2977
  %v2979 = vsel %vm713, %v2949, 0.0
  %v2980 = vadd.f32 %v2978, %v2979
  %v2981 = vrot.slane %v2980, 4
  %v2982 = vadd.f32 %v2980, %v2981
  %v2983 = vrot.slane %v2982, 2
  %v2984 = vadd.f32 %v2982, %v2983
  %v2985 = vrot.slane %v2984, 1
  %v2986 = vadd.f32 %v2984, %v2985
  %v2987 = vmul.f32 %v2986, %v751
  %v2988 = vsub.f32 %v2934, %v2987
  %v2989 = vsub.f32 %v2935, %v2987
  %v2990 = vsub.f32 %v2936, %v2987
  %v2991 = vsub.f32 %v2937, %v2987
  %v2992 = vsub.f32 %v2938, %v2987
  %v2993 = vsub.f32 %v2939, %v2987
  %v2994 = vsub.f32 %v2940, %v2987
  %v2995 = vsub.f32 %v2941, %v2987
  %v2996 = vsub.f32 %v2942, %v2987
  %v2997 = vsub.f32 %v2943, %v2987
  %v2998 = vsub.f32 %v2944, %v2987
  %v2999 = vsub.f32 %v2945, %v2987
  %v3000 = vsub.f32 %v2946, %v2987
  %v3001 = vsub.f32 %v2947, %v2987
  %v3002 = vsub.f32 %v2948, %v2987
  %v3003 = vsub.f32 %v2949, %v2987
  %v3004 = vmul.f32 %v2988, %v2988
  %v3005 = vmul.f32 %v2989, %v2989
  %v3006 = vmul.f32 %v2990, %v2990
  %v3007 = vmul.f32 %v2991, %v2991
  %v3008 = vmul.f32 %v2992, %v2992
  %v3009 = vmul.f32 %v2993, %v2993
  %v3010 = vmul.f32 %v2994, %v2994
  %v3011 = vmul.f32 %v2995, %v2995
  %v3012 = vmul.f32 %v2996, %v2996
  %v3013 = vmul.f32 %v2997, %v2997
  %v3014 = vmul.f32 %v2998, %v2998
  %v3015 = vmul.f32 %v2999, %v2999
  %v3016 = vmul.f32 %v3000, %v3000
  %v3017 = vmul.f32 %v3001, %v3001
  %v3018 = vmul.f32 %v3002, %v3002
  %v3019 = vmul.f32 %v3003, %v3003
  %v3020 = vsel %vm713, %v3004, 0.0
  %v3021 = vsel %vm713, %v3005, 0.0
  %v3022 = vadd.f32 %v3020, %v3021
  %v3023 = vsel %vm713, %v3006, 0.0
  %v3024 = vadd.f32 %v3022, %v3023
  %v3025 = vsel %vm713, %v3007, 0.0
  %v3026 = vadd.f32 %v3024, %v3025
  %v3027 = vsel %vm713, %v3008, 0.0
  %v3028 = vadd.f32 %v3026, %v3027
  %v3029 = vsel %vm713, %v3009, 0.0
  %v3030 = vadd.f32 %v3028, %v3029
  %v3031 = vsel %vm713, %v3010, 0.0
  %v3032 = vadd.f32 %v3030, %v3031
  %v3033 = vsel %vm713, %v3011, 0.0
  %v3034 = vadd.f32 %v3032, %v3033
  %v3035 = vsel %vm713, %v3012, 0.0
  %v3036 = vadd.f32 %v3034, %v3035
  %v3037 = vsel %vm713, %v3013, 0.0
  %v3038 = vadd.f32 %v3036, %v3037
  %v3039 = vsel %vm713, %v3014, 0.0
  %v3040 = vadd.f32 %v3038, %v3039
  %v3041 = vsel %vm713, %v3015, 0.0
  %v3042 = vadd.f32 %v3040, %v3041
  %v3043 = vsel %vm713, %v3016, 0.0
  %v3044 = vadd.f32 %v3042, %v3043
  %v3045 = vsel %vm713, %v3017, 0.0
  %v3046 = vadd.f32 %v3044, %v3045
  %v3047 = vsel %vm713, %v3018, 0.0
  %v3048 = vadd.f32 %v3046, %v3047
  %v3049 = vsel %vm713, %v3019, 0.0
  %v3050 = vadd.f32 %v3048, %v3049
  %v3051 = vrot.slane %v3050, 4
  %v3052 = vadd.f32 %v3050, %v3051
  %v3053 = vrot.slane %v3052, 2
  %v3054 = vadd.f32 %v3052, %v3053
  %v3055 = vrot.slane %v3054, 1
  %v3056 = vadd.f32 %v3054, %v3055
  %v3057 = vmul.f32 %v3056, %v751
  %v3058 = vld [vmem:[%s2 + $0x7] sm:$0x1]
  %v3059 = vadd.f32 %v3057, 1e-05
  %v3060 = vrsqrt.pop %v3059
  %v3061 = vmul.f32 %v3058, %v3060
  %v3062 = vlaneseq
  %v3063 = vshrl.u32 %v3062, 7
  %v3064 = vsub.s32 0, %v3063
  %v3065 = vrot.slane %v3061, %v3064
  %v3066 = vmul.f32 %v2988, %v3065
  %v3067 = vmul.f32 %v2989, %v3065
  %v3068 = vmul.f32 %v2990, %v3065
  %v3069 = vmul.f32 %v2991, %v3065
  %v3070 = vmul.f32 %v2992, %v3065
  %v3071 = vmul.f32 %v2993, %v3065
  %v3072 = vmul.f32 %v2994, %v3065
  %v3073 = vmul.f32 %v2995, %v3065
  %v3074 = vmul.f32 %v2996, %v3065
  %v3075 = vmul.f32 %v2997, %v3065
  %v3076 = vmul.f32 %v2998, %v3065
  %v3077 = vmul.f32 %v2999, %v3065
  %v3078 = vmul.f32 %v3000, %v3065
  %v3079 = vmul.f32 %v3001, %v3065
  %v3080 = vmul.f32 %v3002, %v3065
  %v3081 = vmul.f32 %v3003, %v3065
  %v3082 = vld [vmem:[%s2 + $0xb] sm:$0x1]
  %v3083 = vlaneseq
  %v3084 = vshrl.u32 %v3083, 7
  %v3085 = vsub.s32 0, %v3084
  %v3086 = vrot.slane %v3082, %v3085
  %v3087 = vadd.f32 %v3066, %v3086
  %v3088 = vadd.f32 %v3067, %v3086
  %v3089 = vadd.f32 %v3068, %v3086
  %v3090 = vadd.f32 %v3069, %v3086
  %v3091 = vadd.f32 %v3070, %v3086
  %v3092 = vadd.f32 %v3071, %v3086
  %v3093 = vadd.f32 %v3072, %v3086
  %v3094 = vadd.f32 %v3073, %v3086
  %v3095 = vadd.f32 %v3074, %v3086
  %v3096 = vadd.f32 %v3075, %v3086
  %v3097 = vadd.f32 %v3076, %v3086
  %v3098 = vadd.f32 %v3077, %v3086
  %v3099 = vadd.f32 %v3078, %v3086
  %v3100 = vadd.f32 %v3079, %v3086
  %v3101 = vadd.f32 %v3080, %v3086
  %v3102 = vadd.f32 %v3081, %v3086
  %vm3103 = vcmp.gt.f32.partialorder %v3087, 0.0
  %vm3104 = vcmp.gt.f32.partialorder %v3088, 0.0
  %vm3105 = vcmp.gt.f32.partialorder %v3089, 0.0
  %vm3106 = vcmp.gt.f32.partialorder %v3090, 0.0
  %vm3107 = vcmp.gt.f32.partialorder %v3091, 0.0
  %vm3108 = vcmp.gt.f32.partialorder %v3092, 0.0
  %vm3109 = vcmp.gt.f32.partialorder %v3093, 0.0
  %vm3110 = vcmp.gt.f32.partialorder %v3094, 0.0
  %vm3111 = vcmp.gt.f32.partialorder %v3095, 0.0
  %vm3112 = vcmp.gt.f32.partialorder %v3096, 0.0
  %vm3113 = vcmp.gt.f32.partialorder %v3097, 0.0
  %vm3114 = vcmp.gt.f32.partialorder %v3098, 0.0
  %vm3115 = vcmp.gt.f32.partialorder %v3099, 0.0
  %vm3116 = vcmp.gt.f32.partialorder %v3100, 0.0
  %vm3117 = vcmp.gt.f32.partialorder %v3101, 0.0
  %vm3118 = vcmp.gt.f32.partialorder %v3102, 0.0
  %v3119 = vmin.f32 %v3087, 0.0
  %v3120 = vmin.f32 %v3088, 0.0
  %v3121 = vmin.f32 %v3089, 0.0
  %v3122 = vmin.f32 %v3090, 0.0
  %v3123 = vmin.f32 %v3091, 0.0
  %v3124 = vmin.f32 %v3092, 0.0
  %v3125 = vmin.f32 %v3093, 0.0
  %v3126 = vmin.f32 %v3094, 0.0
  %v3127 = vmin.f32 %v3095, 0.0
  %v3128 = vmin.f32 %v3096, 0.0
  %v3129 = vmin.f32 %v3097, 0.0
  %v3130 = vmin.f32 %v3098, 0.0
  %v3131 = vmin.f32 %v3099, 0.0
  %v3132 = vmin.f32 %v3100, 0.0
  %v3133 = vmin.f32 %v3101, 0.0
  %v3134 = vmin.f32 %v3102, 0.0
  %v3135 = vmul.f32 %v3119, 1.442695
  %v3136 = vpow.pop %v3135
  %v3137 = vmul.f32 %v3120, 1.442695
  %v3138 = vpow.pop %v3137
  %v3139 = vmul.f32 %v3121, 1.442695
  %v3140 = vpow.pop %v3139
  %v3141 = vmul.f32 %v3122, 1.442695
  %v3142 = vpow.pop %v3141
  %v3143 = vmul.f32 %v3123, 1.442695
  %v3144 = vpow.pop %v3143
  %v3145 = vmul.f32 %v3124, 1.442695
  %v3146 = vpow.pop %v3145
  %v3147 = vmul.f32 %v3125, 1.442695
  %v3148 = vpow.pop %v3147
  %v3149 = vmul.f32 %v3126, 1.442695
  %v3150 = vpow.pop %v3149
  %v3151 = vmul.f32 %v3127, 1.442695
  %v3152 = vpow.pop %v3151
  %v3153 = vmul.f32 %v3128, 1.442695
  %v3154 = vpow.pop %v3153
  %v3155 = vmul.f32 %v3129, 1.442695
  %v3156 = vpow.pop %v3155
  %v3157 = vmul.f32 %v3130, 1.442695
  %v3158 = vpow.pop %v3157
  %v3159 = vmul.f32 %v3131, 1.442695
  %v3160 = vpow.pop %v3159
  %v3161 = vmul.f32 %v3132, 1.442695
  %v3162 = vpow.pop %v3161
  %v3163 = vmul.f32 %v3133, 1.442695
  %v3164 = vpow.pop %v3163
  %v3165 = vmul.f32 %v3134, 1.442695
  %v3166 = vpow.pop %v3165
  %v3167 = vsub.f32 %v3136, 1.0
  %v3168 = vsub.f32 %v3138, 1.0
  %v3169 = vsub.f32 %v3140, 1.0
  %v3170 = vsub.f32 %v3142, 1.0
  %v3171 = vsub.f32 %v3144, 1.0
  %v3172 = vsub.f32 %v3146, 1.0
  %v3173 = vsub.f32 %v3148, 1.0
  %v3174 = vsub.f32 %v3150, 1.0
  %v3175 = vsub.f32 %v3152, 1.0
  %v3176 = vsub.f32 %v3154, 1.0
  %v3177 = vsub.f32 %v3156, 1.0
  %v3178 = vsub.f32 %v3158, 1.0
  %v3179 = vsub.f32 %v3160, 1.0
  %v3180 = vsub.f32 %v3162, 1.0
  %v3181 = vsub.f32 %v3164, 1.0
  %v3182 = vsub.f32 %v3166, 1.0
  %v3183 = vsel %vm3103, %v3087, %v3167
  %v3184 = vsel %vm3104, %v3088, %v3168
  %v3185 = vsel %vm3105, %v3089, %v3169
  %v3186 = vsel %vm3106, %v3090, %v3170
  %v3187 = vsel %vm3107, %v3091, %v3171
  %v3188 = vsel %vm3108, %v3092, %v3172
  %v3189 = vsel %vm3109, %v3093, %v3173
  %v3190 = vsel %vm3110, %v3094, %v3174
  %v3191 = vsel %vm3111, %v3095, %v3175
  %v3192 = vsel %vm3112, %v3096, %v3176
  %v3193 = vsel %vm3113, %v3097, %v3177
  %v3194 = vsel %vm3114, %v3098, %v3178
  %v3195 = vsel %vm3115, %v3099, %v3179
  %v3196 = vsel %vm3116, %v3100, %v3180
  %v3197 = vsel %vm3117, %v3101, %v3181
  %v3198 = vsel %vm3118, %v3102, %v3182
  %v3199 = vpack.c.bf16 %v3184, %v3183
  %v3200 = vpack.c.bf16 %v3186, %v3185
  %v3201 = vpack.c.bf16 %v3188, %v3187
  %v3202 = vpack.c.bf16 %v3190, %v3189
  %v3203 = vpack.c.bf16 %v3192, %v3191
  %v3204 = vpack.c.bf16 %v3194, %v3193
  %v3205 = vpack.c.bf16 %v3196, %v3195
  %v3206 = vpack.c.bf16 %v3198, %v3197
  %3215 = vrot.lane.b32.xlu0 %v3199, 28
  %v3216 = vpop.permute.xlu0 %3215
  %3217 = vrot.lane.b32.xlu0 %v3200, 28
  %v3218 = vpop.permute.xlu0 %3217
  %3219 = vrot.lane.b32.xlu0 %v3201, 28
  %v3220 = vpop.permute.xlu0 %3219
  %3221 = vrot.lane.b32.xlu0 %v3202, 28
  %v3222 = vpop.permute.xlu0 %3221
  %3223 = vrot.lane.b32.xlu0 %v3203, 28
  %v3224 = vpop.permute.xlu0 %3223
  %3225 = vrot.lane.b32.xlu0 %v3204, 28
  %v3226 = vpop.permute.xlu0 %3225
  %3227 = vrot.lane.b32.xlu0 %v3205, 28
  %v3228 = vpop.permute.xlu0 %3227
  %3229 = vrot.lane.b32.xlu0 %v3206, 28
  %v3230 = vpop.permute.xlu0 %3229
  %vm3239 = vcmask 294112
  %3240 = vst.msk [vmem:[#allocation2] sm:$0xff] %vm3239, %v3216
  %3241 = vst.msk [vmem:[#allocation2 + $0x8] sm:$0xff] %vm3239, %v3218
  %3242 = vst.msk [vmem:[#allocation2 + $0x10] sm:$0xff] %vm3239, %v3220
  %3243 = vst.msk [vmem:[#allocation2 + $0x18] sm:$0xff] %vm3239, %v3222
  %3244 = vst.msk [vmem:[#allocation2 + $0x20] sm:$0xff] %vm3239, %v3224
  %3245 = vst.msk [vmem:[#allocation2 + $0x28] sm:$0xff] %vm3239, %v3226
  %3246 = vst.msk [vmem:[#allocation2 + $0x30] sm:$0xff] %vm3239, %v3228
  %3247 = vst.msk [vmem:[#allocation2 + $0x38] sm:$0xff] %vm3239, %v3230
  %v3248 = vld [vmem:[#allocation2] sm:$0xff]
  %v3249 = vld [vmem:[#allocation2 + $0x8] sm:$0xff]
  %v3250 = vld [vmem:[#allocation2 + $0x10] sm:$0xff]
  %v3251 = vld [vmem:[#allocation2 + $0x18] sm:$0xff]
  %v3252 = vld [vmem:[#allocation2 + $0x20] sm:$0xff]
  %v3253 = vld [vmem:[#allocation2 + $0x28] sm:$0xff]
  %v3254 = vld [vmem:[#allocation2 + $0x30] sm:$0xff]
  %v3255 = vld [vmem:[#allocation2 + $0x38] sm:$0xff]
  %s3256 = scalar_lea.vmem %s1, 256
  %v3257 = vld [vmem:[%s3256] sm:$0xf]
  %v3258 = vld [vmem:[%s3256 + $0x4] sm:$0xf]
  %v3259 = vld [vmem:[%s3256 + $0x8] sm:$0xf]
  %v3260 = vld [vmem:[%s3256 + $0xc] sm:$0xf]
  %v3261 = vld [vmem:[%s3256 + $0x10] sm:$0xf]
  %v3262 = vld [vmem:[%s3256 + $0x14] sm:$0xf]
  %v3263 = vld [vmem:[%s3256 + $0x18] sm:$0xf]
  %v3264 = vld [vmem:[%s3256 + $0x1c] sm:$0xf]
  %v3265 = vld [vmem:[%s3256 + $0x20] sm:$0xf]
  %v3266 = vld [vmem:[%s3256 + $0x24] sm:$0xf]
  %v3267 = vld [vmem:[%s3256 + $0x28] sm:$0xf]
  %v3268 = vld [vmem:[%s3256 + $0x2c] sm:$0xf]
  %v3269 = vld [vmem:[%s3256 + $0x30] sm:$0xf]
  %v3270 = vld [vmem:[%s3256 + $0x34] sm:$0xf]
  %v3271 = vld [vmem:[%s3256 + $0x38] sm:$0xf]
  %v3272 = vld [vmem:[%s3256 + $0x3c] sm:$0xf]
  %v3289 = vunpack.c.l.b16 %v3257
  %v3290 = vunpack.c.l.b16 %v3258
  %v3291 = vunpack.c.l.b16 %v3259
  %v3292 = vunpack.c.l.b16 %v3260
  %v3293 = vunpack.c.l.b16 %v3261
  %v3294 = vunpack.c.l.b16 %v3262
  %v3295 = vunpack.c.l.b16 %v3263
  %v3296 = vunpack.c.l.b16 %v3264
  %v3297 = vunpack.c.l.b16 %v3265
  %v3298 = vunpack.c.l.b16 %v3266
  %v3299 = vunpack.c.l.b16 %v3267
  %v3300 = vunpack.c.l.b16 %v3268
  %v3301 = vunpack.c.l.b16 %v3269
  %v3302 = vunpack.c.l.b16 %v3270
  %v3303 = vunpack.c.l.b16 %v3271
  %v3304 = vunpack.c.l.b16 %v3272
  %v3305 = vpack.c.b16 %v3290, %v3289
  %v3306 = vpack.c.b16 %v3292, %v3291
  %v3307 = vpack.c.b16 %v3294, %v3293
  %v3308 = vpack.c.b16 %v3296, %v3295
  %v3309 = vpack.c.b16 %v3298, %v3297
  %v3310 = vpack.c.b16 %v3300, %v3299
  %v3311 = vpack.c.b16 %v3302, %v3301
  %v3312 = vpack.c.b16 %v3304, %v3303
  %3321 = vmatprep.subr.bf16.mxu0 0
  %3322 = vmatpush1.bf16.msra.mxu0 %v3305
  %3323 = vmatprep.subr.bf16.mxu0 0
  %3324 = vmatpush1.bf16.msra.mxu0 %v3306
  %3325 = vmatprep.subr.bf16.mxu0 0
  %3326 = vmatpush1.bf16.msra.mxu0 %v3307
  %3327 = vmatprep.subr.bf16.mxu0 0
  %3328 = vmatpush1.bf16.msra.mxu0 %v3308
  %3329 = vmatprep.subr.bf16.mxu0 0
  %3330 = vmatpush1.bf16.msra.mxu0 %v3309
  %3331 = vmatprep.subr.bf16.mxu0 0
  %3332 = vmatpush1.bf16.msra.mxu0 %v3310
  %3333 = vmatprep.subr.bf16.mxu0 0
  %3334 = vmatpush1.bf16.msra.mxu0 %v3311
  %3335 = vmatprep.subr.bf16.mxu0 0
  %3336 = vmatpush1.bf16.msra.mxu0 %v3312
  %3337 = vmatprep.subr.bf16.mxu0 0
  %3338 = vmatpush1.bf16.msra.mxu0 0
  %3339 = vmatprep.subr.bf16.mxu0 0
  %3340 = vmatpush1.bf16.msra.mxu0 0
  %3341 = vmatprep.subr.bf16.mxu0 0
  %3342 = vmatpush1.bf16.msra.mxu0 0
  %3343 = vmatprep.subr.bf16.mxu0 0
  %3344 = vmatpush1.bf16.msra.mxu0 0
  %3345 = vmatprep.subr.bf16.mxu0 0
  %3346 = vmatpush1.bf16.msra.mxu0 0
  %3347 = vmatprep.subr.bf16.mxu0 0
  %3348 = vmatpush1.bf16.msra.mxu0 0
  %3349 = vmatprep.subr.bf16.mxu0 0
  %3350 = vmatpush1.bf16.msra.mxu0 0
  %3351 = vmatprep.subr.bf16.mxu0 0
  %3352 = vmatpush1.bf16.msra.mxu0 0
  %3353 = vmatprep.mubr.bf16.mxu0 0
  %3354 = vmatmul.mubr.bf16.gmra.mrb[0].mxu0 %v3248
  %v3355 = vpop.f32.mrb[0].mxu0
  %v3356 = vadd.f32 0.0, %v3355
  %v3357 = vpop.f32.mrb[0].mxu0
  %v3358 = vpop.f32.mrb[0].mxu0
  %v3359 = vadd.f32 0.0, %v3358
  %v3360 = vpop.f32.mrb[0].mxu0
  %3361 = vmatprep.mubr.bf16.mxu0 0
  %3362 = vmatmul.mubr.bf16.gmra.mrb[0].mxu0 %v3249
  %v3363 = vpop.f32.mrb[0].mxu0
  %v3364 = vadd.f32 0.0, %v3363
  %v3365 = vpop.f32.mrb[0].mxu0
  %v3366 = vpop.f32.mrb[0].mxu0
  %v3367 = vadd.f32 0.0, %v3366
  %v3368 = vpop.f32.mrb[0].mxu0
  %3369 = vmatprep.mubr.bf16.mxu0 0
  %3370 = vmatmul.mubr.bf16.gmra.mrb[0].mxu0 %v3250
  %v3371 = vpop.f32.mrb[0].mxu0
  %v3372 = vadd.f32 0.0, %v3371
  %v3373 = vpop.f32.mrb[0].mxu0
  %v3374 = vpop.f32.mrb[0].mxu0
  %v3375 = vadd.f32 0.0, %v3374
  %v3376 = vpop.f32.mrb[0].mxu0
  %3377 = vmatprep.mubr.bf16.mxu0 0
  %3378 = vmatmul.mubr.bf16.gmra.mrb[0].mxu0 %v3251
  %v3379 = vpop.f32.mrb[0].mxu0
  %v3380 = vadd.f32 0.0, %v3379
  %v3381 = vpop.f32.mrb[0].mxu0
  %v3382 = vpop.f32.mrb[0].mxu0
  %v3383 = vadd.f32 0.0, %v3382
  %v3384 = vpop.f32.mrb[0].mxu0
  %3385 = vmatprep.mubr.bf16.mxu0 0
  %3386 = vmatmul.mubr.bf16.gmra.mrb[0].mxu0 %v3252
  %v3387 = vpop.f32.mrb[0].mxu0
  %v3388 = vadd.f32 0.0, %v3387
  %v3389 = vpop.f32.mrb[0].mxu0
  %v3390 = vpop.f32.mrb[0].mxu0
  %v3391 = vadd.f32 0.0, %v3390
  %v3392 = vpop.f32.mrb[0].mxu0
  %3393 = vmatprep.mubr.bf16.mxu0 0
  %3394 = vmatmul.mubr.bf16.gmra.mrb[0].mxu0 %v3253
  %v3395 = vpop.f32.mrb[0].mxu0
  %v3396 = vadd.f32 0.0, %v3395
  %v3397 = vpop.f32.mrb[0].mxu0
  %v3398 = vpop.f32.mrb[0].mxu0
  %v3399 = vadd.f32 0.0, %v3398
  %v3400 = vpop.f32.mrb[0].mxu0
  %3401 = vmatprep.mubr.bf16.mxu0 0
  %3402 = vmatmul.mubr.bf16.gmra.mrb[0].mxu0 %v3254
  %v3403 = vpop.f32.mrb[0].mxu0
  %v3404 = vadd.f32 0.0, %v3403
  %v3405 = vpop.f32.mrb[0].mxu0
  %v3406 = vpop.f32.mrb[0].mxu0
  %v3407 = vadd.f32 0.0, %v3406
  %v3408 = vpop.f32.mrb[0].mxu0
  %3409 = vmatprep.mubr.bf16.mxu0 0
  %3410 = vmatmul.mubr.bf16.gmra.mrb[0].mxu0 %v3255
  %v3411 = vpop.f32.mrb[0].mxu0
  %v3412 = vadd.f32 0.0, %v3411
  %v3413 = vpop.f32.mrb[0].mxu0
  %v3414 = vpop.f32.mrb[0].mxu0
  %v3415 = vadd.f32 0.0, %v3414
  %v3416 = vpop.f32.mrb[0].mxu0
  %3417 = vdwg.mxu0
  %s3418 = scalar_lea.vmem %s1, 320
  %v3419 = vld [vmem:[%s3418] sm:$0xf]
  %v3420 = vld [vmem:[%s3418 + $0x4] sm:$0xf]
  %v3421 = vld [vmem:[%s3418 + $0x8] sm:$0xf]
  %v3422 = vld [vmem:[%s3418 + $0xc] sm:$0xf]
  %v3423 = vld [vmem:[%s3418 + $0x10] sm:$0xf]
  %v3424 = vld [vmem:[%s3418 + $0x14] sm:$0xf]
  %v3425 = vld [vmem:[%s3418 + $0x18] sm:$0xf]
  %v3426 = vld [vmem:[%s3418 + $0x1c] sm:$0xf]
  %v3427 = vld [vmem:[%s3418 + $0x20] sm:$0xf]
  %v3428 = vld [vmem:[%s3418 + $0x24] sm:$0xf]
  %v3429 = vld [vmem:[%s3418 + $0x28] sm:$0xf]
  %v3430 = vld [vmem:[%s3418 + $0x2c] sm:$0xf]
  %v3431 = vld [vmem:[%s3418 + $0x30] sm:$0xf]
  %v3432 = vld [vmem:[%s3418 + $0x34] sm:$0xf]
  %v3433 = vld [vmem:[%s3418 + $0x38] sm:$0xf]
  %v3434 = vld [vmem:[%s3418 + $0x3c] sm:$0xf]
  %v3451 = vunpack.c.l.b16 %v3419
  %v3452 = vunpack.c.l.b16 %v3420
  %v3453 = vunpack.c.l.b16 %v3421
  %v3454 = vunpack.c.l.b16 %v3422
  %v3455 = vunpack.c.l.b16 %v3423
  %v3456 = vunpack.c.l.b16 %v3424
  %v3457 = vunpack.c.l.b16 %v3425
  %v3458 = vunpack.c.l.b16 %v3426
  %v3459 = vunpack.c.l.b16 %v3427
  %v3460 = vunpack.c.l.b16 %v3428
  %v3461 = vunpack.c.l.b16 %v3429
  %v3462 = vunpack.c.l.b16 %v3430
  %v3463 = vunpack.c.l.b16 %v3431
  %v3464 = vunpack.c.l.b16 %v3432
  %v3465 = vunpack.c.l.b16 %v3433
  %v3466 = vunpack.c.l.b16 %v3434
  %v3467 = vpack.c.b16 %v3452, %v3451
  %v3468 = vpack.c.b16 %v3454, %v3453
  %v3469 = vpack.c.b16 %v3456, %v3455
  %v3470 = vpack.c.b16 %v3458, %v3457
  %v3471 = vpack.c.b16 %v3460, %v3459
  %v3472 = vpack.c.b16 %v3462, %v3461
  %v3473 = vpack.c.b16 %v3464, %v3463
  %v3474 = vpack.c.b16 %v3466, %v3465
  %3483 = vmatprep.subr.bf16.mxu0 0
  %3484 = vmatpush1.bf16.msra.mxu0 %v3467
  %3485 = vmatprep.subr.bf16.mxu0 0
  %3486 = vmatpush1.bf16.msra.mxu0 %v3468
  %3487 = vmatprep.subr.bf16.mxu0 0
  %3488 = vmatpush1.bf16.msra.mxu0 %v3469
  %3489 = vmatprep.subr.bf16.mxu0 0
  %3490 = vmatpush1.bf16.msra.mxu0 %v3470
  %3491 = vmatprep.subr.bf16.mxu0 0
  %3492 = vmatpush1.bf16.msra.mxu0 %v3471
  %3493 = vmatprep.subr.bf16.mxu0 0
  %3494 = vmatpush1.bf16.msra.mxu0 %v3472
  %3495 = vmatprep.subr.bf16.mxu0 0
  %3496 = vmatpush1.bf16.msra.mxu0 %v3473
  %3497 = vmatprep.subr.bf16.mxu0 0
  %3498 = vmatpush1.bf16.msra.mxu0 %v3474
  %3499 = vmatprep.subr.bf16.mxu0 0
  %3500 = vmatpush1.bf16.msra.mxu0 0
  %3501 = vmatprep.subr.bf16.mxu0 0
  %3502 = vmatpush1.bf16.msra.mxu0 0
  %3503 = vmatprep.subr.bf16.mxu0 0
  %3504 = vmatpush1.bf16.msra.mxu0 0
  %3505 = vmatprep.subr.bf16.mxu0 0
  %3506 = vmatpush1.bf16.msra.mxu0 0
  %3507 = vmatprep.subr.bf16.mxu0 0
  %3508 = vmatpush1.bf16.msra.mxu0 0
  %3509 = vmatprep.subr.bf16.mxu0 0
  %3510 = vmatpush1.bf16.msra.mxu0 0
  %3511 = vmatprep.subr.bf16.mxu0 0
  %3512 = vmatpush1.bf16.msra.mxu0 0
  %3513 = vmatprep.subr.bf16.mxu0 0
  %3514 = vmatpush1.bf16.msra.mxu0 0
  %3515 = vmatprep.mubr.bf16.mxu0 0
  %3516 = vmatmul.mubr.bf16.gmra.mrb[0].mxu0 %v3248
  %v3517 = vpop.f32.mrb[0].mxu0
  %v3518 = vadd.f32 0.0, %v3517
  %v3519 = vpop.f32.mrb[0].mxu0
  %v3520 = vpop.f32.mrb[0].mxu0
  %v3521 = vadd.f32 0.0, %v3520
  %v3522 = vpop.f32.mrb[0].mxu0
  %3523 = vmatprep.mubr.bf16.mxu0 0
  %3524 = vmatmul.mubr.bf16.gmra.mrb[0].mxu0 %v3249
  %v3525 = vpop.f32.mrb[0].mxu0
  %v3526 = vadd.f32 0.0, %v3525
  %v3527 = vpop.f32.mrb[0].mxu0
  %v3528 = vpop.f32.mrb[0].mxu0
  %v3529 = vadd.f32 0.0, %v3528
  %v3530 = vpop.f32.mrb[0].mxu0
  %3531 = vmatprep.mubr.bf16.mxu0 0
  %3532 = vmatmul.mubr.bf16.gmra.mrb[0].mxu0 %v3250
  %v3533 = vpop.f32.mrb[0].mxu0
  %v3534 = vadd.f32 0.0, %v3533
  %v3535 = vpop.f32.mrb[0].mxu0
  %v3536 = vpop.f32.mrb[0].mxu0
  %v3537 = vadd.f32 0.0, %v3536
  %v3538 = vpop.f32.mrb[0].mxu0
  %3539 = vmatprep.mubr.bf16.mxu0 0
  %3540 = vmatmul.mubr.bf16.gmra.mrb[0].mxu0 %v3251
  %v3541 = vpop.f32.mrb[0].mxu0
  %v3542 = vadd.f32 0.0, %v3541
  %v3543 = vpop.f32.mrb[0].mxu0
  %v3544 = vpop.f32.mrb[0].mxu0
  %v3545 = vadd.f32 0.0, %v3544
  %v3546 = vpop.f32.mrb[0].mxu0
  %3547 = vmatprep.mubr.bf16.mxu0 0
  %3548 = vmatmul.mubr.bf16.gmra.mrb[0].mxu0 %v3252
  %v3549 = vpop.f32.mrb[0].mxu0
  %v3550 = vadd.f32 0.0, %v3549
  %v3551 = vpop.f32.mrb[0].mxu0
  %v3552 = vpop.f32.mrb[0].mxu0
  %v3553 = vadd.f32 0.0, %v3552
  %v3554 = vpop.f32.mrb[0].mxu0
  %3555 = vmatprep.mubr.bf16.mxu0 0
  %3556 = vmatmul.mubr.bf16.gmra.mrb[0].mxu0 %v3253
  %v3557 = vpop.f32.mrb[0].mxu0
  %v3558 = vadd.f32 0.0, %v3557
  %v3559 = vpop.f32.mrb[0].mxu0
  %v3560 = vpop.f32.mrb[0].mxu0
  %v3561 = vadd.f32 0.0, %v3560
  %v3562 = vpop.f32.mrb[0].mxu0
  %3563 = vmatprep.mubr.bf16.mxu0 0
  %3564 = vmatmul.mubr.bf16.gmra.mrb[0].mxu0 %v3254
  %v3565 = vpop.f32.mrb[0].mxu0
  %v3566 = vadd.f32 0.0, %v3565
  %v3567 = vpop.f32.mrb[0].mxu0
  %v3568 = vpop.f32.mrb[0].mxu0
  %v3569 = vadd.f32 0.0, %v3568
  %v3570 = vpop.f32.mrb[0].mxu0
  %3571 = vmatprep.mubr.bf16.mxu0 0
  %3572 = vmatmul.mubr.bf16.gmra.mrb[0].mxu0 %v3255
  %v3573 = vpop.f32.mrb[0].mxu0
  %v3574 = vadd.f32 0.0, %v3573
  %v3575 = vpop.f32.mrb[0].mxu0
  %v3576 = vpop.f32.mrb[0].mxu0
  %v3577 = vadd.f32 0.0, %v3576
  %v3578 = vpop.f32.mrb[0].mxu0
  %3579 = vdwg.mxu0
  %v3580 = vrot.slane %v3356, 7
  %v3581 = vrot.slane %v3359, 7
  %v3582 = vrot.slane %v3364, 7
  %v3583 = vrot.slane %v3367, 7
  %v3584 = vrot.slane %v3372, 7
  %v3585 = vrot.slane %v3375, 7
  %v3586 = vrot.slane %v3380, 7
  %v3587 = vrot.slane %v3383, 7
  %v3588 = vrot.slane %v3388, 7
  %v3589 = vrot.slane %v3391, 7
  %v3590 = vrot.slane %v3396, 7
  %v3591 = vrot.slane %v3399, 7
  %v3592 = vrot.slane %v3404, 7
  %v3593 = vrot.slane %v3407, 7
  %v3594 = vrot.slane %v3412, 7
  %v3595 = vrot.slane %v3415, 7
  %v3596 = vsel %vm306, %v3594, %v3595
  %v3597 = vsel %vm306, %v3593, %v3594
  %v3598 = vsel %vm306, %v3592, %v3593
  %v3599 = vsel %vm306, %v3591, %v3592
  %v3600 = vsel %vm306, %v3590, %v3591
  %v3601 = vsel %vm306, %v3589, %v3590
  %v3602 = vsel %vm306, %v3588, %v3589
  %v3603 = vsel %vm306, %v3587, %v3588
  %v3604 = vsel %vm306, %v3586, %v3587
  %v3605 = vsel %vm306, %v3585, %v3586
  %v3606 = vsel %vm306, %v3584, %v3585
  %v3607 = vsel %vm306, %v3583, %v3584
  %v3608 = vsel %vm306, %v3582, %v3583
  %v3609 = vsel %vm306, %v3581, %v3582
  %v3610 = vsel %vm306, %v3580, %v3581
  %v3611 = vsel %vm306, %v3595, %v3580
  %v3612 = vmul.f32 %v3611, %v359
  %v3613 = vmul.f32 %v3610, %v364
  %v3614 = vmul.f32 %v3609, %v369
  %v3615 = vmul.f32 %v3608, %v374
  %v3616 = vmul.f32 %v3607, %v379
  %v3617 = vmul.f32 %v3606, %v384
  %v3618 = vmul.f32 %v3605, %v389
  %v3619 = vmul.f32 %v3604, %v394
  %v3620 = vmul.f32 %v3603, %v399
  %v3621 = vmul.f32 %v3602, %v404
  %v3622 = vmul.f32 %v3601, %v409
  %v3623 = vmul.f32 %v3600, %v414
  %v3624 = vmul.f32 %v3599, %v419
  %v3625 = vmul.f32 %v3598, %v424
  %v3626 = vmul.f32 %v3597, %v429
  %v3627 = vmul.f32 %v3596, %v434
  %3644 = vrot.lane.b32.xlu0 %v3356, 64
  %v3645 = vpop.permute.xlu0 %3644
  %3646 = vrot.lane.b32.xlu0 %v3359, 64
  %v3647 = vpop.permute.xlu0 %3646
  %3648 = vrot.lane.b32.xlu0 %v3364, 64
  %v3649 = vpop.permute.xlu0 %3648
  %3650 = vrot.lane.b32.xlu0 %v3367, 64
  %v3651 = vpop.permute.xlu0 %3650
  %3652 = vrot.lane.b32.xlu0 %v3372, 64
  %v3653 = vpop.permute.xlu0 %3652
  %3654 = vrot.lane.b32.xlu0 %v3375, 64
  %v3655 = vpop.permute.xlu0 %3654
  %3656 = vrot.lane.b32.xlu0 %v3380, 64
  %v3657 = vpop.permute.xlu0 %3656
  %3658 = vrot.lane.b32.xlu0 %v3383, 64
  %v3659 = vpop.permute.xlu0 %3658
  %3660 = vrot.lane.b32.xlu0 %v3388, 64
  %v3661 = vpop.permute.xlu0 %3660
  %3662 = vrot.lane.b32.xlu0 %v3391, 64
  %v3663 = vpop.permute.xlu0 %3662
  %3664 = vrot.lane.b32.xlu0 %v3396, 64
  %v3665 = vpop.permute.xlu0 %3664
  %3666 = vrot.lane.b32.xlu0 %v3399, 64
  %v3667 = vpop.permute.xlu0 %3666
  %3668 = vrot.lane.b32.xlu0 %v3404, 64
  %v3669 = vpop.permute.xlu0 %3668
  %3670 = vrot.lane.b32.xlu0 %v3407, 64
  %v3671 = vpop.permute.xlu0 %3670
  %3672 = vrot.lane.b32.xlu0 %v3412, 64
  %v3673 = vpop.permute.xlu0 %3672
  %3674 = vrot.lane.b32.xlu0 %v3415, 64
  %v3675 = vpop.permute.xlu0 %3674
  %v3692 = vadd.f32 %v3612, %v3645
  %v3693 = vadd.f32 %v3613, %v3647
  %v3694 = vadd.f32 %v3614, %v3649
  %v3695 = vadd.f32 %v3615, %v3651
  %v3696 = vadd.f32 %v3616, %v3653
  %v3697 = vadd.f32 %v3617, %v3655
  %v3698 = vadd.f32 %v3618, %v3657
  %v3699 = vadd.f32 %v3619, %v3659
  %v3700 = vadd.f32 %v3620, %v3661
  %v3701 = vadd.f32 %v3621, %v3663
  %v3702 = vadd.f32 %v3622, %v3665
  %v3703 = vadd.f32 %v3623, %v3667
  %v3704 = vadd.f32 %v3624, %v3669
  %v3705 = vadd.f32 %v3625, %v3671
  %v3706 = vadd.f32 %v3626, %v3673
  %v3707 = vadd.f32 %v3627, %v3675
  %v3708 = vrot.slane %v3518, 1
  %v3709 = vrot.slane %v3521, 1
  %v3710 = vrot.slane %v3526, 1
  %v3711 = vrot.slane %v3529, 1
  %v3712 = vrot.slane %v3534, 1
  %v3713 = vrot.slane %v3537, 1
  %v3714 = vrot.slane %v3542, 1
  %v3715 = vrot.slane %v3545, 1
  %v3716 = vrot.slane %v3550, 1
  %v3717 = vrot.slane %v3553, 1
  %v3718 = vrot.slane %v3558, 1
  %v3719 = vrot.slane %v3561, 1
  %v3720 = vrot.slane %v3566, 1
  %v3721 = vrot.slane %v3569, 1
  %v3722 = vrot.slane %v3574, 1
  %v3723 = vrot.slane %v3577, 1
  %v3724 = vsel %vm339, %v3722, %v3723
  %v3725 = vsel %vm339, %v3721, %v3722
  %v3726 = vsel %vm339, %v3720, %v3721
  %v3727 = vsel %vm339, %v3719, %v3720
  %v3728 = vsel %vm339, %v3718, %v3719
  %v3729 = vsel %vm339, %v3717, %v3718
  %v3730 = vsel %vm339, %v3716, %v3717
  %v3731 = vsel %vm339, %v3715, %v3716
  %v3732 = vsel %vm339, %v3714, %v3715
  %v3733 = vsel %vm339, %v3713, %v3714
  %v3734 = vsel %vm339, %v3712, %v3713
  %v3735 = vsel %vm339, %v3711, %v3712
  %v3736 = vsel %vm339, %v3710, %v3711
  %v3737 = vsel %vm339, %v3709, %v3710
  %v3738 = vsel %vm339, %v3708, %v3709
  %v3739 = vsel %vm339, %v3723, %v3708
  %v3740 = vmul.f32 %v3738, %v534
  %v3741 = vmul.f32 %v3737, %v538
  %v3742 = vmul.f32 %v3736, %v542
  %v3743 = vmul.f32 %v3735, %v546
  %v3744 = vmul.f32 %v3734, %v550
  %v3745 = vmul.f32 %v3733, %v554
  %v3746 = vmul.f32 %v3732, %v558
  %v3747 = vmul.f32 %v3731, %v562
  %v3748 = vmul.f32 %v3730, %v566
  %v3749 = vmul.f32 %v3729, %v570
  %v3750 = vmul.f32 %v3728, %v574
  %v3751 = vmul.f32 %v3727, %v578
  %v3752 = vmul.f32 %v3726, %v582
  %v3753 = vmul.f32 %v3725, %v586
  %v3754 = vmul.f32 %v3724, %v590
  %v3755 = vmul.f32 %v3739, %v594
  %v3756 = vadd.f32 %v3692, %v3740
  %v3757 = vadd.f32 %v3693, %v3741
  %v3758 = vadd.f32 %v3694, %v3742
  %v3759 = vadd.f32 %v3695, %v3743
  %v3760 = vadd.f32 %v3696, %v3744
  %v3761 = vadd.f32 %v3697, %v3745
  %v3762 = vadd.f32 %v3698, %v3746
  %v3763 = vadd.f32 %v3699, %v3747
  %v3764 = vadd.f32 %v3700, %v3748
  %v3765 = vadd.f32 %v3701, %v3749
  %v3766 = vadd.f32 %v3702, %v3750
  %v3767 = vadd.f32 %v3703, %v3751
  %v3768 = vadd.f32 %v3704, %v3752
  %v3769 = vadd.f32 %v3705, %v3753
  %v3770 = vadd.f32 %v3706, %v3754
  %v3771 = vadd.f32 %v3707, %v3755
  %v3772 = vld [vmem:[%s2 + $0xc] sm:$0x1]
  %v3773 = vlaneseq
  %v3774 = vshrl.u32 %v3773, 7
  %v3775 = vsub.s32 0, %v3774
  %v3776 = vrot.slane %v3772, %v3775
  %v3777 = vadd.f32 %v3756, %v3776
  %v3778 = vadd.f32 %v3757, %v3776
  %v3779 = vadd.f32 %v3758, %v3776
  %v3780 = vadd.f32 %v3759, %v3776
  %v3781 = vadd.f32 %v3760, %v3776
  %v3782 = vadd.f32 %v3761, %v3776
  %v3783 = vadd.f32 %v3762, %v3776
  %v3784 = vadd.f32 %v3763, %v3776
  %v3785 = vadd.f32 %v3764, %v3776
  %v3786 = vadd.f32 %v3765, %v3776
  %v3787 = vadd.f32 %v3766, %v3776
  %v3788 = vadd.f32 %v3767, %v3776
  %v3789 = vadd.f32 %v3768, %v3776
  %v3790 = vadd.f32 %v3769, %v3776
  %v3791 = vadd.f32 %v3770, %v3776
  %v3792 = vadd.f32 %v3771, %v3776
  %v3793 = vld [vmem:[%s2 + $0xd] sm:$0x1]
  %v3794 = vlaneseq
  %v3795 = vshrl.u32 %v3794, 7
  %v3796 = vsub.s32 0, %v3795
  %v3797 = vrot.slane %v3793, %v3796
  %3799 = vrot.lane.b32.xlu0 %v3797, 32
  %v3800 = vpop.permute.xlu0 %3799
  %v3802 = vadd.f32 %v3756, %v3800
  %v3803 = vadd.f32 %v3757, %v3800
  %v3804 = vadd.f32 %v3758, %v3800
  %v3805 = vadd.f32 %v3759, %v3800
  %v3806 = vadd.f32 %v3760, %v3800
  %v3807 = vadd.f32 %v3761, %v3800
  %v3808 = vadd.f32 %v3762, %v3800
  %v3809 = vadd.f32 %v3763, %v3800
  %v3810 = vadd.f32 %v3764, %v3800
  %v3811 = vadd.f32 %v3765, %v3800
  %v3812 = vadd.f32 %v3766, %v3800
  %v3813 = vadd.f32 %v3767, %v3800
  %v3814 = vadd.f32 %v3768, %v3800
  %v3815 = vadd.f32 %v3769, %v3800
  %v3816 = vadd.f32 %v3770, %v3800
  %v3817 = vadd.f32 %v3771, %v3800
  %v3818 = vand.u32 2147483647, %v3802
  %v3819 = vand.u32 2147483647, %v3803
  %v3820 = vand.u32 2147483647, %v3804
  %v3821 = vand.u32 2147483647, %v3805
  %v3822 = vand.u32 2147483647, %v3806
  %v3823 = vand.u32 2147483647, %v3807
  %v3824 = vand.u32 2147483647, %v3808
  %v3825 = vand.u32 2147483647, %v3809
  %v3826 = vand.u32 2147483647, %v3810
  %v3827 = vand.u32 2147483647, %v3811
  %v3828 = vand.u32 2147483647, %v3812
  %v3829 = vand.u32 2147483647, %v3813
  %v3830 = vand.u32 2147483647, %v3814
  %v3831 = vand.u32 2147483647, %v3815
  %v3832 = vand.u32 2147483647, %v3816
  %v3833 = vand.u32 2147483647, %v3817
  %v3834 = vsub.f32 0.0, %v3818
  %v3835 = vsub.f32 0.0, %v3819
  %v3836 = vsub.f32 0.0, %v3820
  %v3837 = vsub.f32 0.0, %v3821
  %v3838 = vsub.f32 0.0, %v3822
  %v3839 = vsub.f32 0.0, %v3823
  %v3840 = vsub.f32 0.0, %v3824
  %v3841 = vsub.f32 0.0, %v3825
  %v3842 = vsub.f32 0.0, %v3826
  %v3843 = vsub.f32 0.0, %v3827
  %v3844 = vsub.f32 0.0, %v3828
  %v3845 = vsub.f32 0.0, %v3829
  %v3846 = vsub.f32 0.0, %v3830
  %v3847 = vsub.f32 0.0, %v3831
  %v3848 = vsub.f32 0.0, %v3832
  %v3849 = vsub.f32 0.0, %v3833
  %v3850 = vmul.f32 %v3834, 1.442695
  %v3851 = vpow.pop %v3850
  %v3852 = vmul.f32 %v3835, 1.442695
  %v3853 = vpow.pop %v3852
  %v3854 = vmul.f32 %v3836, 1.442695
  %v3855 = vpow.pop %v3854
  %v3856 = vmul.f32 %v3837, 1.442695
  %v3857 = vpow.pop %v3856
  %v3858 = vmul.f32 %v3838, 1.442695
  %v3859 = vpow.pop %v3858
  %v3860 = vmul.f32 %v3839, 1.442695
  %v3861 = vpow.pop %v3860
  %v3862 = vmul.f32 %v3840, 1.442695
  %v3863 = vpow.pop %v3862
  %v3864 = vmul.f32 %v3841, 1.442695
  %v3865 = vpow.pop %v3864
  %v3866 = vmul.f32 %v3842, 1.442695
  %v3867 = vpow.pop %v3866
  %v3868 = vmul.f32 %v3843, 1.442695
  %v3869 = vpow.pop %v3868
  %v3870 = vmul.f32 %v3844, 1.442695
  %v3871 = vpow.pop %v3870
  %v3872 = vmul.f32 %v3845, 1.442695
  %v3873 = vpow.pop %v3872
  %v3874 = vmul.f32 %v3846, 1.442695
  %v3875 = vpow.pop %v3874
  %v3876 = vmul.f32 %v3847, 1.442695
  %v3877 = vpow.pop %v3876
  %v3878 = vmul.f32 %v3848, 1.442695
  %v3879 = vpow.pop %v3878
  %v3880 = vmul.f32 %v3849, 1.442695
  %v3881 = vpow.pop %v3880
  %v3882 = vadd.f32 %v3851, 1.0
  %v3883 = vadd.f32 %v3853, 1.0
  %v3884 = vadd.f32 %v3855, 1.0
  %v3885 = vadd.f32 %v3857, 1.0
  %v3886 = vadd.f32 %v3859, 1.0
  %v3887 = vadd.f32 %v3861, 1.0
  %v3888 = vadd.f32 %v3863, 1.0
  %v3889 = vadd.f32 %v3865, 1.0
  %v3890 = vadd.f32 %v3867, 1.0
  %v3891 = vadd.f32 %v3869, 1.0
  %v3892 = vadd.f32 %v3871, 1.0
  %v3893 = vadd.f32 %v3873, 1.0
  %v3894 = vadd.f32 %v3875, 1.0
  %v3895 = vadd.f32 %v3877, 1.0
  %v3896 = vadd.f32 %v3879, 1.0
  %v3897 = vadd.f32 %v3881, 1.0
  %v3898 = vrcp.pop %v3882
  %v3899 = vrcp.pop %v3883
  %v3900 = vrcp.pop %v3884
  %v3901 = vrcp.pop %v3885
  %v3902 = vrcp.pop %v3886
  %v3903 = vrcp.pop %v3887
  %v3904 = vrcp.pop %v3888
  %v3905 = vrcp.pop %v3889
  %v3906 = vrcp.pop %v3890
  %v3907 = vrcp.pop %v3891
  %v3908 = vrcp.pop %v3892
  %v3909 = vrcp.pop %v3893
  %v3910 = vrcp.pop %v3894
  %v3911 = vrcp.pop %v3895
  %v3912 = vrcp.pop %v3896
  %v3913 = vrcp.pop %v3897
  %vm3914 = vcmp.ge.f32.partialorder %v3802, 0.0
  %vm3915 = vcmp.ge.f32.partialorder %v3803, 0.0
  %vm3916 = vcmp.ge.f32.partialorder %v3804, 0.0
  %vm3917 = vcmp.ge.f32.partialorder %v3805, 0.0
  %vm3918 = vcmp.ge.f32.partialorder %v3806, 0.0
  %vm3919 = vcmp.ge.f32.partialorder %v3807, 0.0
  %vm3920 = vcmp.ge.f32.partialorder %v3808, 0.0
  %vm3921 = vcmp.ge.f32.partialorder %v3809, 0.0
  %vm3922 = vcmp.ge.f32.partialorder %v3810, 0.0
  %vm3923 = vcmp.ge.f32.partialorder %v3811, 0.0
  %vm3924 = vcmp.ge.f32.partialorder %v3812, 0.0
  %vm3925 = vcmp.ge.f32.partialorder %v3813, 0.0
  %vm3926 = vcmp.ge.f32.partialorder %v3814, 0.0
  %vm3927 = vcmp.ge.f32.partialorder %v3815, 0.0
  %vm3928 = vcmp.ge.f32.partialorder %v3816, 0.0
  %vm3929 = vcmp.ge.f32.partialorder %v3817, 0.0
  %v3930 = vmul.f32 %v3851, %v3898
  %v3931 = vmul.f32 %v3853, %v3899
  %v3932 = vmul.f32 %v3855, %v3900
  %v3933 = vmul.f32 %v3857, %v3901
  %v3934 = vmul.f32 %v3859, %v3902
  %v3935 = vmul.f32 %v3861, %v3903
  %v3936 = vmul.f32 %v3863, %v3904
  %v3937 = vmul.f32 %v3865, %v3905
  %v3938 = vmul.f32 %v3867, %v3906
  %v3939 = vmul.f32 %v3869, %v3907
  %v3940 = vmul.f32 %v3871, %v3908
  %v3941 = vmul.f32 %v3873, %v3909
  %v3942 = vmul.f32 %v3875, %v3910
  %v3943 = vmul.f32 %v3877, %v3911
  %v3944 = vmul.f32 %v3879, %v3912
  %v3945 = vmul.f32 %v3881, %v3913
  %v3946 = vsel %vm3914, %v3898, %v3930
  %v3947 = vsel %vm3915, %v3899, %v3931
  %v3948 = vsel %vm3916, %v3900, %v3932
  %v3949 = vsel %vm3917, %v3901, %v3933
  %v3950 = vsel %vm3918, %v3902, %v3934
  %v3951 = vsel %vm3919, %v3903, %v3935
  %v3952 = vsel %vm3920, %v3904, %v3936
  %v3953 = vsel %vm3921, %v3905, %v3937
  %v3954 = vsel %vm3922, %v3906, %v3938
  %v3955 = vsel %vm3923, %v3907, %v3939
  %v3956 = vsel %vm3924, %v3908, %v3940
  %v3957 = vsel %vm3925, %v3909, %v3941
  %v3958 = vsel %vm3926, %v3910, %v3942
  %v3959 = vsel %vm3927, %v3911, %v3943
  %v3960 = vsel %vm3928, %v3912, %v3944
  %v3961 = vsel %vm3929, %v3913, %v3945
  %3978 = vrot.lane.b32.xlu0 %v3946, 96
  %v3979 = vpop.permute.xlu0 %3978
  %3980 = vrot.lane.b32.xlu0 %v3947, 96
  %v3981 = vpop.permute.xlu0 %3980
  %3982 = vrot.lane.b32.xlu0 %v3948, 96
  %v3983 = vpop.permute.xlu0 %3982
  %3984 = vrot.lane.b32.xlu0 %v3949, 96
  %v3985 = vpop.permute.xlu0 %3984
  %3986 = vrot.lane.b32.xlu0 %v3950, 96
  %v3987 = vpop.permute.xlu0 %3986
  %3988 = vrot.lane.b32.xlu0 %v3951, 96
  %v3989 = vpop.permute.xlu0 %3988
  %3990 = vrot.lane.b32.xlu0 %v3952, 96
  %v3991 = vpop.permute.xlu0 %3990
  %3992 = vrot.lane.b32.xlu0 %v3953, 96
  %v3993 = vpop.permute.xlu0 %3992
  %3994 = vrot.lane.b32.xlu0 %v3954, 96
  %v3995 = vpop.permute.xlu0 %3994
  %3996 = vrot.lane.b32.xlu0 %v3955, 96
  %v3997 = vpop.permute.xlu0 %3996
  %3998 = vrot.lane.b32.xlu0 %v3956, 96
  %v3999 = vpop.permute.xlu0 %3998
  %4000 = vrot.lane.b32.xlu0 %v3957, 96
  %v4001 = vpop.permute.xlu0 %4000
  %4002 = vrot.lane.b32.xlu0 %v3958, 96
  %v4003 = vpop.permute.xlu0 %4002
  %4004 = vrot.lane.b32.xlu0 %v3959, 96
  %v4005 = vpop.permute.xlu0 %4004
  %4006 = vrot.lane.b32.xlu0 %v3960, 96
  %v4007 = vpop.permute.xlu0 %4006
  %4008 = vrot.lane.b32.xlu0 %v3961, 96
  %v4009 = vpop.permute.xlu0 %4008
  %v4026 = vmul.f32 %v3777, %v3979
  %v4027 = vmul.f32 %v3778, %v3981
  %v4028 = vmul.f32 %v3779, %v3983
  %v4029 = vmul.f32 %v3780, %v3985
  %v4030 = vmul.f32 %v3781, %v3987
  %v4031 = vmul.f32 %v3782, %v3989
  %v4032 = vmul.f32 %v3783, %v3991
  %v4033 = vmul.f32 %v3784, %v3993
  %v4034 = vmul.f32 %v3785, %v3995
  %v4035 = vmul.f32 %v3786, %v3997
  %v4036 = vmul.f32 %v3787, %v3999
  %v4037 = vmul.f32 %v3788, %v4001
  %v4038 = vmul.f32 %v3789, %v4003
  %v4039 = vmul.f32 %v3790, %v4005
  %v4040 = vmul.f32 %v3791, %v4007
  %v4041 = vmul.f32 %v3792, %v4009
  %vm4042 = vcmask 261120
  %4043 = vst.msk [vmem:[%s3] sm:$0xff] %vm4042, %v4026
  %4044 = vst.msk [vmem:[%s3 + $0x8] sm:$0xff] %vm4042, %v4027
  %4045 = vst.msk [vmem:[%s3 + $0x10] sm:$0xff] %vm4042, %v4028
  %4046 = vst.msk [vmem:[%s3 + $0x18] sm:$0xff] %vm4042, %v4029
  %4047 = vst.msk [vmem:[%s3 + $0x20] sm:$0xff] %vm4042, %v4030
  %4048 = vst.msk [vmem:[%s3 + $0x28] sm:$0xff] %vm4042, %v4031
  %4049 = vst.msk [vmem:[%s3 + $0x30] sm:$0xff] %vm4042, %v4032
  %4050 = vst.msk [vmem:[%s3 + $0x38] sm:$0xff] %vm4042, %v4033
  %4051 = vst.msk [vmem:[%s3 + $0x40] sm:$0xff] %vm4042, %v4034
  %4052 = vst.msk [vmem:[%s3 + $0x48] sm:$0xff] %vm4042, %v4035
  %4053 = vst.msk [vmem:[%s3 + $0x50] sm:$0xff] %vm4042, %v4036
  %4054 = vst.msk [vmem:[%s3 + $0x58] sm:$0xff] %vm4042, %v4037
  %4055 = vst.msk [vmem:[%s3 + $0x60] sm:$0xff] %vm4042, %v4038
  %4056 = vst.msk [vmem:[%s3 + $0x68] sm:$0xff] %vm4042, %v4039
  %4057 = vst.msk [vmem:[%s3 + $0x70] sm:$0xff] %vm4042, %v4040
  %4058 = vst.msk [vmem:[%s3 + $0x78] sm:$0xff] %vm4042, %v4041
  // Predicated region
  $region14: #{_lambda_.1} parent=0 // pred_check
    _
  $region15: #{_lambda_.1} parent=0 // pred_check_branch
    %4060 = sbr.rel (0) target = $region17
  $region16: #{_lambda_.1} parent=0 // pred_region
    _
  $region17: #{_lambda_.1} parent=0 // pred_fallthru
    _
  // Predicated region
  $region18: #{_lambda_.1} parent=0 // pred_check
    _
  $region19: #{_lambda_.1} parent=0 // pred_check_branch
    %4062 = sbr.rel (0) target = $region21
  $region20: #{_lambda_.1} parent=0 // pred_region
    _
  $region21: #{_lambda_.1} parent=0 // pred_fallthru
    _

</llo_original>
